<compile_context>
chip_gen: v5e
topology: v5e:2x2
jax: 0.10.0
libtpu: 0.0.40
codegen_flags: <defaults>
</compile_context>

<pallas_src>
from functools import partial

import jax
import jax.numpy as jnp
import numpy as np
from jax import lax
from jax.experimental import pallas as pl
from jax.experimental.pallas import tpu as pltpu


def _round_up(x, m):
    return (x + m - 1) // m * m


# ----------------------------- Pallas kernels ------------------------------

def _conv1_pool_relu_kernel(p_ref, w_ref, b_ref, o_ref):
    # p_ref: [Nb, 4, M, F]  (4 = 2x2 pool quad, M = pooled positions, F = K*K*Cin)
    # w_ref: [F, C]   b_ref: [1, C] (f32)   o_ref: [Nb, M, C]
    nb, nq, m, f = p_ref.shape
    c = w_ref.shape[1]
    # Fold (Nb, quad, position) into one big MXU M dimension: a single matmul
    # per grid step instead of 4 tiny ones (leading-dim merge, layout-preserving).
    p = p_ref[...].reshape(nb * nq * m, f)
    y = jnp.dot(p, w_ref[...], preferred_element_type=jnp.float32)
    y = jnp.maximum(y + b_ref[...], 0.0)          # bias + ReLU (commute with max-pool)
    y = y.reshape(nb, nq, m, c)                   # leading-dim split, layout-preserving
    o_ref[...] = jnp.max(y, axis=1).astype(o_ref.dtype)   # 2x2 max-pool


def _conv2_mlp_kernel(p_ref, w2_ref, b2_ref, w1f_ref, b1f_ref, w2f_ref, b2f_ref,
                      o_ref):
    # Fused tail of the network.
    # p_ref : [4, M2, Nb, F2]  conv2 im2col patches grouped by pool quad
    # w2_ref: [F2, C2]  b2_ref: [1, C2]
    # w1f_ref: [M2, C2, H]  fc1 weights permuted to per-position (h,w,c) order
    # b1f_ref: [1, H]   w2f_ref: [H, 10]   b2f_ref: [1, 10]
    # o_ref : [Nb, 10]  log-probabilities
    nq, m2, nb, f2 = p_ref.shape
    c2 = w2_ref.shape[1]

    # conv2: one matmul over the folded (quad, position, batch) rows.
    p = p_ref[...].reshape(nq * m2 * nb, f2)
    y = jnp.dot(p, w2_ref[...], preferred_element_type=jnp.float32)
    # TODO(synk): nn.Dropout2d on the conv2 output is identity (eval mode).
    y = jnp.maximum(y + b2_ref[...], 0.0)                     # bias + ReLU
    y = jnp.max(y.reshape(nq, m2, nb, c2), axis=0)            # 2x2 max-pool -> [M2, Nb, C2]

    # fc1 over the flattened 320 features without an unaligned in-kernel
    # reshape: batched dot over the M2=16 pooled positions (contract channels),
    # then sum the per-position contributions.
    y = y.astype(w1f_ref.dtype)
    h = lax.dot_general(
        y, w1f_ref[...],
        dimension_numbers=(((2,), (1,)), ((0,), (0,))),
        preferred_element_type=jnp.float32)                   # [M2, Nb, H]
    h = jnp.sum(h, axis=0) + b1f_ref[...]                     # [Nb, H]
    h = jnp.maximum(h, 0.0)
    # TODO(synk): F.dropout after fc1 is identity (eval mode).
    logits = jnp.dot(h.astype(w2f_ref.dtype), w2f_ref[...],
                     preferred_element_type=jnp.float32) + b2f_ref[...]
    mx = jnp.max(logits, axis=-1, keepdims=True)
    s = logits - mx
    lse = jnp.log(jnp.sum(jnp.exp(s), axis=-1, keepdims=True))
    o_ref[...] = (s - lse).astype(o_ref.dtype)


# ------------------------------ glue / wrappers -----------------------------

def _im2col_pool_quads(x_nhwc, K, pool=2):
    """[N,H,W,Cin] -> patches [N, pool*pool, Hp*Wp, K*K*Cin] grouped by pool quad."""
    N, H, W, Cin = x_nhwc.shape
    Ho, Wo = H - K + 1, W - K + 1
    Hp, Wp = Ho // pool, Wo // pool
    cols = []
    for ki in range(K):
        for kj in range(K):
            cols.append(x_nhwc[:, ki:ki + Ho, kj:kj + Wo, :])
    patches = jnp.stack(cols, axis=-2)                     # [N, Ho, Wo, K*K, Cin]
    patches = patches.reshape(N, Ho, Wo, K * K * Cin)
    patches = patches.reshape(N, Hp, pool, Wp, pool, K * K * Cin)
    patches = patches.transpose(0, 2, 4, 1, 3, 5)          # [N, 2, 2, Hp, Wp, F]
    patches = patches.reshape(N, pool * pool, Hp * Wp, K * K * Cin)
    return patches, Hp, Wp


def _conv_w_flat(w_oihw):
    # PyTorch [Cout, Cin, KH, KW] -> [(ki*K+kj)*Cin + ci, Cout]
    cout, cin, kh, kw = w_oihw.shape
    return jnp.transpose(w_oihw, (2, 3, 1, 0)).reshape(kh * kw * cin, cout)


_MOSAIC_PARAMS = pltpu.CompilerParams(
    dimension_semantics=("parallel",),          # batch-parallel grid (v7x: both TCs)
    vmem_limit_bytes=40 * 1024 * 1024,          # fits v5e/v6e (128 MiB) and v7x (64 MiB)
)


def conv1_pool_relu(patches, w_flat, b, nb, out_dtype):
    n_pad, nq, m, f = patches.shape
    c = w_flat.shape[1]
    return pl.pallas_call(
        _conv1_pool_relu_kernel,
        out_shape=jax.ShapeDtypeStruct((n_pad, m, c), out_dtype),
        grid=(n_pad // nb,),
        in_specs=[
            pl.BlockSpec((nb, nq, m, f), lambda i: (i, 0, 0, 0)),
            pl.BlockSpec((f, c), lambda i: (0, 0)),
            pl.BlockSpec((1, c), lambda i: (0, 0)),
        ],
        out_specs=pl.BlockSpec((nb, m, c), lambda i: (i, 0, 0)),
        compiler_params=_MOSAIC_PARAMS,
    )(patches, w_flat, b.reshape(1, c).astype(jnp.float32))


def conv2_mlp_head(patches_t, w2_flat, b2, w1f, b1, w2f, bout, nb):
    nq, m2, n_pad, f2 = patches_t.shape
    c2 = w2_flat.shape[1]
    h = w1f.shape[2]
    dout = w2f.shape[1]
    return pl.pallas_call(
        _conv2_mlp_kernel,
        out_shape=jax.ShapeDtypeStruct((n_pad, dout), jnp.float32),
        grid=(n_pad // nb,),
        in_specs=[
            pl.BlockSpec((nq, m2, nb, f2), lambda i: (0, 0, i, 0)),
            pl.BlockSpec((f2, c2), lambda i: (0, 0)),
            pl.BlockSpec((1, c2), lambda i: (0, 0)),
            pl.BlockSpec((m2, c2, h), lambda i: (0, 0, 0)),
            pl.BlockSpec((1, h), lambda i: (0, 0)),
            pl.BlockSpec((h, dout), lambda i: (0, 0)),
            pl.BlockSpec((1, dout), lambda i: (0, 0)),
        ],
        out_specs=pl.BlockSpec((nb, dout), lambda i: (i, 0)),
        compiler_params=_MOSAIC_PARAMS,
    )(patches_t, w2_flat, b2.reshape(1, c2).astype(jnp.float32), w1f,
      b1.reshape(1, h).astype(jnp.float32), w2f,
      bout.reshape(1, dout).astype(jnp.float32))


def init_params(key):
    ks = jax.random.split(key, 8)

    def u(k, shape, fan_in):
        bound = 1.0 / (fan_in ** 0.5)
        return jax.random.uniform(k, shape, jnp.float32, -bound, bound)

    return {
        "conv1_w": u(ks[0], (10, 1, 5, 5), 1 * 5 * 5),
        "conv1_b": u(ks[1], (10,), 1 * 5 * 5),
        "conv2_w": u(ks[2], (20, 10, 5, 5), 10 * 5 * 5),
        "conv2_b": u(ks[3], (20,), 10 * 5 * 5),
        "fc1_w": u(ks[4], (320, 50), 320),  # stored as [in, out], torch (c,h,w) row order
        "fc1_b": u(ks[5], (50,), 320),
        "fc2_w": u(ks[6], (50, 10), 50),
        "fc2_b": u(ks[7], (10,), 50),
    }


@partial(jax.jit, static_argnames=("compute_dtype", "block_n"))
def net_forward(params, x_nchw, compute_dtype=jnp.float32, block_n=16):
    """Forward pass.  compute_dtype=jnp.bfloat16 enables the bf16 MXU path
    (recommended on v6e/v7x); accumulation and epilogue stay in f32."""
    n = x_nchw.shape[0]
    nb = min(block_n, _round_up(n, 8))          # batch block, multiple of 8
    n_pad = _round_up(n, nb)                    # pad ragged trailing block with zeros
    cd = compute_dtype

    x = jnp.transpose(x_nchw, (0, 2, 3, 1))                      # NCHW -> NHWC
    x = jnp.pad(x, ((0, n_pad - n), (0, 0), (0, 0), (0, 0)))

    # ---- stage 1: conv1 -> maxpool2 -> relu (one batch-blocked kernel) ----
    p1, hp1, wp1 = _im2col_pool_quads(x, K=5)                    # [n_pad, 4, 144, 25]
    w1 = _conv_w_flat(params["conv1_w"]).astype(cd)
    a1 = conv1_pool_relu(p1.astype(cd), w1, params["conv1_b"], nb, cd)  # [n_pad,144,10]
    c1 = params["conv1_w"].shape[0]
    a1 = a1.reshape(n_pad, hp1, wp1, c1)                         # NHWC, free reshape

    # ---- stage 2: conv2 -> [dropout2d] -> maxpool2 -> relu -> fc1 -> relu
    #               -> [dropout] -> fc2 -> log_softmax, fused in one kernel ----
    p2, hp2, wp2 = _im2col_pool_quads(a1, K=5)                   # [n_pad, 4, 16, 250]
    p2 = jnp.transpose(p2, (1, 2, 0, 3))                         # [4, 16, n_pad, 250]
    w2 = _conv_w_flat(params["conv2_w"]).astype(cd)
    c2 = params["conv2_w"].shape[0]
    m2 = hp2 * wp2
    # fc1 rows are in torch's (c, h, w) flatten order; permute to per-position
    # [M2, C2, H] so the fused kernel consumes the NHWC pooled activations
    # directly (this replaces the old inter-kernel NCHW transpose + mlp_head).
    w1f = params["fc1_w"].reshape(c2, m2, -1).transpose(1, 0, 2).astype(cd)
    w2f = params["fc2_w"].astype(cd)
    out = conv2_mlp_head(p2.astype(cd), w2, params["conv2_b"], w1f,
                         params["fc1_b"], w2f, params["fc2_b"], nb)
    return out[:n]


# ----------------------------- pure-JAX reference ---------------------------

def reference_forward(params, x_nchw):
    def conv(x, w, b):
        y = lax.conv_general_dilated(x, w, (1, 1), "VALID",
                                     dimension_numbers=("NCHW", "OIHW", "NCHW"))
        return y + b.reshape(1, -1, 1, 1)

    def maxpool2(x):
        N, C, H, W = x.shape
        return x.reshape(N, C, H // 2, 2, W // 2, 2).max(axis=(3, 5))

    x = jax.nn.relu(maxpool2(conv(x_nchw, params["conv1_w"], params["conv1_b"])))
    x = jax.nn.relu(maxpool2(conv(x, params["conv2_w"], params["conv2_b"])))
    x = x.reshape(x.shape[0], -1)
    x = jax.nn.relu(x @ params["fc1_w"] + params["fc1_b"])
    x = x @ params["fc2_w"] + params["fc2_b"]
    return jax.nn.log_softmax(x, axis=1)


if __name__ == "__main__":
    key = jax.random.PRNGKey(0)
    pkey, xkey = jax.random.split(key)
    params = init_params(pkey)
    x = jax.random.normal(xkey, (2, 1, 28, 28), jnp.float32)  # MNIST-shaped input

    ref = reference_forward(params, x)

    # f32 path (exact semantics).
    out = jax.block_until_ready(net_forward(params, x))
    assert out.shape == (2, 10) and out.dtype == jnp.float32
    np.testing.assert_allclose(np.asarray(out), np.asarray(ref), rtol=2e-2, atol=2e-2)

    # bf16 storage / MXU path (recommended on v6e/v7x), f32 accumulation.
    out_bf16 = jax.block_until_ready(
        net_forward(params, x, compute_dtype=jnp.bfloat16))
    assert out_bf16.shape == (2, 10) and out_bf16.dtype == jnp.float32
    np.testing.assert_allclose(np.asarray(out_bf16), np.asarray(ref),
                               rtol=7e-2, atol=7e-2)

    print("KERNEL_OK")
</pallas_src>

<mosaic_0001>
module attributes {stable_mosaic.version = 11 : i64} {
  func.func @_conv1_pool_relu_kernel(%arg0: i32, %arg1: memref<8x4x144x25xf32, #tpu.memory_space<vmem>>, %arg2: memref<25x10xf32, #tpu.memory_space<vmem>>, %arg3: memref<1x10xf32, #tpu.memory_space<vmem>>, %arg4: memref<8x144x10xf32, #tpu.memory_space<vmem>>) attributes {dimension_semantics = [#tpu.dimension_semantics<parallel>], iteration_bounds = array<i64: 1>, scalar_prefetch = 0 : i64, scratch_operands = 0 : i64, tpu.core_type = #tpu.core_type<tc>, window_params = [{transform_indices = @transform_0, window_bounds = array<i64: 8, 4, 144, 25>}, {pipeline_mode = #tpu.pipeline_mode<synchronous>, transform_indices = @transform_1, window_bounds = array<i64: 25, 10>}, {pipeline_mode = #tpu.pipeline_mode<synchronous>, transform_indices = @transform_2, window_bounds = array<i64: 1, 10>}, {transform_indices = @transform_3, window_bounds = array<i64: 8, 144, 10>}]} {
    %c0 = arith.constant 0 : index
    %c0_0 = arith.constant 0 : index
    %c0_1 = arith.constant 0 : index
    %c0_2 = arith.constant 0 : index
    %0 = vector.load %arg1[%c0, %c0_0, %c0_1, %c0_2] : memref<8x4x144x25xf32, #tpu.memory_space<vmem>>, vector<8x4x144x25xf32>
    %1 = vector.shape_cast %0 : vector<8x4x144x25xf32> to vector<4608x25xf32>
    %c0_3 = arith.constant 0 : index
    %c0_4 = arith.constant 0 : index
    %2 = vector.load %arg2[%c0_3, %c0_4] : memref<25x10xf32, #tpu.memory_space<vmem>>, vector<25x10xf32>
    %cst = arith.constant dense<0.000000e+00> : vector<4608x10xf32>
    %3 = tpu.matmul %1, %2, %cst {dimension_numbers = #tpu.dot_dimension_numbers<[1], [0], [0], [1], [0, 0, 1, 1], [], []>} : vector<4608x25xf32>, vector<25x10xf32>, vector<4608x10xf32> -> vector<4608x10xf32>
    %c0_5 = arith.constant 0 : index
    %c0_6 = arith.constant 0 : index
    %4 = vector.load %arg3[%c0_5, %c0_6] : memref<1x10xf32, #tpu.memory_space<vmem>>, vector<1x10xf32>
    %5 = vector.broadcast %4 : vector<1x10xf32> to vector<4608x10xf32>
    %6 = arith.addf %3, %5 : vector<4608x10xf32>
    %cst_7 = arith.constant 0.000000e+00 : f32
    %7 = vector.broadcast %cst_7 : f32 to vector<4608x10xf32>
    %8 = arith.maximumf %6, %7 : vector<4608x10xf32>
    %9 = vector.shape_cast %8 : vector<4608x10xf32> to vector<8x4x144x10xf32>
    %cst_8 = arith.constant dense<0xFF800000> : vector<8x144x10xf32>
    %10 = vector.multi_reduction <maximumf>, %9, %cst_8 [1] : vector<8x4x144x10xf32> to vector<8x144x10xf32>
    %c0_9 = arith.constant 0 : index
    %c0_10 = arith.constant 0 : index
    %c0_11 = arith.constant 0 : index
    %11 = vector.load %arg4[%c0_9, %c0_10, %c0_11] : memref<8x144x10xf32, #tpu.memory_space<vmem>>, vector<8x144x10xf32>
    tpu.vector_store %arg4[%c0_9, %c0_10, %c0_11], %10 {strides = array<i32>} : memref<8x144x10xf32, #tpu.memory_space<vmem>>, vector<8x144x10xf32>,
    return
  }
  func.func @transform_0(%arg0: i32) -> (i32, i32, i32, i32) {
    %c0_i32 = arith.constant 0 : i32
    %c0_i32_0 = arith.constant 0 : i32
    %c0_i32_1 = arith.constant 0 : i32
    %c0_i32_2 = arith.constant 0 : i32
    return %arg0, %c0_i32, %c0_i32_0, %c0_i32_1 : i32, i32, i32, i32
  }
  func.func @transform_1(%arg0: i32) -> (i32, i32) {
    %c0_i32 = arith.constant 0 : i32
    %c0_i32_0 = arith.constant 0 : i32
    %c0_i32_1 = arith.constant 0 : i32
    return %c0_i32, %c0_i32_0 : i32, i32
  }
  func.func @transform_2(%arg0: i32) -> (i32, i32) {
    %c0_i32 = arith.constant 0 : i32
    %c0_i32_0 = arith.constant 0 : i32
    %c0_i32_1 = arith.constant 0 : i32
    return %c0_i32, %c0_i32_0 : i32, i32
  }
  func.func @transform_3(%arg0: i32) -> (i32, i32, i32) {
    %c0_i32 = arith.constant 0 : i32
    %c0_i32_0 = arith.constant 0 : i32
    %c0_i32_1 = arith.constant 0 : i32
    return %arg0, %c0_i32, %c0_i32_0 : i32, i32, i32
  }
}

module attributes {stable_mosaic.version = 11 : i64} {
  func.func @_conv2_mlp_kernel(%arg0: i32, %arg1: memref<4x16x8x250xf32, #tpu.memory_space<vmem>>, %arg2: memref<250x20xf32, #tpu.memory_space<vmem>>, %arg3: memref<1x20xf32, #tpu.memory_space<vmem>>, %arg4: memref<16x20x50xf32, #tpu.memory_space<vmem>>, %arg5: memref<1x50xf32, #tpu.memory_space<vmem>>, %arg6: memref<50x10xf32, #tpu.memory_space<vmem>>, %arg7: memref<1x10xf32, #tpu.memory_space<vmem>>, %arg8: memref<8x10xf32, #tpu.memory_space<vmem>>) attributes {dimension_semantics = [#tpu.dimension_semantics<parallel>], iteration_bounds = array<i64: 1>, scalar_prefetch = 0 : i64, scratch_operands = 0 : i64, tpu.core_type = #tpu.core_type<tc>, window_params = [{transform_indices = @transform_0, window_bounds = array<i64: 4, 16, 8, 250>}, {pipeline_mode = #tpu.pipeline_mode<synchronous>, transform_indices = @transform_1, window_bounds = array<i64: 250, 20>}, {pipeline_mode = #tpu.pipeline_mode<synchronous>, transform_indices = @transform_2, window_bounds = array<i64: 1, 20>}, {pipeline_mode = #tpu.pipeline_mode<synchronous>, transform_indices = @transform_3, window_bounds = array<i64: 16, 20, 50>}, {pipeline_mode = #tpu.pipeline_mode<synchronous>, transform_indices = @transform_4, window_bounds = array<i64: 1, 50>}, {pipeline_mode = #tpu.pipeline_mode<synchronous>, transform_indices = @transform_5, window_bounds = array<i64: 50, 10>}, {pipeline_mode = #tpu.pipeline_mode<synchronous>, transform_indices = @transform_6, window_bounds = array<i64: 1, 10>}, {transform_indices = @transform_7, window_bounds = array<i64: 8, 10>}]} {
    %c0 = arith.constant 0 : index
    %c0_0 = arith.constant 0 : index
    %c0_1 = arith.constant 0 : index
    %c0_2 = arith.constant 0 : index
    %0 = vector.load %arg1[%c0, %c0_0, %c0_1, %c0_2] : memref<4x16x8x250xf32, #tpu.memory_space<vmem>>, vector<4x16x8x250xf32>
    %1 = vector.shape_cast %0 : vector<4x16x8x250xf32> to vector<512x250xf32>
    %c0_3 = arith.constant 0 : index
    %c0_4 = arith.constant 0 : index
    %2 = vector.load %arg2[%c0_3, %c0_4] : memref<250x20xf32, #tpu.memory_space<vmem>>, vector<250x20xf32>
    %cst = arith.constant dense<0.000000e+00> : vector<512x20xf32>
    %3 = tpu.matmul %1, %2, %cst {dimension_numbers = #tpu.dot_dimension_numbers<[1], [0], [0], [1], [0, 0, 1, 1], [], []>} : vector<512x250xf32>, vector<250x20xf32>, vector<512x20xf32> -> vector<512x20xf32>
    %c0_5 = arith.constant 0 : index
    %c0_6 = arith.constant 0 : index
    %4 = vector.load %arg3[%c0_5, %c0_6] : memref<1x20xf32, #tpu.memory_space<vmem>>, vector<1x20xf32>
    %5 = vector.broadcast %4 : vector<1x20xf32> to vector<512x20xf32>
    %6 = arith.addf %3, %5 : vector<512x20xf32>
    %cst_7 = arith.constant 0.000000e+00 : f32
    %7 = vector.broadcast %cst_7 : f32 to vector<512x20xf32>
    %8 = arith.maximumf %6, %7 : vector<512x20xf32>
    %9 = vector.shape_cast %8 : vector<512x20xf32> to vector<4x16x8x20xf32>
    %cst_8 = arith.constant dense<0xFF800000> : vector<16x8x20xf32>
    %10 = vector.multi_reduction <maximumf>, %9, %cst_8 [0] : vector<4x16x8x20xf32> to vector<16x8x20xf32>
    %c0_9 = arith.constant 0 : index
    %c0_10 = arith.constant 0 : index
    %c0_11 = arith.constant 0 : index
    %11 = vector.load %arg4[%c0_9, %c0_10, %c0_11] : memref<16x20x50xf32, #tpu.memory_space<vmem>>, vector<16x20x50xf32>
    %cst_12 = arith.constant dense<0.000000e+00> : vector<16x8x50xf32>
    %12 = tpu.matmul %10, %11, %cst_12 {dimension_numbers = #tpu.dot_dimension_numbers<[2], [1], [1], [2], [0, 0, 0, 1, 1, 2], [0], [0]>} : vector<16x8x20xf32>, vector<16x20x50xf32>, vector<16x8x50xf32> -> vector<16x8x50xf32>
    %cst_13 = arith.constant dense<0.000000e+00> : vector<8x50xf32>
    %13 = vector.multi_reduction <add>, %12, %cst_13 [0] : vector<16x8x50xf32> to vector<8x50xf32>
    %c0_14 = arith.constant 0 : index
    %c0_15 = arith.constant 0 : index
    %14 = vector.load %arg5[%c0_14, %c0_15] : memref<1x50xf32, #tpu.memory_space<vmem>>, vector<1x50xf32>
    %15 = vector.broadcast %14 : vector<1x50xf32> to vector<8x50xf32>
    %16 = arith.addf %13, %15 : vector<8x50xf32>
    %cst_16 = arith.constant 0.000000e+00 : f32
    %17 = vector.broadcast %cst_16 : f32 to vector<8x50xf32>
    %18 = arith.maximumf %16, %17 : vector<8x50xf32>
    %c0_17 = arith.constant 0 : index
    %c0_18 = arith.constant 0 : index
    %19 = vector.load %arg6[%c0_17, %c0_18] : memref<50x10xf32, #tpu.memory_space<vmem>>, vector<50x10xf32>
    %cst_19 = arith.constant dense<0.000000e+00> : vector<8x10xf32>
    %20 = tpu.matmul %18, %19, %cst_19 {dimension_numbers = #tpu.dot_dimension_numbers<[1], [0], [0], [1], [0, 0, 1, 1], [], []>} : vector<8x50xf32>, vector<50x10xf32>, vector<8x10xf32> -> vector<8x10xf32>
    %c0_20 = arith.constant 0 : index
    %c0_21 = arith.constant 0 : index
    %21 = vector.load %arg7[%c0_20, %c0_21] : memref<1x10xf32, #tpu.memory_space<vmem>>, vector<1x10xf32>
    %22 = vector.broadcast %21 : vector<1x10xf32> to vector<8x10xf32>
    %23 = arith.addf %20, %22 : vector<8x10xf32>
    %cst_22 = arith.constant dense<0xFF800000> : vector<8xf32>
    %24 = vector.multi_reduction <maximumf>, %23, %cst_22 [1] : vector<8x10xf32> to vector<8xf32>
    %25 = vector.shape_cast %24 : vector<8xf32> to vector<8x1xf32>
    %26 = vector.broadcast %25 : vector<8x1xf32> to vector<8x10xf32>
    %27 = arith.subf %23, %26 : vector<8x10xf32>
    %28 = math.exp %27 : vector<8x10xf32>
    %cst_23 = arith.constant dense<0.000000e+00> : vector<8xf32>
    %29 = vector.multi_reduction <add>, %28, %cst_23 [1] : vector<8x10xf32> to vector<8xf32>
    %30 = vector.shape_cast %29 : vector<8xf32> to vector<8x1xf32>
    %31 = math.log %30 : vector<8x1xf32>
    %32 = vector.broadcast %31 : vector<8x1xf32> to vector<8x10xf32>
    %33 = arith.subf %27, %32 : vector<8x10xf32>
    %c0_24 = arith.constant 0 : index
    %c0_25 = arith.constant 0 : index
    %34 = vector.load %arg8[%c0_24, %c0_25] : memref<8x10xf32, #tpu.memory_space<vmem>>, vector<8x10xf32>
    tpu.vector_store %arg8[%c0_24, %c0_25], %33 {strides = array<i32>} : memref<8x10xf32, #tpu.memory_space<vmem>>, vector<8x10xf32>,
    return
  }
  func.func @transform_0(%arg0: i32) -> (i32, i32, i32, i32) {
    %c0_i32 = arith.constant 0 : i32
    %c0_i32_0 = arith.constant 0 : i32
    %c0_i32_1 = arith.constant 0 : i32
    %c0_i32_2 = arith.constant 0 : i32
    return %c0_i32, %c0_i32_0, %arg0, %c0_i32_1 : i32, i32, i32, i32
  }
  func.func @transform_1(%arg0: i32) -> (i32, i32) {
    %c0_i32 = arith.constant 0 : i32
    %c0_i32_0 = arith.constant 0 : i32
    %c0_i32_1 = arith.constant 0 : i32
    return %c0_i32, %c0_i32_0 : i32, i32
  }
  func.func @transform_2(%arg0: i32) -> (i32, i32) {
    %c0_i32 = arith.constant 0 : i32
    %c0_i32_0 = arith.constant 0 : i32
    %c0_i32_1 = arith.constant 0 : i32
    return %c0_i32, %c0_i32_0 : i32, i32
  }
  func.func @transform_3(%arg0: i32) -> (i32, i32, i32) {
    %c0_i32 = arith.constant 0 : i32
    %c0_i32_0 = arith.constant 0 : i32
    %c0_i32_1 = arith.constant 0 : i32
    %c0_i32_2 = arith.constant 0 : i32
    return %c0_i32, %c0_i32_0, %c0_i32_1 : i32, i32, i32
  }
  func.func @transform_4(%arg0: i32) -> (i32, i32) {
    %c0_i32 = arith.constant 0 : i32
    %c0_i32_0 = arith.constant 0 : i32
    %c0_i32_1 = arith.constant 0 : i32
    return %c0_i32, %c0_i32_0 : i32, i32
  }
  func.func @transform_5(%arg0: i32) -> (i32, i32) {
    %c0_i32 = arith.constant 0 : i32
    %c0_i32_0 = arith.constant 0 : i32
    %c0_i32_1 = arith.constant 0 : i32
    return %c0_i32, %c0_i32_0 : i32, i32
  }
  func.func @transform_6(%arg0: i32) -> (i32, i32) {
    %c0_i32 = arith.constant 0 : i32
    %c0_i32_0 = arith.constant 0 : i32
    %c0_i32_1 = arith.constant 0 : i32
    return %c0_i32, %c0_i32_0 : i32, i32
  }
  func.func @transform_7(%arg0: i32) -> (i32, i32) {
    %c0_i32 = arith.constant 0 : i32
    %c0_i32_0 = arith.constant 0 : i32
    return %arg0, %c0_i32 : i32, i32
  }
}

</mosaic_0001>

<llo_original>
// kernel: net_forward.2
$region0: #{net_forward.2}
  #allocation0 [shape = 'u32[]', space=smem, size = 0x4, offset = 0x4, fixed_abs, tag = 'smem constant byte address 0x4 - core index']
  #allocation1 [shape = 'u32[72,128]{1,0:T(1,128)}', space=vmem, size = 0x9000, scoped, tag = 'internal scratch']
  %s0 = inlined_call_operand.vmem [shape: f32[8,4,144,25], index: 0, kind: input, shape index: {}]
  %s1 = inlined_call_operand.vmem [shape: f32[25,10], index: 1, kind: input, shape index: {}]
  %s2 = inlined_call_operand.vmem [shape: f32[1,10], index: 2, kind: input, shape index: {}]
  %s3 = inlined_call_operand.vmem [shape: f32[8,144,10], index: 3, kind: output, shape index: {}]
  %s4 = sld [smem:[#allocation0]]
  $region22: #{net_forward.2} parent=0
    _
  %s6 = ssub.s32 1, %s4
  %s7 = scalar_select 0, %s6, %s4
  // Predicated region
  $region2: #{net_forward.2} parent=0 // pred_check
    _
  $region3: #{net_forward.2} parent=0 // pred_check_branch
    %9 = sbr.rel (0) target = $region5
  $region4: #{net_forward.2} parent=0 // pred_region
    _
  $region5: #{net_forward.2} parent=0 // pred_fallthru
    _
  // Predicated region
  $region6: #{net_forward.2} parent=0 // pred_check
    _
  $region7: #{net_forward.2} parent=0 // pred_check_branch
    %11 = sbr.rel (0) target = $region9
  $region8: #{net_forward.2} parent=0 // pred_region
    _
  $region9: #{net_forward.2} parent=0 // pred_fallthru
    _
  // Predicated region
  $region10: #{net_forward.2} parent=0 // pred_check
    _
  $region11: #{net_forward.2} parent=0 // pred_check_branch
    %13 = sbr.rel (0) target = $region13
  $region12: #{net_forward.2} parent=0 // pred_region
    _
  $region13: #{net_forward.2} parent=0 // pred_fallthru
    _
  %v14 = vld [vmem:[%s0] sm:$0xff]
  %v15 = vld [vmem:[%s0 + $0x8] sm:$0xff]
  %v16 = vld [vmem:[%s0 + $0x10] sm:$0xff]
  %v17 = vld [vmem:[%s0 + $0x18] sm:$0xff]
  %v18 = vld [vmem:[%s0 + $0x20] sm:$0xff]
  %v19 = vld [vmem:[%s0 + $0x28] sm:$0xff]
  %v20 = vld [vmem:[%s0 + $0x30] sm:$0xff]
  %v21 = vld [vmem:[%s0 + $0x38] sm:$0xff]
  %v22 = vld [vmem:[%s0 + $0x40] sm:$0xff]
  %v23 = vld [vmem:[%s0 + $0x48] sm:$0xff]
  %v24 = vld [vmem:[%s0 + $0x50] sm:$0xff]
  %v25 = vld [vmem:[%s0 + $0x58] sm:$0xff]
  %v26 = vld [vmem:[%s0 + $0x60] sm:$0xff]
  %v27 = vld [vmem:[%s0 + $0x68] sm:$0xff]
  %v28 = vld [vmem:[%s0 + $0x70] sm:$0xff]
  %v29 = vld [vmem:[%s0 + $0x78] sm:$0xff]
  %v30 = vld [vmem:[%s0 + $0x80] sm:$0xff]
  %v31 = vld [vmem:[%s0 + $0x88] sm:$0xff]
  %v32 = vld [vmem:[%s0 + $0x90] sm:$0xff]
  %v33 = vld [vmem:[%s0 + $0x98] sm:$0xff]
  %v34 = vld [vmem:[%s0 + $0xa0] sm:$0xff]
  %v35 = vld [vmem:[%s0 + $0xa8] sm:$0xff]
  %v36 = vld [vmem:[%s0 + $0xb0] sm:$0xff]
  %v37 = vld [vmem:[%s0 + $0xb8] sm:$0xff]
  %v38 = vld [vmem:[%s0 + $0xc0] sm:$0xff]
  %v39 = vld [vmem:[%s0 + $0xc8] sm:$0xff]
  %v40 = vld [vmem:[%s0 + $0xd0] sm:$0xff]
  %v41 = vld [vmem:[%s0 + $0xd8] sm:$0xff]
  %v42 = vld [vmem:[%s0 + $0xe0] sm:$0xff]
  %v43 = vld [vmem:[%s0 + $0xe8] sm:$0xff]
  %v44 = vld [vmem:[%s0 + $0xf0] sm:$0xff]
  %v45 = vld [vmem:[%s0 + $0xf8] sm:$0xff]
  %v46 = vld [vmem:[%s0 + $0x100] sm:$0xff]
  %v47 = vld [vmem:[%s0 + $0x108] sm:$0xff]
  %v48 = vld [vmem:[%s0 + $0x110] sm:$0xff]
  %v49 = vld [vmem:[%s0 + $0x118] sm:$0xff]
  %v50 = vld [vmem:[%s0 + $0x120] sm:$0xff]
  %v51 = vld [vmem:[%s0 + $0x128] sm:$0xff]
  %v52 = vld [vmem:[%s0 + $0x130] sm:$0xff]
  %v53 = vld [vmem:[%s0 + $0x138] sm:$0xff]
  %v54 = vld [vmem:[%s0 + $0x140] sm:$0xff]
  %v55 = vld [vmem:[%s0 + $0x148] sm:$0xff]
  %v56 = vld [vmem:[%s0 + $0x150] sm:$0xff]
  %v57 = vld [vmem:[%s0 + $0x158] sm:$0xff]
  %v58 = vld [vmem:[%s0 + $0x160] sm:$0xff]
  %v59 = vld [vmem:[%s0 + $0x168] sm:$0xff]
  %v60 = vld [vmem:[%s0 + $0x170] sm:$0xff]
  %v61 = vld [vmem:[%s0 + $0x178] sm:$0xff]
  %v62 = vld [vmem:[%s0 + $0x180] sm:$0xff]
  %v63 = vld [vmem:[%s0 + $0x188] sm:$0xff]
  %v64 = vld [vmem:[%s0 + $0x190] sm:$0xff]
  %v65 = vld [vmem:[%s0 + $0x198] sm:$0xff]
  %v66 = vld [vmem:[%s0 + $0x1a0] sm:$0xff]
  %v67 = vld [vmem:[%s0 + $0x1a8] sm:$0xff]
  %v68 = vld [vmem:[%s0 + $0x1b0] sm:$0xff]
  %v69 = vld [vmem:[%s0 + $0x1b8] sm:$0xff]
  %v70 = vld [vmem:[%s0 + $0x1c0] sm:$0xff]
  %v71 = vld [vmem:[%s0 + $0x1c8] sm:$0xff]
  %v72 = vld [vmem:[%s0 + $0x1d0] sm:$0xff]
  %v73 = vld [vmem:[%s0 + $0x1d8] sm:$0xff]
  %v74 = vld [vmem:[%s0 + $0x1e0] sm:$0xff]
  %v75 = vld [vmem:[%s0 + $0x1e8] sm:$0xff]
  %v76 = vld [vmem:[%s0 + $0x1f0] sm:$0xff]
  %v77 = vld [vmem:[%s0 + $0x1f8] sm:$0xff]
  %v78 = vld [vmem:[%s0 + $0x200] sm:$0xff]
  %v79 = vld [vmem:[%s0 + $0x208] sm:$0xff]
  %v80 = vld [vmem:[%s0 + $0x210] sm:$0xff]
  %v81 = vld [vmem:[%s0 + $0x218] sm:$0xff]
  %v82 = vld [vmem:[%s0 + $0x220] sm:$0xff]
  %v83 = vld [vmem:[%s0 + $0x228] sm:$0xff]
  %v84 = vld [vmem:[%s0 + $0x230] sm:$0xff]
  %v85 = vld [vmem:[%s0 + $0x238] sm:$0xff]
  %v86 = vld [vmem:[%s0 + $0x240] sm:$0xff]
  %v87 = vld [vmem:[%s0 + $0x248] sm:$0xff]
  %v88 = vld [vmem:[%s0 + $0x250] sm:$0xff]
  %v89 = vld [vmem:[%s0 + $0x258] sm:$0xff]
  %v90 = vld [vmem:[%s0 + $0x260] sm:$0xff]
  %v91 = vld [vmem:[%s0 + $0x268] sm:$0xff]
  %v92 = vld [vmem:[%s0 + $0x270] sm:$0xff]
  %v93 = vld [vmem:[%s0 + $0x278] sm:$0xff]
  %v94 = vld [vmem:[%s0 + $0x280] sm:$0xff]
  %v95 = vld [vmem:[%s0 + $0x288] sm:$0xff]
  %v96 = vld [vmem:[%s0 + $0x290] sm:$0xff]
  %v97 = vld [vmem:[%s0 + $0x298] sm:$0xff]
  %v98 = vld [vmem:[%s0 + $0x2a0] sm:$0xff]
  %v99 = vld [vmem:[%s0 + $0x2a8] sm:$0xff]
  %v100 = vld [vmem:[%s0 + $0x2b0] sm:$0xff]
  %v101 = vld [vmem:[%s0 + $0x2b8] sm:$0xff]
  %v102 = vld [vmem:[%s0 + $0x2c0] sm:$0xff]
  %v103 = vld [vmem:[%s0 + $0x2c8] sm:$0xff]
  %v104 = vld [vmem:[%s0 + $0x2d0] sm:$0xff]
  %v105 = vld [vmem:[%s0 + $0x2d8] sm:$0xff]
  %v106 = vld [vmem:[%s0 + $0x2e0] sm:$0xff]
  %v107 = vld [vmem:[%s0 + $0x2e8] sm:$0xff]
  %v108 = vld [vmem:[%s0 + $0x2f0] sm:$0xff]
  %v109 = vld [vmem:[%s0 + $0x2f8] sm:$0xff]
  %v110 = vld [vmem:[%s0 + $0x300] sm:$0xff]
  %v111 = vld [vmem:[%s0 + $0x308] sm:$0xff]
  %v112 = vld [vmem:[%s0 + $0x310] sm:$0xff]
  %v113 = vld [vmem:[%s0 + $0x318] sm:$0xff]
  %v114 = vld [vmem:[%s0 + $0x320] sm:$0xff]
  %v115 = vld [vmem:[%s0 + $0x328] sm:$0xff]
  %v116 = vld [vmem:[%s0 + $0x330] sm:$0xff]
  %v117 = vld [vmem:[%s0 + $0x338] sm:$0xff]
  %v118 = vld [vmem:[%s0 + $0x340] sm:$0xff]
  %v119 = vld [vmem:[%s0 + $0x348] sm:$0xff]
  %v120 = vld [vmem:[%s0 + $0x350] sm:$0xff]
  %v121 = vld [vmem:[%s0 + $0x358] sm:$0xff]
  %v122 = vld [vmem:[%s0 + $0x360] sm:$0xff]
  %v123 = vld [vmem:[%s0 + $0x368] sm:$0xff]
  %v124 = vld [vmem:[%s0 + $0x370] sm:$0xff]
  %v125 = vld [vmem:[%s0 + $0x378] sm:$0xff]
  %v126 = vld [vmem:[%s0 + $0x380] sm:$0xff]
  %v127 = vld [vmem:[%s0 + $0x388] sm:$0xff]
  %v128 = vld [vmem:[%s0 + $0x390] sm:$0xff]
  %v129 = vld [vmem:[%s0 + $0x398] sm:$0xff]
  %v130 = vld [vmem:[%s0 + $0x3a0] sm:$0xff]
  %v131 = vld [vmem:[%s0 + $0x3a8] sm:$0xff]
  %v132 = vld [vmem:[%s0 + $0x3b0] sm:$0xff]
  %v133 = vld [vmem:[%s0 + $0x3b8] sm:$0xff]
  %v134 = vld [vmem:[%s0 + $0x3c0] sm:$0xff]
  %v135 = vld [vmem:[%s0 + $0x3c8] sm:$0xff]
  %v136 = vld [vmem:[%s0 + $0x3d0] sm:$0xff]
  %v137 = vld [vmem:[%s0 + $0x3d8] sm:$0xff]
  %v138 = vld [vmem:[%s0 + $0x3e0] sm:$0xff]
  %v139 = vld [vmem:[%s0 + $0x3e8] sm:$0xff]
  %v140 = vld [vmem:[%s0 + $0x3f0] sm:$0xff]
  %v141 = vld [vmem:[%s0 + $0x3f8] sm:$0xff]
  %v142 = vld [vmem:[%s0 + $0x400] sm:$0xff]
  %v143 = vld [vmem:[%s0 + $0x408] sm:$0xff]
  %v144 = vld [vmem:[%s0 + $0x410] sm:$0xff]
  %v145 = vld [vmem:[%s0 + $0x418] sm:$0xff]
  %v146 = vld [vmem:[%s0 + $0x420] sm:$0xff]
  %v147 = vld [vmem:[%s0 + $0x428] sm:$0xff]
  %v148 = vld [vmem:[%s0 + $0x430] sm:$0xff]
  %v149 = vld [vmem:[%s0 + $0x438] sm:$0xff]
  %v150 = vld [vmem:[%s0 + $0x440] sm:$0xff]
  %v151 = vld [vmem:[%s0 + $0x448] sm:$0xff]
  %v152 = vld [vmem:[%s0 + $0x450] sm:$0xff]
  %v153 = vld [vmem:[%s0 + $0x458] sm:$0xff]
  %v154 = vld [vmem:[%s0 + $0x460] sm:$0xff]
  %v155 = vld [vmem:[%s0 + $0x468] sm:$0xff]
  %v156 = vld [vmem:[%s0 + $0x470] sm:$0xff]
  %v157 = vld [vmem:[%s0 + $0x478] sm:$0xff]
  %v158 = vld [vmem:[%s0 + $0x480] sm:$0xff]
  %v159 = vld [vmem:[%s0 + $0x488] sm:$0xff]
  %v160 = vld [vmem:[%s0 + $0x490] sm:$0xff]
  %v161 = vld [vmem:[%s0 + $0x498] sm:$0xff]
  %v162 = vld [vmem:[%s0 + $0x4a0] sm:$0xff]
  %v163 = vld [vmem:[%s0 + $0x4a8] sm:$0xff]
  %v164 = vld [vmem:[%s0 + $0x4b0] sm:$0xff]
  %v165 = vld [vmem:[%s0 + $0x4b8] sm:$0xff]
  %v166 = vld [vmem:[%s0 + $0x4c0] sm:$0xff]
  %v167 = vld [vmem:[%s0 + $0x4c8] sm:$0xff]
  %v168 = vld [vmem:[%s0 + $0x4d0] sm:$0xff]
  %v169 = vld [vmem:[%s0 + $0x4d8] sm:$0xff]
  %v170 = vld [vmem:[%s0 + $0x4e0] sm:$0xff]
  %v171 = vld [vmem:[%s0 + $0x4e8] sm:$0xff]
  %v172 = vld [vmem:[%s0 + $0x4f0] sm:$0xff]
  %v173 = vld [vmem:[%s0 + $0x4f8] sm:$0xff]
  %v174 = vld [vmem:[%s0 + $0x500] sm:$0xff]
  %v175 = vld [vmem:[%s0 + $0x508] sm:$0xff]
  %v176 = vld [vmem:[%s0 + $0x510] sm:$0xff]
  %v177 = vld [vmem:[%s0 + $0x518] sm:$0xff]
  %v178 = vld [vmem:[%s0 + $0x520] sm:$0xff]
  %v179 = vld [vmem:[%s0 + $0x528] sm:$0xff]
  %v180 = vld [vmem:[%s0 + $0x530] sm:$0xff]
  %v181 = vld [vmem:[%s0 + $0x538] sm:$0xff]
  %v182 = vld [vmem:[%s0 + $0x540] sm:$0xff]
  %v183 = vld [vmem:[%s0 + $0x548] sm:$0xff]
  %v184 = vld [vmem:[%s0 + $0x550] sm:$0xff]
  %v185 = vld [vmem:[%s0 + $0x558] sm:$0xff]
  %v186 = vld [vmem:[%s0 + $0x560] sm:$0xff]
  %v187 = vld [vmem:[%s0 + $0x568] sm:$0xff]
  %v188 = vld [vmem:[%s0 + $0x570] sm:$0xff]
  %v189 = vld [vmem:[%s0 + $0x578] sm:$0xff]
  %v190 = vld [vmem:[%s0 + $0x580] sm:$0xff]
  %v191 = vld [vmem:[%s0 + $0x588] sm:$0xff]
  %v192 = vld [vmem:[%s0 + $0x590] sm:$0xff]
  %v193 = vld [vmem:[%s0 + $0x598] sm:$0xff]
  %v194 = vld [vmem:[%s0 + $0x5a0] sm:$0xff]
  %v195 = vld [vmem:[%s0 + $0x5a8] sm:$0xff]
  %v196 = vld [vmem:[%s0 + $0x5b0] sm:$0xff]
  %v197 = vld [vmem:[%s0 + $0x5b8] sm:$0xff]
  %v198 = vld [vmem:[%s0 + $0x5c0] sm:$0xff]
  %v199 = vld [vmem:[%s0 + $0x5c8] sm:$0xff]
  %v200 = vld [vmem:[%s0 + $0x5d0] sm:$0xff]
  %v201 = vld [vmem:[%s0 + $0x5d8] sm:$0xff]
  %v202 = vld [vmem:[%s0 + $0x5e0] sm:$0xff]
  %v203 = vld [vmem:[%s0 + $0x5e8] sm:$0xff]
  %v204 = vld [vmem:[%s0 + $0x5f0] sm:$0xff]
  %v205 = vld [vmem:[%s0 + $0x5f8] sm:$0xff]
  %v206 = vld [vmem:[%s0 + $0x600] sm:$0xff]
  %v207 = vld [vmem:[%s0 + $0x608] sm:$0xff]
  %v208 = vld [vmem:[%s0 + $0x610] sm:$0xff]
  %v209 = vld [vmem:[%s0 + $0x618] sm:$0xff]
  %v210 = vld [vmem:[%s0 + $0x620] sm:$0xff]
  %v211 = vld [vmem:[%s0 + $0x628] sm:$0xff]
  %v212 = vld [vmem:[%s0 + $0x630] sm:$0xff]
  %v213 = vld [vmem:[%s0 + $0x638] sm:$0xff]
  %v214 = vld [vmem:[%s0 + $0x640] sm:$0xff]
  %v215 = vld [vmem:[%s0 + $0x648] sm:$0xff]
  %v216 = vld [vmem:[%s0 + $0x650] sm:$0xff]
  %v217 = vld [vmem:[%s0 + $0x658] sm:$0xff]
  %v218 = vld [vmem:[%s0 + $0x660] sm:$0xff]
  %v219 = vld [vmem:[%s0 + $0x668] sm:$0xff]
  %v220 = vld [vmem:[%s0 + $0x670] sm:$0xff]
  %v221 = vld [vmem:[%s0 + $0x678] sm:$0xff]
  %v222 = vld [vmem:[%s0 + $0x680] sm:$0xff]
  %v223 = vld [vmem:[%s0 + $0x688] sm:$0xff]
  %v224 = vld [vmem:[%s0 + $0x690] sm:$0xff]
  %v225 = vld [vmem:[%s0 + $0x698] sm:$0xff]
  %v226 = vld [vmem:[%s0 + $0x6a0] sm:$0xff]
  %v227 = vld [vmem:[%s0 + $0x6a8] sm:$0xff]
  %v228 = vld [vmem:[%s0 + $0x6b0] sm:$0xff]
  %v229 = vld [vmem:[%s0 + $0x6b8] sm:$0xff]
  %v230 = vld [vmem:[%s0 + $0x6c0] sm:$0xff]
  %v231 = vld [vmem:[%s0 + $0x6c8] sm:$0xff]
  %v232 = vld [vmem:[%s0 + $0x6d0] sm:$0xff]
  %v233 = vld [vmem:[%s0 + $0x6d8] sm:$0xff]
  %v234 = vld [vmem:[%s0 + $0x6e0] sm:$0xff]
  %v235 = vld [vmem:[%s0 + $0x6e8] sm:$0xff]
  %v236 = vld [vmem:[%s0 + $0x6f0] sm:$0xff]
  %v237 = vld [vmem:[%s0 + $0x6f8] sm:$0xff]
  %v238 = vld [vmem:[%s0 + $0x700] sm:$0xff]
  %v239 = vld [vmem:[%s0 + $0x708] sm:$0xff]
  %v240 = vld [vmem:[%s0 + $0x710] sm:$0xff]
  %v241 = vld [vmem:[%s0 + $0x718] sm:$0xff]
  %v242 = vld [vmem:[%s0 + $0x720] sm:$0xff]
  %v243 = vld [vmem:[%s0 + $0x728] sm:$0xff]
  %v244 = vld [vmem:[%s0 + $0x730] sm:$0xff]
  %v245 = vld [vmem:[%s0 + $0x738] sm:$0xff]
  %v246 = vld [vmem:[%s0 + $0x740] sm:$0xff]
  %v247 = vld [vmem:[%s0 + $0x748] sm:$0xff]
  %v248 = vld [vmem:[%s0 + $0x750] sm:$0xff]
  %v249 = vld [vmem:[%s0 + $0x758] sm:$0xff]
  %v250 = vld [vmem:[%s0 + $0x760] sm:$0xff]
  %v251 = vld [vmem:[%s0 + $0x768] sm:$0xff]
  %v252 = vld [vmem:[%s0 + $0x770] sm:$0xff]
  %v253 = vld [vmem:[%s0 + $0x778] sm:$0xff]
  %v254 = vld [vmem:[%s0 + $0x780] sm:$0xff]
  %v255 = vld [vmem:[%s0 + $0x788] sm:$0xff]
  %v256 = vld [vmem:[%s0 + $0x790] sm:$0xff]
  %v257 = vld [vmem:[%s0 + $0x798] sm:$0xff]
  %v258 = vld [vmem:[%s0 + $0x7a0] sm:$0xff]
  %v259 = vld [vmem:[%s0 + $0x7a8] sm:$0xff]
  %v260 = vld [vmem:[%s0 + $0x7b0] sm:$0xff]
  %v261 = vld [vmem:[%s0 + $0x7b8] sm:$0xff]
  %v262 = vld [vmem:[%s0 + $0x7c0] sm:$0xff]
  %v263 = vld [vmem:[%s0 + $0x7c8] sm:$0xff]
  %v264 = vld [vmem:[%s0 + $0x7d0] sm:$0xff]
  %v265 = vld [vmem:[%s0 + $0x7d8] sm:$0xff]
  %v266 = vld [vmem:[%s0 + $0x7e0] sm:$0xff]
  %v267 = vld [vmem:[%s0 + $0x7e8] sm:$0xff]
  %v268 = vld [vmem:[%s0 + $0x7f0] sm:$0xff]
  %v269 = vld [vmem:[%s0 + $0x7f8] sm:$0xff]
  %v270 = vld [vmem:[%s0 + $0x800] sm:$0xff]
  %v271 = vld [vmem:[%s0 + $0x808] sm:$0xff]
  %v272 = vld [vmem:[%s0 + $0x810] sm:$0xff]
  %v273 = vld [vmem:[%s0 + $0x818] sm:$0xff]
  %v274 = vld [vmem:[%s0 + $0x820] sm:$0xff]
  %v275 = vld [vmem:[%s0 + $0x828] sm:$0xff]
  %v276 = vld [vmem:[%s0 + $0x830] sm:$0xff]
  %v277 = vld [vmem:[%s0 + $0x838] sm:$0xff]
  %v278 = vld [vmem:[%s0 + $0x840] sm:$0xff]
  %v279 = vld [vmem:[%s0 + $0x848] sm:$0xff]
  %v280 = vld [vmem:[%s0 + $0x850] sm:$0xff]
  %v281 = vld [vmem:[%s0 + $0x858] sm:$0xff]
  %v282 = vld [vmem:[%s0 + $0x860] sm:$0xff]
  %v283 = vld [vmem:[%s0 + $0x868] sm:$0xff]
  %v284 = vld [vmem:[%s0 + $0x870] sm:$0xff]
  %v285 = vld [vmem:[%s0 + $0x878] sm:$0xff]
  %v286 = vld [vmem:[%s0 + $0x880] sm:$0xff]
  %v287 = vld [vmem:[%s0 + $0x888] sm:$0xff]
  %v288 = vld [vmem:[%s0 + $0x890] sm:$0xff]
  %v289 = vld [vmem:[%s0 + $0x898] sm:$0xff]
  %v290 = vld [vmem:[%s0 + $0x8a0] sm:$0xff]
  %v291 = vld [vmem:[%s0 + $0x8a8] sm:$0xff]
  %v292 = vld [vmem:[%s0 + $0x8b0] sm:$0xff]
  %v293 = vld [vmem:[%s0 + $0x8b8] sm:$0xff]
  %v294 = vld [vmem:[%s0 + $0x8c0] sm:$0xff]
  %v295 = vld [vmem:[%s0 + $0x8c8] sm:$0xff]
  %v296 = vld [vmem:[%s0 + $0x8d0] sm:$0xff]
  %v297 = vld [vmem:[%s0 + $0x8d8] sm:$0xff]
  %v298 = vld [vmem:[%s0 + $0x8e0] sm:$0xff]
  %v299 = vld [vmem:[%s0 + $0x8e8] sm:$0xff]
  %v300 = vld [vmem:[%s0 + $0x8f0] sm:$0xff]
  %v301 = vld [vmem:[%s0 + $0x8f8] sm:$0xff]
  %v302 = vld [vmem:[%s0 + $0x900] sm:$0xff]
  %v303 = vld [vmem:[%s0 + $0x908] sm:$0xff]
  %v304 = vld [vmem:[%s0 + $0x910] sm:$0xff]
  %v305 = vld [vmem:[%s0 + $0x918] sm:$0xff]
  %v306 = vld [vmem:[%s0 + $0x920] sm:$0xff]
  %v307 = vld [vmem:[%s0 + $0x928] sm:$0xff]
  %v308 = vld [vmem:[%s0 + $0x930] sm:$0xff]
  %v309 = vld [vmem:[%s0 + $0x938] sm:$0xff]
  %v310 = vld [vmem:[%s0 + $0x940] sm:$0xff]
  %v311 = vld [vmem:[%s0 + $0x948] sm:$0xff]
  %v312 = vld [vmem:[%s0 + $0x950] sm:$0xff]
  %v313 = vld [vmem:[%s0 + $0x958] sm:$0xff]
  %v314 = vld [vmem:[%s0 + $0x960] sm:$0xff]
  %v315 = vld [vmem:[%s0 + $0x968] sm:$0xff]
  %v316 = vld [vmem:[%s0 + $0x970] sm:$0xff]
  %v317 = vld [vmem:[%s0 + $0x978] sm:$0xff]
  %v318 = vld [vmem:[%s0 + $0x980] sm:$0xff]
  %v319 = vld [vmem:[%s0 + $0x988] sm:$0xff]
  %v320 = vld [vmem:[%s0 + $0x990] sm:$0xff]
  %v321 = vld [vmem:[%s0 + $0x998] sm:$0xff]
  %v322 = vld [vmem:[%s0 + $0x9a0] sm:$0xff]
  %v323 = vld [vmem:[%s0 + $0x9a8] sm:$0xff]
  %v324 = vld [vmem:[%s0 + $0x9b0] sm:$0xff]
  %v325 = vld [vmem:[%s0 + $0x9b8] sm:$0xff]
  %v326 = vld [vmem:[%s0 + $0x9c0] sm:$0xff]
  %v327 = vld [vmem:[%s0 + $0x9c8] sm:$0xff]
  %v328 = vld [vmem:[%s0 + $0x9d0] sm:$0xff]
  %v329 = vld [vmem:[%s0 + $0x9d8] sm:$0xff]
  %v330 = vld [vmem:[%s0 + $0x9e0] sm:$0xff]
  %v331 = vld [vmem:[%s0 + $0x9e8] sm:$0xff]
  %v332 = vld [vmem:[%s0 + $0x9f0] sm:$0xff]
  %v333 = vld [vmem:[%s0 + $0x9f8] sm:$0xff]
  %v334 = vld [vmem:[%s0 + $0xa00] sm:$0xff]
  %v335 = vld [vmem:[%s0 + $0xa08] sm:$0xff]
  %v336 = vld [vmem:[%s0 + $0xa10] sm:$0xff]
  %v337 = vld [vmem:[%s0 + $0xa18] sm:$0xff]
  %v338 = vld [vmem:[%s0 + $0xa20] sm:$0xff]
  %v339 = vld [vmem:[%s0 + $0xa28] sm:$0xff]
  %v340 = vld [vmem:[%s0 + $0xa30] sm:$0xff]
  %v341 = vld [vmem:[%s0 + $0xa38] sm:$0xff]
  %v342 = vld [vmem:[%s0 + $0xa40] sm:$0xff]
  %v343 = vld [vmem:[%s0 + $0xa48] sm:$0xff]
  %v344 = vld [vmem:[%s0 + $0xa50] sm:$0xff]
  %v345 = vld [vmem:[%s0 + $0xa58] sm:$0xff]
  %v346 = vld [vmem:[%s0 + $0xa60] sm:$0xff]
  %v347 = vld [vmem:[%s0 + $0xa68] sm:$0xff]
  %v348 = vld [vmem:[%s0 + $0xa70] sm:$0xff]
  %v349 = vld [vmem:[%s0 + $0xa78] sm:$0xff]
  %v350 = vld [vmem:[%s0 + $0xa80] sm:$0xff]
  %v351 = vld [vmem:[%s0 + $0xa88] sm:$0xff]
  %v352 = vld [vmem:[%s0 + $0xa90] sm:$0xff]
  %v353 = vld [vmem:[%s0 + $0xa98] sm:$0xff]
  %v354 = vld [vmem:[%s0 + $0xaa0] sm:$0xff]
  %v355 = vld [vmem:[%s0 + $0xaa8] sm:$0xff]
  %v356 = vld [vmem:[%s0 + $0xab0] sm:$0xff]
  %v357 = vld [vmem:[%s0 + $0xab8] sm:$0xff]
  %v358 = vld [vmem:[%s0 + $0xac0] sm:$0xff]
  %v359 = vld [vmem:[%s0 + $0xac8] sm:$0xff]
  %v360 = vld [vmem:[%s0 + $0xad0] sm:$0xff]
  %v361 = vld [vmem:[%s0 + $0xad8] sm:$0xff]
  %v362 = vld [vmem:[%s0 + $0xae0] sm:$0xff]
  %v363 = vld [vmem:[%s0 + $0xae8] sm:$0xff]
  %v364 = vld [vmem:[%s0 + $0xaf0] sm:$0xff]
  %v365 = vld [vmem:[%s0 + $0xaf8] sm:$0xff]
  %v366 = vld [vmem:[%s0 + $0xb00] sm:$0xff]
  %v367 = vld [vmem:[%s0 + $0xb08] sm:$0xff]
  %v368 = vld [vmem:[%s0 + $0xb10] sm:$0xff]
  %v369 = vld [vmem:[%s0 + $0xb18] sm:$0xff]
  %v370 = vld [vmem:[%s0 + $0xb20] sm:$0xff]
  %v371 = vld [vmem:[%s0 + $0xb28] sm:$0xff]
  %v372 = vld [vmem:[%s0 + $0xb30] sm:$0xff]
  %v373 = vld [vmem:[%s0 + $0xb38] sm:$0xff]
  %v374 = vld [vmem:[%s0 + $0xb40] sm:$0xff]
  %v375 = vld [vmem:[%s0 + $0xb48] sm:$0xff]
  %v376 = vld [vmem:[%s0 + $0xb50] sm:$0xff]
  %v377 = vld [vmem:[%s0 + $0xb58] sm:$0xff]
  %v378 = vld [vmem:[%s0 + $0xb60] sm:$0xff]
  %v379 = vld [vmem:[%s0 + $0xb68] sm:$0xff]
  %v380 = vld [vmem:[%s0 + $0xb70] sm:$0xff]
  %v381 = vld [vmem:[%s0 + $0xb78] sm:$0xff]
  %v382 = vld [vmem:[%s0 + $0xb80] sm:$0xff]
  %v383 = vld [vmem:[%s0 + $0xb88] sm:$0xff]
  %v384 = vld [vmem:[%s0 + $0xb90] sm:$0xff]
  %v385 = vld [vmem:[%s0 + $0xb98] sm:$0xff]
  %v386 = vld [vmem:[%s0 + $0xba0] sm:$0xff]
  %v387 = vld [vmem:[%s0 + $0xba8] sm:$0xff]
  %v388 = vld [vmem:[%s0 + $0xbb0] sm:$0xff]
  %v389 = vld [vmem:[%s0 + $0xbb8] sm:$0xff]
  %v390 = vld [vmem:[%s0 + $0xbc0] sm:$0xff]
  %v391 = vld [vmem:[%s0 + $0xbc8] sm:$0xff]
  %v392 = vld [vmem:[%s0 + $0xbd0] sm:$0xff]
  %v393 = vld [vmem:[%s0 + $0xbd8] sm:$0xff]
  %v394 = vld [vmem:[%s0 + $0xbe0] sm:$0xff]
  %v395 = vld [vmem:[%s0 + $0xbe8] sm:$0xff]
  %v396 = vld [vmem:[%s0 + $0xbf0] sm:$0xff]
  %v397 = vld [vmem:[%s0 + $0xbf8] sm:$0xff]
  %v398 = vld [vmem:[%s0 + $0xc00] sm:$0xff]
  %v399 = vld [vmem:[%s0 + $0xc08] sm:$0xff]
  %v400 = vld [vmem:[%s0 + $0xc10] sm:$0xff]
  %v401 = vld [vmem:[%s0 + $0xc18] sm:$0xff]
  %v402 = vld [vmem:[%s0 + $0xc20] sm:$0xff]
  %v403 = vld [vmem:[%s0 + $0xc28] sm:$0xff]
  %v404 = vld [vmem:[%s0 + $0xc30] sm:$0xff]
  %v405 = vld [vmem:[%s0 + $0xc38] sm:$0xff]
  %v406 = vld [vmem:[%s0 + $0xc40] sm:$0xff]
  %v407 = vld [vmem:[%s0 + $0xc48] sm:$0xff]
  %v408 = vld [vmem:[%s0 + $0xc50] sm:$0xff]
  %v409 = vld [vmem:[%s0 + $0xc58] sm:$0xff]
  %v410 = vld [vmem:[%s0 + $0xc60] sm:$0xff]
  %v411 = vld [vmem:[%s0 + $0xc68] sm:$0xff]
  %v412 = vld [vmem:[%s0 + $0xc70] sm:$0xff]
  %v413 = vld [vmem:[%s0 + $0xc78] sm:$0xff]
  %v414 = vld [vmem:[%s0 + $0xc80] sm:$0xff]
  %v415 = vld [vmem:[%s0 + $0xc88] sm:$0xff]
  %v416 = vld [vmem:[%s0 + $0xc90] sm:$0xff]
  %v417 = vld [vmem:[%s0 + $0xc98] sm:$0xff]
  %v418 = vld [vmem:[%s0 + $0xca0] sm:$0xff]
  %v419 = vld [vmem:[%s0 + $0xca8] sm:$0xff]
  %v420 = vld [vmem:[%s0 + $0xcb0] sm:$0xff]
  %v421 = vld [vmem:[%s0 + $0xcb8] sm:$0xff]
  %v422 = vld [vmem:[%s0 + $0xcc0] sm:$0xff]
  %v423 = vld [vmem:[%s0 + $0xcc8] sm:$0xff]
  %v424 = vld [vmem:[%s0 + $0xcd0] sm:$0xff]
  %v425 = vld [vmem:[%s0 + $0xcd8] sm:$0xff]
  %v426 = vld [vmem:[%s0 + $0xce0] sm:$0xff]
  %v427 = vld [vmem:[%s0 + $0xce8] sm:$0xff]
  %v428 = vld [vmem:[%s0 + $0xcf0] sm:$0xff]
  %v429 = vld [vmem:[%s0 + $0xcf8] sm:$0xff]
  %v430 = vld [vmem:[%s0 + $0xd00] sm:$0xff]
  %v431 = vld [vmem:[%s0 + $0xd08] sm:$0xff]
  %v432 = vld [vmem:[%s0 + $0xd10] sm:$0xff]
  %v433 = vld [vmem:[%s0 + $0xd18] sm:$0xff]
  %v434 = vld [vmem:[%s0 + $0xd20] sm:$0xff]
  %v435 = vld [vmem:[%s0 + $0xd28] sm:$0xff]
  %v436 = vld [vmem:[%s0 + $0xd30] sm:$0xff]
  %v437 = vld [vmem:[%s0 + $0xd38] sm:$0xff]
  %v438 = vld [vmem:[%s0 + $0xd40] sm:$0xff]
  %v439 = vld [vmem:[%s0 + $0xd48] sm:$0xff]
  %v440 = vld [vmem:[%s0 + $0xd50] sm:$0xff]
  %v441 = vld [vmem:[%s0 + $0xd58] sm:$0xff]
  %v442 = vld [vmem:[%s0 + $0xd60] sm:$0xff]
  %v443 = vld [vmem:[%s0 + $0xd68] sm:$0xff]
  %v444 = vld [vmem:[%s0 + $0xd70] sm:$0xff]
  %v445 = vld [vmem:[%s0 + $0xd78] sm:$0xff]
  %v446 = vld [vmem:[%s0 + $0xd80] sm:$0xff]
  %v447 = vld [vmem:[%s0 + $0xd88] sm:$0xff]
  %v448 = vld [vmem:[%s0 + $0xd90] sm:$0xff]
  %v449 = vld [vmem:[%s0 + $0xd98] sm:$0xff]
  %v450 = vld [vmem:[%s0 + $0xda0] sm:$0xff]
  %v451 = vld [vmem:[%s0 + $0xda8] sm:$0xff]
  %v452 = vld [vmem:[%s0 + $0xdb0] sm:$0xff]
  %v453 = vld [vmem:[%s0 + $0xdb8] sm:$0xff]
  %v454 = vld [vmem:[%s0 + $0xdc0] sm:$0xff]
  %v455 = vld [vmem:[%s0 + $0xdc8] sm:$0xff]
  %v456 = vld [vmem:[%s0 + $0xdd0] sm:$0xff]
  %v457 = vld [vmem:[%s0 + $0xdd8] sm:$0xff]
  %v458 = vld [vmem:[%s0 + $0xde0] sm:$0xff]
  %v459 = vld [vmem:[%s0 + $0xde8] sm:$0xff]
  %v460 = vld [vmem:[%s0 + $0xdf0] sm:$0xff]
  %v461 = vld [vmem:[%s0 + $0xdf8] sm:$0xff]
  %v462 = vld [vmem:[%s0 + $0xe00] sm:$0xff]
  %v463 = vld [vmem:[%s0 + $0xe08] sm:$0xff]
  %v464 = vld [vmem:[%s0 + $0xe10] sm:$0xff]
  %v465 = vld [vmem:[%s0 + $0xe18] sm:$0xff]
  %v466 = vld [vmem:[%s0 + $0xe20] sm:$0xff]
  %v467 = vld [vmem:[%s0 + $0xe28] sm:$0xff]
  %v468 = vld [vmem:[%s0 + $0xe30] sm:$0xff]
  %v469 = vld [vmem:[%s0 + $0xe38] sm:$0xff]
  %v470 = vld [vmem:[%s0 + $0xe40] sm:$0xff]
  %v471 = vld [vmem:[%s0 + $0xe48] sm:$0xff]
  %v472 = vld [vmem:[%s0 + $0xe50] sm:$0xff]
  %v473 = vld [vmem:[%s0 + $0xe58] sm:$0xff]
  %v474 = vld [vmem:[%s0 + $0xe60] sm:$0xff]
  %v475 = vld [vmem:[%s0 + $0xe68] sm:$0xff]
  %v476 = vld [vmem:[%s0 + $0xe70] sm:$0xff]
  %v477 = vld [vmem:[%s0 + $0xe78] sm:$0xff]
  %v478 = vld [vmem:[%s0 + $0xe80] sm:$0xff]
  %v479 = vld [vmem:[%s0 + $0xe88] sm:$0xff]
  %v480 = vld [vmem:[%s0 + $0xe90] sm:$0xff]
  %v481 = vld [vmem:[%s0 + $0xe98] sm:$0xff]
  %v482 = vld [vmem:[%s0 + $0xea0] sm:$0xff]
  %v483 = vld [vmem:[%s0 + $0xea8] sm:$0xff]
  %v484 = vld [vmem:[%s0 + $0xeb0] sm:$0xff]
  %v485 = vld [vmem:[%s0 + $0xeb8] sm:$0xff]
  %v486 = vld [vmem:[%s0 + $0xec0] sm:$0xff]
  %v487 = vld [vmem:[%s0 + $0xec8] sm:$0xff]
  %v488 = vld [vmem:[%s0 + $0xed0] sm:$0xff]
  %v489 = vld [vmem:[%s0 + $0xed8] sm:$0xff]
  %v490 = vld [vmem:[%s0 + $0xee0] sm:$0xff]
  %v491 = vld [vmem:[%s0 + $0xee8] sm:$0xff]
  %v492 = vld [vmem:[%s0 + $0xef0] sm:$0xff]
  %v493 = vld [vmem:[%s0 + $0xef8] sm:$0xff]
  %v494 = vld [vmem:[%s0 + $0xf00] sm:$0xff]
  %v495 = vld [vmem:[%s0 + $0xf08] sm:$0xff]
  %v496 = vld [vmem:[%s0 + $0xf10] sm:$0xff]
  %v497 = vld [vmem:[%s0 + $0xf18] sm:$0xff]
  %v498 = vld [vmem:[%s0 + $0xf20] sm:$0xff]
  %v499 = vld [vmem:[%s0 + $0xf28] sm:$0xff]
  %v500 = vld [vmem:[%s0 + $0xf30] sm:$0xff]
  %v501 = vld [vmem:[%s0 + $0xf38] sm:$0xff]
  %v502 = vld [vmem:[%s0 + $0xf40] sm:$0xff]
  %v503 = vld [vmem:[%s0 + $0xf48] sm:$0xff]
  %v504 = vld [vmem:[%s0 + $0xf50] sm:$0xff]
  %v505 = vld [vmem:[%s0 + $0xf58] sm:$0xff]
  %v506 = vld [vmem:[%s0 + $0xf60] sm:$0xff]
  %v507 = vld [vmem:[%s0 + $0xf68] sm:$0xff]
  %v508 = vld [vmem:[%s0 + $0xf70] sm:$0xff]
  %v509 = vld [vmem:[%s0 + $0xf78] sm:$0xff]
  %v510 = vld [vmem:[%s0 + $0xf80] sm:$0xff]
  %v511 = vld [vmem:[%s0 + $0xf88] sm:$0xff]
  %v512 = vld [vmem:[%s0 + $0xf90] sm:$0xff]
  %v513 = vld [vmem:[%s0 + $0xf98] sm:$0xff]
  %v514 = vld [vmem:[%s0 + $0xfa0] sm:$0xff]
  %v515 = vld [vmem:[%s0 + $0xfa8] sm:$0xff]
  %v516 = vld [vmem:[%s0 + $0xfb0] sm:$0xff]
  %v517 = vld [vmem:[%s0 + $0xfb8] sm:$0xff]
  %v518 = vld [vmem:[%s0 + $0xfc0] sm:$0xff]
  %v519 = vld [vmem:[%s0 + $0xfc8] sm:$0xff]
  %v520 = vld [vmem:[%s0 + $0xfd0] sm:$0xff]
  %v521 = vld [vmem:[%s0 + $0xfd8] sm:$0xff]
  %v522 = vld [vmem:[%s0 + $0xfe0] sm:$0xff]
  %v523 = vld [vmem:[%s0 + $0xfe8] sm:$0xff]
  %v524 = vld [vmem:[%s0 + $0xff0] sm:$0xff]
  %v525 = vld [vmem:[%s0 + $0xff8] sm:$0xff]
  %v526 = vld [vmem:[%s0 + $0x1000] sm:$0xff]
  %v527 = vld [vmem:[%s0 + $0x1008] sm:$0xff]
  %v528 = vld [vmem:[%s0 + $0x1010] sm:$0xff]
  %v529 = vld [vmem:[%s0 + $0x1018] sm:$0xff]
  %v530 = vld [vmem:[%s0 + $0x1020] sm:$0xff]
  %v531 = vld [vmem:[%s0 + $0x1028] sm:$0xff]
  %v532 = vld [vmem:[%s0 + $0x1030] sm:$0xff]
  %v533 = vld [vmem:[%s0 + $0x1038] sm:$0xff]
  %v534 = vld [vmem:[%s0 + $0x1040] sm:$0xff]
  %v535 = vld [vmem:[%s0 + $0x1048] sm:$0xff]
  %v536 = vld [vmem:[%s0 + $0x1050] sm:$0xff]
  %v537 = vld [vmem:[%s0 + $0x1058] sm:$0xff]
  %v538 = vld [vmem:[%s0 + $0x1060] sm:$0xff]
  %v539 = vld [vmem:[%s0 + $0x1068] sm:$0xff]
  %v540 = vld [vmem:[%s0 + $0x1070] sm:$0xff]
  %v541 = vld [vmem:[%s0 + $0x1078] sm:$0xff]
  %v542 = vld [vmem:[%s0 + $0x1080] sm:$0xff]
  %v543 = vld [vmem:[%s0 + $0x1088] sm:$0xff]
  %v544 = vld [vmem:[%s0 + $0x1090] sm:$0xff]
  %v545 = vld [vmem:[%s0 + $0x1098] sm:$0xff]
  %v546 = vld [vmem:[%s0 + $0x10a0] sm:$0xff]
  %v547 = vld [vmem:[%s0 + $0x10a8] sm:$0xff]
  %v548 = vld [vmem:[%s0 + $0x10b0] sm:$0xff]
  %v549 = vld [vmem:[%s0 + $0x10b8] sm:$0xff]
  %v550 = vld [vmem:[%s0 + $0x10c0] sm:$0xff]
  %v551 = vld [vmem:[%s0 + $0x10c8] sm:$0xff]
  %v552 = vld [vmem:[%s0 + $0x10d0] sm:$0xff]
  %v553 = vld [vmem:[%s0 + $0x10d8] sm:$0xff]
  %v554 = vld [vmem:[%s0 + $0x10e0] sm:$0xff]
  %v555 = vld [vmem:[%s0 + $0x10e8] sm:$0xff]
  %v556 = vld [vmem:[%s0 + $0x10f0] sm:$0xff]
  %v557 = vld [vmem:[%s0 + $0x10f8] sm:$0xff]
  %v558 = vld [vmem:[%s0 + $0x1100] sm:$0xff]
  %v559 = vld [vmem:[%s0 + $0x1108] sm:$0xff]
  %v560 = vld [vmem:[%s0 + $0x1110] sm:$0xff]
  %v561 = vld [vmem:[%s0 + $0x1118] sm:$0xff]
  %v562 = vld [vmem:[%s0 + $0x1120] sm:$0xff]
  %v563 = vld [vmem:[%s0 + $0x1128] sm:$0xff]
  %v564 = vld [vmem:[%s0 + $0x1130] sm:$0xff]
  %v565 = vld [vmem:[%s0 + $0x1138] sm:$0xff]
  %v566 = vld [vmem:[%s0 + $0x1140] sm:$0xff]
  %v567 = vld [vmem:[%s0 + $0x1148] sm:$0xff]
  %v568 = vld [vmem:[%s0 + $0x1150] sm:$0xff]
  %v569 = vld [vmem:[%s0 + $0x1158] sm:$0xff]
  %v570 = vld [vmem:[%s0 + $0x1160] sm:$0xff]
  %v571 = vld [vmem:[%s0 + $0x1168] sm:$0xff]
  %v572 = vld [vmem:[%s0 + $0x1170] sm:$0xff]
  %v573 = vld [vmem:[%s0 + $0x1178] sm:$0xff]
  %v574 = vld [vmem:[%s0 + $0x1180] sm:$0xff]
  %v575 = vld [vmem:[%s0 + $0x1188] sm:$0xff]
  %v576 = vld [vmem:[%s0 + $0x1190] sm:$0xff]
  %v577 = vld [vmem:[%s0 + $0x1198] sm:$0xff]
  %v578 = vld [vmem:[%s0 + $0x11a0] sm:$0xff]
  %v579 = vld [vmem:[%s0 + $0x11a8] sm:$0xff]
  %v580 = vld [vmem:[%s0 + $0x11b0] sm:$0xff]
  %v581 = vld [vmem:[%s0 + $0x11b8] sm:$0xff]
  %v582 = vld [vmem:[%s0 + $0x11c0] sm:$0xff]
  %v583 = vld [vmem:[%s0 + $0x11c8] sm:$0xff]
  %v584 = vld [vmem:[%s0 + $0x11d0] sm:$0xff]
  %v585 = vld [vmem:[%s0 + $0x11d8] sm:$0xff]
  %v586 = vld [vmem:[%s0 + $0x11e0] sm:$0xff]
  %v587 = vld [vmem:[%s0 + $0x11e8] sm:$0xff]
  %v588 = vld [vmem:[%s0 + $0x11f0] sm:$0xff]
  %v589 = vld [vmem:[%s0 + $0x11f8] sm:$0xff]
  %v590 = vld [vmem:[%s1] sm:$0xff]
  %v591 = vld [vmem:[%s1 + $0x8] sm:$0xff]
  %v592 = vld [vmem:[%s1 + $0x10] sm:$0xff]
  %v593 = vld [vmem:[%s1 + $0x18] sm:$0x1]
  %v594 = vld [vmem:[%s2] sm:$0x1]
  %v596 = vperm.slane %v594, 0
  %vm598 = vcmask 203776
  %v600 = vsel %vm598, %v14, 0
  %v603 = vsel %vm598, %v15, 0
  %v606 = vsel %vm598, %v16, 0
  %v609 = vsel %vm598, %v17, 0
  %v612 = vsel %vm598, %v18, 0
  %v615 = vsel %vm598, %v19, 0
  %v618 = vsel %vm598, %v20, 0
  %v621 = vsel %vm598, %v21, 0
  %v624 = vsel %vm598, %v22, 0
  %v627 = vsel %vm598, %v23, 0
  %v630 = vsel %vm598, %v24, 0
  %v633 = vsel %vm598, %v25, 0
  %v636 = vsel %vm598, %v26, 0
  %v639 = vsel %vm598, %v27, 0
  %v642 = vsel %vm598, %v28, 0
  %v645 = vsel %vm598, %v29, 0
  %v648 = vsel %vm598, %v30, 0
  %v651 = vsel %vm598, %v31, 0
  %v654 = vsel %vm598, %v32, 0
  %v657 = vsel %vm598, %v33, 0
  %v660 = vsel %vm598, %v34, 0
  %v663 = vsel %vm598, %v35, 0
  %v666 = vsel %vm598, %v36, 0
  %v669 = vsel %vm598, %v37, 0
  %v672 = vsel %vm598, %v38, 0
  %v675 = vsel %vm598, %v39, 0
  %v678 = vsel %vm598, %v40, 0
  %v681 = vsel %vm598, %v41, 0
  %v684 = vsel %vm598, %v42, 0
  %v687 = vsel %vm598, %v43, 0
  %v690 = vsel %vm598, %v44, 0
  %v693 = vsel %vm598, %v45, 0
  %v696 = vsel %vm598, %v46, 0
  %v699 = vsel %vm598, %v47, 0
  %v702 = vsel %vm598, %v48, 0
  %v705 = vsel %vm598, %v49, 0
  %v708 = vsel %vm598, %v50, 0
  %v711 = vsel %vm598, %v51, 0
  %v714 = vsel %vm598, %v52, 0
  %v717 = vsel %vm598, %v53, 0
  %v720 = vsel %vm598, %v54, 0
  %v723 = vsel %vm598, %v55, 0
  %v726 = vsel %vm598, %v56, 0
  %v729 = vsel %vm598, %v57, 0
  %v732 = vsel %vm598, %v58, 0
  %v735 = vsel %vm598, %v59, 0
  %v738 = vsel %vm598, %v60, 0
  %v741 = vsel %vm598, %v61, 0
  %v744 = vsel %vm598, %v62, 0
  %v747 = vsel %vm598, %v63, 0
  %v750 = vsel %vm598, %v64, 0
  %v753 = vsel %vm598, %v65, 0
  %v756 = vsel %vm598, %v66, 0
  %v759 = vsel %vm598, %v67, 0
  %v762 = vsel %vm598, %v68, 0
  %v765 = vsel %vm598, %v69, 0
  %v768 = vsel %vm598, %v70, 0
  %v771 = vsel %vm598, %v71, 0
  %v774 = vsel %vm598, %v72, 0
  %v777 = vsel %vm598, %v73, 0
  %v780 = vsel %vm598, %v74, 0
  %v783 = vsel %vm598, %v75, 0
  %v786 = vsel %vm598, %v76, 0
  %v789 = vsel %vm598, %v77, 0
  %v792 = vsel %vm598, %v78, 0
  %v795 = vsel %vm598, %v79, 0
  %v798 = vsel %vm598, %v80, 0
  %v801 = vsel %vm598, %v81, 0
  %v804 = vsel %vm598, %v82, 0
  %v807 = vsel %vm598, %v83, 0
  %v810 = vsel %vm598, %v84, 0
  %v813 = vsel %vm598, %v85, 0
  %v816 = vsel %vm598, %v86, 0
  %v819 = vsel %vm598, %v87, 0
  %v822 = vsel %vm598, %v88, 0
  %v825 = vsel %vm598, %v89, 0
  %v828 = vsel %vm598, %v90, 0
  %v831 = vsel %vm598, %v91, 0
  %v834 = vsel %vm598, %v92, 0
  %v837 = vsel %vm598, %v93, 0
  %v840 = vsel %vm598, %v94, 0
  %v843 = vsel %vm598, %v95, 0
  %v846 = vsel %vm598, %v96, 0
  %v849 = vsel %vm598, %v97, 0
  %v852 = vsel %vm598, %v98, 0
  %v855 = vsel %vm598, %v99, 0
  %v858 = vsel %vm598, %v100, 0
  %v861 = vsel %vm598, %v101, 0
  %v864 = vsel %vm598, %v102, 0
  %v867 = vsel %vm598, %v103, 0
  %v870 = vsel %vm598, %v104, 0
  %v873 = vsel %vm598, %v105, 0
  %v876 = vsel %vm598, %v106, 0
  %v879 = vsel %vm598, %v107, 0
  %v882 = vsel %vm598, %v108, 0
  %v885 = vsel %vm598, %v109, 0
  %v888 = vsel %vm598, %v110, 0
  %v891 = vsel %vm598, %v111, 0
  %v894 = vsel %vm598, %v112, 0
  %v897 = vsel %vm598, %v113, 0
  %v900 = vsel %vm598, %v114, 0
  %v903 = vsel %vm598, %v115, 0
  %v906 = vsel %vm598, %v116, 0
  %v909 = vsel %vm598, %v117, 0
  %v912 = vsel %vm598, %v118, 0
  %v915 = vsel %vm598, %v119, 0
  %v918 = vsel %vm598, %v120, 0
  %v921 = vsel %vm598, %v121, 0
  %v924 = vsel %vm598, %v122, 0
  %v927 = vsel %vm598, %v123, 0
  %v930 = vsel %vm598, %v124, 0
  %v933 = vsel %vm598, %v125, 0
  %v936 = vsel %vm598, %v126, 0
  %v939 = vsel %vm598, %v127, 0
  %v942 = vsel %vm598, %v128, 0
  %v945 = vsel %vm598, %v129, 0
  %v948 = vsel %vm598, %v130, 0
  %v951 = vsel %vm598, %v131, 0
  %v954 = vsel %vm598, %v132, 0
  %v957 = vsel %vm598, %v133, 0
  %v960 = vsel %vm598, %v134, 0
  %v963 = vsel %vm598, %v135, 0
  %v966 = vsel %vm598, %v136, 0
  %v969 = vsel %vm598, %v137, 0
  %v972 = vsel %vm598, %v138, 0
  %v975 = vsel %vm598, %v139, 0
  %v978 = vsel %vm598, %v140, 0
  %v981 = vsel %vm598, %v141, 0
  %v984 = vsel %vm598, %v142, 0
  %v987 = vsel %vm598, %v143, 0
  %v990 = vsel %vm598, %v144, 0
  %v993 = vsel %vm598, %v145, 0
  %v996 = vsel %vm598, %v146, 0
  %v999 = vsel %vm598, %v147, 0
  %v1002 = vsel %vm598, %v148, 0
  %v1005 = vsel %vm598, %v149, 0
  %v1008 = vsel %vm598, %v150, 0
  %v1011 = vsel %vm598, %v151, 0
  %v1014 = vsel %vm598, %v152, 0
  %v1017 = vsel %vm598, %v153, 0
  %v1020 = vsel %vm598, %v154, 0
  %v1023 = vsel %vm598, %v155, 0
  %v1026 = vsel %vm598, %v156, 0
  %v1029 = vsel %vm598, %v157, 0
  %v1032 = vsel %vm598, %v158, 0
  %v1035 = vsel %vm598, %v159, 0
  %v1038 = vsel %vm598, %v160, 0
  %v1041 = vsel %vm598, %v161, 0
  %v1044 = vsel %vm598, %v162, 0
  %v1047 = vsel %vm598, %v163, 0
  %v1050 = vsel %vm598, %v164, 0
  %v1053 = vsel %vm598, %v165, 0
  %v1056 = vsel %vm598, %v166, 0
  %v1059 = vsel %vm598, %v167, 0
  %v1062 = vsel %vm598, %v168, 0
  %v1065 = vsel %vm598, %v169, 0
  %v1068 = vsel %vm598, %v170, 0
  %v1071 = vsel %vm598, %v171, 0
  %v1074 = vsel %vm598, %v172, 0
  %v1077 = vsel %vm598, %v173, 0
  %v1080 = vsel %vm598, %v174, 0
  %v1083 = vsel %vm598, %v175, 0
  %v1086 = vsel %vm598, %v176, 0
  %v1089 = vsel %vm598, %v177, 0
  %v1092 = vsel %vm598, %v178, 0
  %v1095 = vsel %vm598, %v179, 0
  %v1098 = vsel %vm598, %v180, 0
  %v1101 = vsel %vm598, %v181, 0
  %v1104 = vsel %vm598, %v182, 0
  %v1107 = vsel %vm598, %v183, 0
  %v1110 = vsel %vm598, %v184, 0
  %v1113 = vsel %vm598, %v185, 0
  %v1116 = vsel %vm598, %v186, 0
  %v1119 = vsel %vm598, %v187, 0
  %v1122 = vsel %vm598, %v188, 0
  %v1125 = vsel %vm598, %v189, 0
  %v1128 = vsel %vm598, %v190, 0
  %v1131 = vsel %vm598, %v191, 0
  %v1134 = vsel %vm598, %v192, 0
  %v1137 = vsel %vm598, %v193, 0
  %v1140 = vsel %vm598, %v194, 0
  %v1143 = vsel %vm598, %v195, 0
  %v1146 = vsel %vm598, %v196, 0
  %v1149 = vsel %vm598, %v197, 0
  %v1152 = vsel %vm598, %v198, 0
  %v1155 = vsel %vm598, %v199, 0
  %v1158 = vsel %vm598, %v200, 0
  %v1161 = vsel %vm598, %v201, 0
  %v1164 = vsel %vm598, %v202, 0
  %v1167 = vsel %vm598, %v203, 0
  %v1170 = vsel %vm598, %v204, 0
  %v1173 = vsel %vm598, %v205, 0
  %v1176 = vsel %vm598, %v206, 0
  %v1179 = vsel %vm598, %v207, 0
  %v1182 = vsel %vm598, %v208, 0
  %v1185 = vsel %vm598, %v209, 0
  %v1188 = vsel %vm598, %v210, 0
  %v1191 = vsel %vm598, %v211, 0
  %v1194 = vsel %vm598, %v212, 0
  %v1197 = vsel %vm598, %v213, 0
  %v1200 = vsel %vm598, %v214, 0
  %v1203 = vsel %vm598, %v215, 0
  %v1206 = vsel %vm598, %v216, 0
  %v1209 = vsel %vm598, %v217, 0
  %v1212 = vsel %vm598, %v218, 0
  %v1215 = vsel %vm598, %v219, 0
  %v1218 = vsel %vm598, %v220, 0
  %v1221 = vsel %vm598, %v221, 0
  %v1224 = vsel %vm598, %v222, 0
  %v1227 = vsel %vm598, %v223, 0
  %v1230 = vsel %vm598, %v224, 0
  %v1233 = vsel %vm598, %v225, 0
  %v1236 = vsel %vm598, %v226, 0
  %v1239 = vsel %vm598, %v227, 0
  %v1242 = vsel %vm598, %v228, 0
  %v1245 = vsel %vm598, %v229, 0
  %v1248 = vsel %vm598, %v230, 0
  %v1251 = vsel %vm598, %v231, 0
  %v1254 = vsel %vm598, %v232, 0
  %v1257 = vsel %vm598, %v233, 0
  %v1260 = vsel %vm598, %v234, 0
  %v1263 = vsel %vm598, %v235, 0
  %v1266 = vsel %vm598, %v236, 0
  %v1269 = vsel %vm598, %v237, 0
  %v1272 = vsel %vm598, %v238, 0
  %v1275 = vsel %vm598, %v239, 0
  %v1278 = vsel %vm598, %v240, 0
  %v1281 = vsel %vm598, %v241, 0
  %v1284 = vsel %vm598, %v242, 0
  %v1287 = vsel %vm598, %v243, 0
  %v1290 = vsel %vm598, %v244, 0
  %v1293 = vsel %vm598, %v245, 0
  %v1296 = vsel %vm598, %v246, 0
  %v1299 = vsel %vm598, %v247, 0
  %v1302 = vsel %vm598, %v248, 0
  %v1305 = vsel %vm598, %v249, 0
  %v1308 = vsel %vm598, %v250, 0
  %v1311 = vsel %vm598, %v251, 0
  %v1314 = vsel %vm598, %v252, 0
  %v1317 = vsel %vm598, %v253, 0
  %v1320 = vsel %vm598, %v254, 0
  %v1323 = vsel %vm598, %v255, 0
  %v1326 = vsel %vm598, %v256, 0
  %v1329 = vsel %vm598, %v257, 0
  %v1332 = vsel %vm598, %v258, 0
  %v1335 = vsel %vm598, %v259, 0
  %v1338 = vsel %vm598, %v260, 0
  %v1341 = vsel %vm598, %v261, 0
  %v1344 = vsel %vm598, %v262, 0
  %v1347 = vsel %vm598, %v263, 0
  %v1350 = vsel %vm598, %v264, 0
  %v1353 = vsel %vm598, %v265, 0
  %v1356 = vsel %vm598, %v266, 0
  %v1359 = vsel %vm598, %v267, 0
  %v1362 = vsel %vm598, %v268, 0
  %v1365 = vsel %vm598, %v269, 0
  %v1368 = vsel %vm598, %v270, 0
  %v1371 = vsel %vm598, %v271, 0
  %v1374 = vsel %vm598, %v272, 0
  %v1377 = vsel %vm598, %v273, 0
  %v1380 = vsel %vm598, %v274, 0
  %v1383 = vsel %vm598, %v275, 0
  %v1386 = vsel %vm598, %v276, 0
  %v1389 = vsel %vm598, %v277, 0
  %v1392 = vsel %vm598, %v278, 0
  %v1395 = vsel %vm598, %v279, 0
  %v1398 = vsel %vm598, %v280, 0
  %v1401 = vsel %vm598, %v281, 0
  %v1404 = vsel %vm598, %v282, 0
  %v1407 = vsel %vm598, %v283, 0
  %v1410 = vsel %vm598, %v284, 0
  %v1413 = vsel %vm598, %v285, 0
  %v1416 = vsel %vm598, %v286, 0
  %v1419 = vsel %vm598, %v287, 0
  %v1422 = vsel %vm598, %v288, 0
  %v1425 = vsel %vm598, %v289, 0
  %v1428 = vsel %vm598, %v290, 0
  %v1431 = vsel %vm598, %v291, 0
  %v1434 = vsel %vm598, %v292, 0
  %v1437 = vsel %vm598, %v293, 0
  %v1440 = vsel %vm598, %v294, 0
  %v1443 = vsel %vm598, %v295, 0
  %v1446 = vsel %vm598, %v296, 0
  %v1449 = vsel %vm598, %v297, 0
  %v1452 = vsel %vm598, %v298, 0
  %v1455 = vsel %vm598, %v299, 0
  %v1458 = vsel %vm598, %v300, 0
  %v1461 = vsel %vm598, %v301, 0
  %v1464 = vsel %vm598, %v302, 0
  %v1467 = vsel %vm598, %v303, 0
  %v1470 = vsel %vm598, %v304, 0
  %v1473 = vsel %vm598, %v305, 0
  %v1476 = vsel %vm598, %v306, 0
  %v1479 = vsel %vm598, %v307, 0
  %v1482 = vsel %vm598, %v308, 0
  %v1485 = vsel %vm598, %v309, 0
  %v1488 = vsel %vm598, %v310, 0
  %v1491 = vsel %vm598, %v311, 0
  %v1494 = vsel %vm598, %v312, 0
  %v1497 = vsel %vm598, %v313, 0
  %v1500 = vsel %vm598, %v314, 0
  %v1503 = vsel %vm598, %v315, 0
  %v1506 = vsel %vm598, %v316, 0
  %v1509 = vsel %vm598, %v317, 0
  %v1512 = vsel %vm598, %v318, 0
  %v1515 = vsel %vm598, %v319, 0
  %v1518 = vsel %vm598, %v320, 0
  %v1521 = vsel %vm598, %v321, 0
  %v1524 = vsel %vm598, %v322, 0
  %v1527 = vsel %vm598, %v323, 0
  %v1530 = vsel %vm598, %v324, 0
  %v1533 = vsel %vm598, %v325, 0
  %v1536 = vsel %vm598, %v326, 0
  %v1539 = vsel %vm598, %v327, 0
  %v1542 = vsel %vm598, %v328, 0
  %v1545 = vsel %vm598, %v329, 0
  %v1548 = vsel %vm598, %v330, 0
  %v1551 = vsel %vm598, %v331, 0
  %v1554 = vsel %vm598, %v332, 0
  %v1557 = vsel %vm598, %v333, 0
  %v1560 = vsel %vm598, %v334, 0
  %v1563 = vsel %vm598, %v335, 0
  %v1566 = vsel %vm598, %v336, 0
  %v1569 = vsel %vm598, %v337, 0
  %v1572 = vsel %vm598, %v338, 0
  %v1575 = vsel %vm598, %v339, 0
  %v1578 = vsel %vm598, %v340, 0
  %v1581 = vsel %vm598, %v341, 0
  %v1584 = vsel %vm598, %v342, 0
  %v1587 = vsel %vm598, %v343, 0
  %v1590 = vsel %vm598, %v344, 0
  %v1593 = vsel %vm598, %v345, 0
  %v1596 = vsel %vm598, %v346, 0
  %v1599 = vsel %vm598, %v347, 0
  %v1602 = vsel %vm598, %v348, 0
  %v1605 = vsel %vm598, %v349, 0
  %v1608 = vsel %vm598, %v350, 0
  %v1611 = vsel %vm598, %v351, 0
  %v1614 = vsel %vm598, %v352, 0
  %v1617 = vsel %vm598, %v353, 0
  %v1620 = vsel %vm598, %v354, 0
  %v1623 = vsel %vm598, %v355, 0
  %v1626 = vsel %vm598, %v356, 0
  %v1629 = vsel %vm598, %v357, 0
  %v1632 = vsel %vm598, %v358, 0
  %v1635 = vsel %vm598, %v359, 0
  %v1638 = vsel %vm598, %v360, 0
  %v1641 = vsel %vm598, %v361, 0
  %v1644 = vsel %vm598, %v362, 0
  %v1647 = vsel %vm598, %v363, 0
  %v1650 = vsel %vm598, %v364, 0
  %v1653 = vsel %vm598, %v365, 0
  %v1656 = vsel %vm598, %v366, 0
  %v1659 = vsel %vm598, %v367, 0
  %v1662 = vsel %vm598, %v368, 0
  %v1665 = vsel %vm598, %v369, 0
  %v1668 = vsel %vm598, %v370, 0
  %v1671 = vsel %vm598, %v371, 0
  %v1674 = vsel %vm598, %v372, 0
  %v1677 = vsel %vm598, %v373, 0
  %v1680 = vsel %vm598, %v374, 0
  %v1683 = vsel %vm598, %v375, 0
  %v1686 = vsel %vm598, %v376, 0
  %v1689 = vsel %vm598, %v377, 0
  %v1692 = vsel %vm598, %v378, 0
  %v1695 = vsel %vm598, %v379, 0
  %v1698 = vsel %vm598, %v380, 0
  %v1701 = vsel %vm598, %v381, 0
  %v1704 = vsel %vm598, %v382, 0
  %v1707 = vsel %vm598, %v383, 0
  %v1710 = vsel %vm598, %v384, 0
  %v1713 = vsel %vm598, %v385, 0
  %v1716 = vsel %vm598, %v386, 0
  %v1719 = vsel %vm598, %v387, 0
  %v1722 = vsel %vm598, %v388, 0
  %v1725 = vsel %vm598, %v389, 0
  %v1728 = vsel %vm598, %v390, 0
  %v1731 = vsel %vm598, %v391, 0
  %v1734 = vsel %vm598, %v392, 0
  %v1737 = vsel %vm598, %v393, 0
  %v1740 = vsel %vm598, %v394, 0
  %v1743 = vsel %vm598, %v395, 0
  %v1746 = vsel %vm598, %v396, 0
  %v1749 = vsel %vm598, %v397, 0
  %v1752 = vsel %vm598, %v398, 0
  %v1755 = vsel %vm598, %v399, 0
  %v1758 = vsel %vm598, %v400, 0
  %v1761 = vsel %vm598, %v401, 0
  %v1764 = vsel %vm598, %v402, 0
  %v1767 = vsel %vm598, %v403, 0
  %v1770 = vsel %vm598, %v404, 0
  %v1773 = vsel %vm598, %v405, 0
  %v1776 = vsel %vm598, %v406, 0
  %v1779 = vsel %vm598, %v407, 0
  %v1782 = vsel %vm598, %v408, 0
  %v1785 = vsel %vm598, %v409, 0
  %v1788 = vsel %vm598, %v410, 0
  %v1791 = vsel %vm598, %v411, 0
  %v1794 = vsel %vm598, %v412, 0
  %v1797 = vsel %vm598, %v413, 0
  %v1800 = vsel %vm598, %v414, 0
  %v1803 = vsel %vm598, %v415, 0
  %v1806 = vsel %vm598, %v416, 0
  %v1809 = vsel %vm598, %v417, 0
  %v1812 = vsel %vm598, %v418, 0
  %v1815 = vsel %vm598, %v419, 0
  %v1818 = vsel %vm598, %v420, 0
  %v1821 = vsel %vm598, %v421, 0
  %v1824 = vsel %vm598, %v422, 0
  %v1827 = vsel %vm598, %v423, 0
  %v1830 = vsel %vm598, %v424, 0
  %v1833 = vsel %vm598, %v425, 0
  %v1836 = vsel %vm598, %v426, 0
  %v1839 = vsel %vm598, %v427, 0
  %v1842 = vsel %vm598, %v428, 0
  %v1845 = vsel %vm598, %v429, 0
  %v1848 = vsel %vm598, %v430, 0
  %v1851 = vsel %vm598, %v431, 0
  %v1854 = vsel %vm598, %v432, 0
  %v1857 = vsel %vm598, %v433, 0
  %v1860 = vsel %vm598, %v434, 0
  %v1863 = vsel %vm598, %v435, 0
  %v1866 = vsel %vm598, %v436, 0
  %v1869 = vsel %vm598, %v437, 0
  %v1872 = vsel %vm598, %v438, 0
  %v1875 = vsel %vm598, %v439, 0
  %v1878 = vsel %vm598, %v440, 0
  %v1881 = vsel %vm598, %v441, 0
  %v1884 = vsel %vm598, %v442, 0
  %v1887 = vsel %vm598, %v443, 0
  %v1890 = vsel %vm598, %v444, 0
  %v1893 = vsel %vm598, %v445, 0
  %v1896 = vsel %vm598, %v446, 0
  %v1899 = vsel %vm598, %v447, 0
  %v1902 = vsel %vm598, %v448, 0
  %v1905 = vsel %vm598, %v449, 0
  %v1908 = vsel %vm598, %v450, 0
  %v1911 = vsel %vm598, %v451, 0
  %v1914 = vsel %vm598, %v452, 0
  %v1917 = vsel %vm598, %v453, 0
  %v1920 = vsel %vm598, %v454, 0
  %v1923 = vsel %vm598, %v455, 0
  %v1926 = vsel %vm598, %v456, 0
  %v1929 = vsel %vm598, %v457, 0
  %v1932 = vsel %vm598, %v458, 0
  %v1935 = vsel %vm598, %v459, 0
  %v1938 = vsel %vm598, %v460, 0
  %v1941 = vsel %vm598, %v461, 0
  %v1944 = vsel %vm598, %v462, 0
  %v1947 = vsel %vm598, %v463, 0
  %v1950 = vsel %vm598, %v464, 0
  %v1953 = vsel %vm598, %v465, 0
  %v1956 = vsel %vm598, %v466, 0
  %v1959 = vsel %vm598, %v467, 0
  %v1962 = vsel %vm598, %v468, 0
  %v1965 = vsel %vm598, %v469, 0
  %v1968 = vsel %vm598, %v470, 0
  %v1971 = vsel %vm598, %v471, 0
  %v1974 = vsel %vm598, %v472, 0
  %v1977 = vsel %vm598, %v473, 0
  %v1980 = vsel %vm598, %v474, 0
  %v1983 = vsel %vm598, %v475, 0
  %v1986 = vsel %vm598, %v476, 0
  %v1989 = vsel %vm598, %v477, 0
  %v1992 = vsel %vm598, %v478, 0
  %v1995 = vsel %vm598, %v479, 0
  %v1998 = vsel %vm598, %v480, 0
  %v2001 = vsel %vm598, %v481, 0
  %v2004 = vsel %vm598, %v482, 0
  %v2007 = vsel %vm598, %v483, 0
  %v2010 = vsel %vm598, %v484, 0
  %v2013 = vsel %vm598, %v485, 0
  %v2016 = vsel %vm598, %v486, 0
  %v2019 = vsel %vm598, %v487, 0
  %v2022 = vsel %vm598, %v488, 0
  %v2025 = vsel %vm598, %v489, 0
  %v2028 = vsel %vm598, %v490, 0
  %v2031 = vsel %vm598, %v491, 0
  %v2034 = vsel %vm598, %v492, 0
  %v2037 = vsel %vm598, %v493, 0
  %v2040 = vsel %vm598, %v494, 0
  %v2043 = vsel %vm598, %v495, 0
  %v2046 = vsel %vm598, %v496, 0
  %v2049 = vsel %vm598, %v497, 0
  %v2052 = vsel %vm598, %v498, 0
  %v2055 = vsel %vm598, %v499, 0
  %v2058 = vsel %vm598, %v500, 0
  %v2061 = vsel %vm598, %v501, 0
  %v2064 = vsel %vm598, %v502, 0
  %v2067 = vsel %vm598, %v503, 0
  %v2070 = vsel %vm598, %v504, 0
  %v2073 = vsel %vm598, %v505, 0
  %v2076 = vsel %vm598, %v506, 0
  %v2079 = vsel %vm598, %v507, 0
  %v2082 = vsel %vm598, %v508, 0
  %v2085 = vsel %vm598, %v509, 0
  %v2088 = vsel %vm598, %v510, 0
  %v2091 = vsel %vm598, %v511, 0
  %v2094 = vsel %vm598, %v512, 0
  %v2097 = vsel %vm598, %v513, 0
  %v2100 = vsel %vm598, %v514, 0
  %v2103 = vsel %vm598, %v515, 0
  %v2106 = vsel %vm598, %v516, 0
  %v2109 = vsel %vm598, %v517, 0
  %v2112 = vsel %vm598, %v518, 0
  %v2115 = vsel %vm598, %v519, 0
  %v2118 = vsel %vm598, %v520, 0
  %v2121 = vsel %vm598, %v521, 0
  %v2124 = vsel %vm598, %v522, 0
  %v2127 = vsel %vm598, %v523, 0
  %v2130 = vsel %vm598, %v524, 0
  %v2133 = vsel %vm598, %v525, 0
  %v2136 = vsel %vm598, %v526, 0
  %v2139 = vsel %vm598, %v527, 0
  %v2142 = vsel %vm598, %v528, 0
  %v2145 = vsel %vm598, %v529, 0
  %v2148 = vsel %vm598, %v530, 0
  %v2151 = vsel %vm598, %v531, 0
  %v2154 = vsel %vm598, %v532, 0
  %v2157 = vsel %vm598, %v533, 0
  %v2160 = vsel %vm598, %v534, 0
  %v2163 = vsel %vm598, %v535, 0
  %v2166 = vsel %vm598, %v536, 0
  %v2169 = vsel %vm598, %v537, 0
  %v2172 = vsel %vm598, %v538, 0
  %v2175 = vsel %vm598, %v539, 0
  %v2178 = vsel %vm598, %v540, 0
  %v2181 = vsel %vm598, %v541, 0
  %v2184 = vsel %vm598, %v542, 0
  %v2187 = vsel %vm598, %v543, 0
  %v2190 = vsel %vm598, %v544, 0
  %v2193 = vsel %vm598, %v545, 0
  %v2196 = vsel %vm598, %v546, 0
  %v2199 = vsel %vm598, %v547, 0
  %v2202 = vsel %vm598, %v548, 0
  %v2205 = vsel %vm598, %v549, 0
  %v2208 = vsel %vm598, %v550, 0
  %v2211 = vsel %vm598, %v551, 0
  %v2214 = vsel %vm598, %v552, 0
  %v2217 = vsel %vm598, %v553, 0
  %v2220 = vsel %vm598, %v554, 0
  %v2223 = vsel %vm598, %v555, 0
  %v2226 = vsel %vm598, %v556, 0
  %v2229 = vsel %vm598, %v557, 0
  %v2232 = vsel %vm598, %v558, 0
  %v2235 = vsel %vm598, %v559, 0
  %v2238 = vsel %vm598, %v560, 0
  %v2241 = vsel %vm598, %v561, 0
  %v2244 = vsel %vm598, %v562, 0
  %v2247 = vsel %vm598, %v563, 0
  %v2250 = vsel %vm598, %v564, 0
  %v2253 = vsel %vm598, %v565, 0
  %v2256 = vsel %vm598, %v566, 0
  %v2259 = vsel %vm598, %v567, 0
  %v2262 = vsel %vm598, %v568, 0
  %v2265 = vsel %vm598, %v569, 0
  %v2268 = vsel %vm598, %v570, 0
  %v2271 = vsel %vm598, %v571, 0
  %v2274 = vsel %vm598, %v572, 0
  %v2277 = vsel %vm598, %v573, 0
  %v2280 = vsel %vm598, %v574, 0
  %v2283 = vsel %vm598, %v575, 0
  %v2286 = vsel %vm598, %v576, 0
  %v2289 = vsel %vm598, %v577, 0
  %v2292 = vsel %vm598, %v578, 0
  %v2295 = vsel %vm598, %v579, 0
  %v2298 = vsel %vm598, %v580, 0
  %v2301 = vsel %vm598, %v581, 0
  %v2304 = vsel %vm598, %v582, 0
  %v2307 = vsel %vm598, %v583, 0
  %v2310 = vsel %vm598, %v584, 0
  %v2313 = vsel %vm598, %v585, 0
  %v2316 = vsel %vm598, %v586, 0
  %v2319 = vsel %vm598, %v587, 0
  %v2322 = vsel %vm598, %v588, 0
  %v2325 = vsel %vm598, %v589, 0
  %vm2327 = vcmask 1040384
  %v2329 = vsel %vm2327, %v593, 0
  %2331 = vmatpush.msra.mxu0 0.0
  %2332 = vmatpush.msra.mxu0 0.0
  %2333 = vmatpush.msra.mxu0 0.0
  %2334 = vmatpush.msra.mxu0 0.0
  %2335 = vmatpush.msra.mxu0 0.0
  %2336 = vmatpush.msra.mxu0 0.0
  %2337 = vmatpush.msra.mxu0 0.0
  %2338 = vmatpush.msra.mxu0 0.0
  %2339 = vmatpush.msra.mxu0 0.0
  %2340 = vmatpush.msra.mxu0 0.0
  %2341 = vmatpush.msra.mxu0 0.0
  %2342 = vmatpush.msra.mxu0 0.0
  %2343 = vmatpush.msra.mxu0 %v2329
  %2344 = vmatpush.msra.mxu0 %v592
  %2345 = vmatpush.msra.mxu0 %v591
  %2346 = vmatpush.msra.mxu0 %v590
  %2347 = vmatmul.f32.gmra.mxu0 %v600
  %v2348 = vpop.f32.mrf.mxu0
  %v2349 = vadd.f32 %v596, %v2348
  %2350 = vmatmul.f32.gmra.mxu0 %v603
  %v2351 = vpop.f32.mrf.mxu0
  %v2352 = vadd.f32 %v596, %v2351
  %2353 = vmatmul.f32.gmra.mxu0 %v606
  %v2354 = vpop.f32.mrf.mxu0
  %v2355 = vadd.f32 %v596, %v2354
  %2356 = vmatmul.f32.gmra.mxu0 %v609
  %v2357 = vpop.f32.mrf.mxu0
  %v2358 = vadd.f32 %v596, %v2357
  %2359 = vmatmul.f32.gmra.mxu0 %v612
  %v2360 = vpop.f32.mrf.mxu0
  %v2361 = vadd.f32 %v596, %v2360
  %2362 = vmatmul.f32.gmra.mxu0 %v615
  %v2363 = vpop.f32.mrf.mxu0
  %v2364 = vadd.f32 %v596, %v2363
  %2365 = vmatmul.f32.gmra.mxu0 %v618
  %v2366 = vpop.f32.mrf.mxu0
  %v2367 = vadd.f32 %v596, %v2366
  %2368 = vmatmul.f32.gmra.mxu0 %v621
  %v2369 = vpop.f32.mrf.mxu0
  %v2370 = vadd.f32 %v596, %v2369
  %2371 = vmatmul.f32.gmra.mxu0 %v624
  %v2372 = vpop.f32.mrf.mxu0
  %v2373 = vadd.f32 %v596, %v2372
  %2374 = vmatmul.f32.gmra.mxu0 %v627
  %v2375 = vpop.f32.mrf.mxu0
  %v2376 = vadd.f32 %v596, %v2375
  %2377 = vmatmul.f32.gmra.mxu0 %v630
  %v2378 = vpop.f32.mrf.mxu0
  %v2379 = vadd.f32 %v596, %v2378
  %2380 = vmatmul.f32.gmra.mxu0 %v633
  %v2381 = vpop.f32.mrf.mxu0
  %v2382 = vadd.f32 %v596, %v2381
  %2383 = vmatmul.f32.gmra.mxu0 %v636
  %v2384 = vpop.f32.mrf.mxu0
  %v2385 = vadd.f32 %v596, %v2384
  %2386 = vmatmul.f32.gmra.mxu0 %v639
  %v2387 = vpop.f32.mrf.mxu0
  %v2388 = vadd.f32 %v596, %v2387
  %2389 = vmatmul.f32.gmra.mxu0 %v642
  %v2390 = vpop.f32.mrf.mxu0
  %v2391 = vadd.f32 %v596, %v2390
  %2392 = vmatmul.f32.gmra.mxu0 %v645
  %v2393 = vpop.f32.mrf.mxu0
  %v2394 = vadd.f32 %v596, %v2393
  %2395 = vmatmul.f32.gmra.mxu0 %v648
  %v2396 = vpop.f32.mrf.mxu0
  %v2397 = vadd.f32 %v596, %v2396
  %2398 = vmatmul.f32.gmra.mxu0 %v651
  %v2399 = vpop.f32.mrf.mxu0
  %v2400 = vadd.f32 %v596, %v2399
  %2401 = vmatmul.f32.gmra.mxu0 %v654
  %v2402 = vpop.f32.mrf.mxu0
  %v2403 = vadd.f32 %v596, %v2402
  %2404 = vmatmul.f32.gmra.mxu0 %v657
  %v2405 = vpop.f32.mrf.mxu0
  %v2406 = vadd.f32 %v596, %v2405
  %2407 = vmatmul.f32.gmra.mxu0 %v660
  %v2408 = vpop.f32.mrf.mxu0
  %v2409 = vadd.f32 %v596, %v2408
  %2410 = vmatmul.f32.gmra.mxu0 %v663
  %v2411 = vpop.f32.mrf.mxu0
  %v2412 = vadd.f32 %v596, %v2411
  %2413 = vmatmul.f32.gmra.mxu0 %v666
  %v2414 = vpop.f32.mrf.mxu0
  %v2415 = vadd.f32 %v596, %v2414
  %2416 = vmatmul.f32.gmra.mxu0 %v669
  %v2417 = vpop.f32.mrf.mxu0
  %v2418 = vadd.f32 %v596, %v2417
  %2419 = vmatmul.f32.gmra.mxu0 %v672
  %v2420 = vpop.f32.mrf.mxu0
  %v2421 = vadd.f32 %v596, %v2420
  %2422 = vmatmul.f32.gmra.mxu0 %v675
  %v2423 = vpop.f32.mrf.mxu0
  %v2424 = vadd.f32 %v596, %v2423
  %2425 = vmatmul.f32.gmra.mxu0 %v678
  %v2426 = vpop.f32.mrf.mxu0
  %v2427 = vadd.f32 %v596, %v2426
  %2428 = vmatmul.f32.gmra.mxu0 %v681
  %v2429 = vpop.f32.mrf.mxu0
  %v2430 = vadd.f32 %v596, %v2429
  %2431 = vmatmul.f32.gmra.mxu0 %v684
  %v2432 = vpop.f32.mrf.mxu0
  %v2433 = vadd.f32 %v596, %v2432
  %2434 = vmatmul.f32.gmra.mxu0 %v687
  %v2435 = vpop.f32.mrf.mxu0
  %v2436 = vadd.f32 %v596, %v2435
  %2437 = vmatmul.f32.gmra.mxu0 %v690
  %v2438 = vpop.f32.mrf.mxu0
  %v2439 = vadd.f32 %v596, %v2438
  %2440 = vmatmul.f32.gmra.mxu0 %v693
  %v2441 = vpop.f32.mrf.mxu0
  %v2442 = vadd.f32 %v596, %v2441
  %2443 = vmatmul.f32.gmra.mxu0 %v696
  %v2444 = vpop.f32.mrf.mxu0
  %v2445 = vadd.f32 %v596, %v2444
  %2446 = vmatmul.f32.gmra.mxu0 %v699
  %v2447 = vpop.f32.mrf.mxu0
  %v2448 = vadd.f32 %v596, %v2447
  %2449 = vmatmul.f32.gmra.mxu0 %v702
  %v2450 = vpop.f32.mrf.mxu0
  %v2451 = vadd.f32 %v596, %v2450
  %2452 = vmatmul.f32.gmra.mxu0 %v705
  %v2453 = vpop.f32.mrf.mxu0
  %v2454 = vadd.f32 %v596, %v2453
  %2455 = vmatmul.f32.gmra.mxu0 %v708
  %v2456 = vpop.f32.mrf.mxu0
  %v2457 = vadd.f32 %v596, %v2456
  %2458 = vmatmul.f32.gmra.mxu0 %v711
  %v2459 = vpop.f32.mrf.mxu0
  %v2460 = vadd.f32 %v596, %v2459
  %2461 = vmatmul.f32.gmra.mxu0 %v714
  %v2462 = vpop.f32.mrf.mxu0
  %v2463 = vadd.f32 %v596, %v2462
  %2464 = vmatmul.f32.gmra.mxu0 %v717
  %v2465 = vpop.f32.mrf.mxu0
  %v2466 = vadd.f32 %v596, %v2465
  %2467 = vmatmul.f32.gmra.mxu0 %v720
  %v2468 = vpop.f32.mrf.mxu0
  %v2469 = vadd.f32 %v596, %v2468
  %2470 = vmatmul.f32.gmra.mxu0 %v723
  %v2471 = vpop.f32.mrf.mxu0
  %v2472 = vadd.f32 %v596, %v2471
  %2473 = vmatmul.f32.gmra.mxu0 %v726
  %v2474 = vpop.f32.mrf.mxu0
  %v2475 = vadd.f32 %v596, %v2474
  %2476 = vmatmul.f32.gmra.mxu0 %v729
  %v2477 = vpop.f32.mrf.mxu0
  %v2478 = vadd.f32 %v596, %v2477
  %2479 = vmatmul.f32.gmra.mxu0 %v732
  %v2480 = vpop.f32.mrf.mxu0
  %v2481 = vadd.f32 %v596, %v2480
  %2482 = vmatmul.f32.gmra.mxu0 %v735
  %v2483 = vpop.f32.mrf.mxu0
  %v2484 = vadd.f32 %v596, %v2483
  %2485 = vmatmul.f32.gmra.mxu0 %v738
  %v2486 = vpop.f32.mrf.mxu0
  %v2487 = vadd.f32 %v596, %v2486
  %2488 = vmatmul.f32.gmra.mxu0 %v741
  %v2489 = vpop.f32.mrf.mxu0
  %v2490 = vadd.f32 %v596, %v2489
  %2491 = vmatmul.f32.gmra.mxu0 %v744
  %v2492 = vpop.f32.mrf.mxu0
  %v2493 = vadd.f32 %v596, %v2492
  %2494 = vmatmul.f32.gmra.mxu0 %v747
  %v2495 = vpop.f32.mrf.mxu0
  %v2496 = vadd.f32 %v596, %v2495
  %2497 = vmatmul.f32.gmra.mxu0 %v750
  %v2498 = vpop.f32.mrf.mxu0
  %v2499 = vadd.f32 %v596, %v2498
  %2500 = vmatmul.f32.gmra.mxu0 %v753
  %v2501 = vpop.f32.mrf.mxu0
  %v2502 = vadd.f32 %v596, %v2501
  %2503 = vmatmul.f32.gmra.mxu0 %v756
  %v2504 = vpop.f32.mrf.mxu0
  %v2505 = vadd.f32 %v596, %v2504
  %2506 = vmatmul.f32.gmra.mxu0 %v759
  %v2507 = vpop.f32.mrf.mxu0
  %v2508 = vadd.f32 %v596, %v2507
  %2509 = vmatmul.f32.gmra.mxu0 %v762
  %v2510 = vpop.f32.mrf.mxu0
  %v2511 = vadd.f32 %v596, %v2510
  %2512 = vmatmul.f32.gmra.mxu0 %v765
  %v2513 = vpop.f32.mrf.mxu0
  %v2514 = vadd.f32 %v596, %v2513
  %2515 = vmatmul.f32.gmra.mxu0 %v768
  %v2516 = vpop.f32.mrf.mxu0
  %v2517 = vadd.f32 %v596, %v2516
  %2518 = vmatmul.f32.gmra.mxu0 %v771
  %v2519 = vpop.f32.mrf.mxu0
  %v2520 = vadd.f32 %v596, %v2519
  %2521 = vmatmul.f32.gmra.mxu0 %v774
  %v2522 = vpop.f32.mrf.mxu0
  %v2523 = vadd.f32 %v596, %v2522
  %2524 = vmatmul.f32.gmra.mxu0 %v777
  %v2525 = vpop.f32.mrf.mxu0
  %v2526 = vadd.f32 %v596, %v2525
  %2527 = vmatmul.f32.gmra.mxu0 %v780
  %v2528 = vpop.f32.mrf.mxu0
  %v2529 = vadd.f32 %v596, %v2528
  %2530 = vmatmul.f32.gmra.mxu0 %v783
  %v2531 = vpop.f32.mrf.mxu0
  %v2532 = vadd.f32 %v596, %v2531
  %2533 = vmatmul.f32.gmra.mxu0 %v786
  %v2534 = vpop.f32.mrf.mxu0
  %v2535 = vadd.f32 %v596, %v2534
  %2536 = vmatmul.f32.gmra.mxu0 %v789
  %v2537 = vpop.f32.mrf.mxu0
  %v2538 = vadd.f32 %v596, %v2537
  %2539 = vmatmul.f32.gmra.mxu0 %v792
  %v2540 = vpop.f32.mrf.mxu0
  %v2541 = vadd.f32 %v596, %v2540
  %2542 = vmatmul.f32.gmra.mxu0 %v795
  %v2543 = vpop.f32.mrf.mxu0
  %v2544 = vadd.f32 %v596, %v2543
  %2545 = vmatmul.f32.gmra.mxu0 %v798
  %v2546 = vpop.f32.mrf.mxu0
  %v2547 = vadd.f32 %v596, %v2546
  %2548 = vmatmul.f32.gmra.mxu0 %v801
  %v2549 = vpop.f32.mrf.mxu0
  %v2550 = vadd.f32 %v596, %v2549
  %2551 = vmatmul.f32.gmra.mxu0 %v804
  %v2552 = vpop.f32.mrf.mxu0
  %v2553 = vadd.f32 %v596, %v2552
  %2554 = vmatmul.f32.gmra.mxu0 %v807
  %v2555 = vpop.f32.mrf.mxu0
  %v2556 = vadd.f32 %v596, %v2555
  %2557 = vmatmul.f32.gmra.mxu0 %v810
  %v2558 = vpop.f32.mrf.mxu0
  %v2559 = vadd.f32 %v596, %v2558
  %2560 = vmatmul.f32.gmra.mxu0 %v813
  %v2561 = vpop.f32.mrf.mxu0
  %v2562 = vadd.f32 %v596, %v2561
  %2563 = vmatmul.f32.gmra.mxu0 %v816
  %v2564 = vpop.f32.mrf.mxu0
  %v2565 = vadd.f32 %v596, %v2564
  %2566 = vmatmul.f32.gmra.mxu0 %v819
  %v2567 = vpop.f32.mrf.mxu0
  %v2568 = vadd.f32 %v596, %v2567
  %2569 = vmatmul.f32.gmra.mxu0 %v822
  %v2570 = vpop.f32.mrf.mxu0
  %v2571 = vadd.f32 %v596, %v2570
  %2572 = vmatmul.f32.gmra.mxu0 %v825
  %v2573 = vpop.f32.mrf.mxu0
  %v2574 = vadd.f32 %v596, %v2573
  %2575 = vmatmul.f32.gmra.mxu0 %v828
  %v2576 = vpop.f32.mrf.mxu0
  %v2577 = vadd.f32 %v596, %v2576
  %2578 = vmatmul.f32.gmra.mxu0 %v831
  %v2579 = vpop.f32.mrf.mxu0
  %v2580 = vadd.f32 %v596, %v2579
  %2581 = vmatmul.f32.gmra.mxu0 %v834
  %v2582 = vpop.f32.mrf.mxu0
  %v2583 = vadd.f32 %v596, %v2582
  %2584 = vmatmul.f32.gmra.mxu0 %v837
  %v2585 = vpop.f32.mrf.mxu0
  %v2586 = vadd.f32 %v596, %v2585
  %2587 = vmatmul.f32.gmra.mxu0 %v840
  %v2588 = vpop.f32.mrf.mxu0
  %v2589 = vadd.f32 %v596, %v2588
  %2590 = vmatmul.f32.gmra.mxu0 %v843
  %v2591 = vpop.f32.mrf.mxu0
  %v2592 = vadd.f32 %v596, %v2591
  %2593 = vmatmul.f32.gmra.mxu0 %v846
  %v2594 = vpop.f32.mrf.mxu0
  %v2595 = vadd.f32 %v596, %v2594
  %2596 = vmatmul.f32.gmra.mxu0 %v849
  %v2597 = vpop.f32.mrf.mxu0
  %v2598 = vadd.f32 %v596, %v2597
  %2599 = vmatmul.f32.gmra.mxu0 %v852
  %v2600 = vpop.f32.mrf.mxu0
  %v2601 = vadd.f32 %v596, %v2600
  %2602 = vmatmul.f32.gmra.mxu0 %v855
  %v2603 = vpop.f32.mrf.mxu0
  %v2604 = vadd.f32 %v596, %v2603
  %2605 = vmatmul.f32.gmra.mxu0 %v858
  %v2606 = vpop.f32.mrf.mxu0
  %v2607 = vadd.f32 %v596, %v2606
  %2608 = vmatmul.f32.gmra.mxu0 %v861
  %v2609 = vpop.f32.mrf.mxu0
  %v2610 = vadd.f32 %v596, %v2609
  %2611 = vmatmul.f32.gmra.mxu0 %v864
  %v2612 = vpop.f32.mrf.mxu0
  %v2613 = vadd.f32 %v596, %v2612
  %2614 = vmatmul.f32.gmra.mxu0 %v867
  %v2615 = vpop.f32.mrf.mxu0
  %v2616 = vadd.f32 %v596, %v2615
  %2617 = vmatmul.f32.gmra.mxu0 %v870
  %v2618 = vpop.f32.mrf.mxu0
  %v2619 = vadd.f32 %v596, %v2618
  %2620 = vmatmul.f32.gmra.mxu0 %v873
  %v2621 = vpop.f32.mrf.mxu0
  %v2622 = vadd.f32 %v596, %v2621
  %2623 = vmatmul.f32.gmra.mxu0 %v876
  %v2624 = vpop.f32.mrf.mxu0
  %v2625 = vadd.f32 %v596, %v2624
  %2626 = vmatmul.f32.gmra.mxu0 %v879
  %v2627 = vpop.f32.mrf.mxu0
  %v2628 = vadd.f32 %v596, %v2627
  %2629 = vmatmul.f32.gmra.mxu0 %v882
  %v2630 = vpop.f32.mrf.mxu0
  %v2631 = vadd.f32 %v596, %v2630
  %2632 = vmatmul.f32.gmra.mxu0 %v885
  %v2633 = vpop.f32.mrf.mxu0
  %v2634 = vadd.f32 %v596, %v2633
  %2635 = vmatmul.f32.gmra.mxu0 %v888
  %v2636 = vpop.f32.mrf.mxu0
  %v2637 = vadd.f32 %v596, %v2636
  %2638 = vmatmul.f32.gmra.mxu0 %v891
  %v2639 = vpop.f32.mrf.mxu0
  %v2640 = vadd.f32 %v596, %v2639
  %2641 = vmatmul.f32.gmra.mxu0 %v894
  %v2642 = vpop.f32.mrf.mxu0
  %v2643 = vadd.f32 %v596, %v2642
  %2644 = vmatmul.f32.gmra.mxu0 %v897
  %v2645 = vpop.f32.mrf.mxu0
  %v2646 = vadd.f32 %v596, %v2645
  %2647 = vmatmul.f32.gmra.mxu0 %v900
  %v2648 = vpop.f32.mrf.mxu0
  %v2649 = vadd.f32 %v596, %v2648
  %2650 = vmatmul.f32.gmra.mxu0 %v903
  %v2651 = vpop.f32.mrf.mxu0
  %v2652 = vadd.f32 %v596, %v2651
  %2653 = vmatmul.f32.gmra.mxu0 %v906
  %v2654 = vpop.f32.mrf.mxu0
  %v2655 = vadd.f32 %v596, %v2654
  %2656 = vmatmul.f32.gmra.mxu0 %v909
  %v2657 = vpop.f32.mrf.mxu0
  %v2658 = vadd.f32 %v596, %v2657
  %2659 = vmatmul.f32.gmra.mxu0 %v912
  %v2660 = vpop.f32.mrf.mxu0
  %v2661 = vadd.f32 %v596, %v2660
  %2662 = vmatmul.f32.gmra.mxu0 %v915
  %v2663 = vpop.f32.mrf.mxu0
  %v2664 = vadd.f32 %v596, %v2663
  %2665 = vmatmul.f32.gmra.mxu0 %v918
  %v2666 = vpop.f32.mrf.mxu0
  %v2667 = vadd.f32 %v596, %v2666
  %2668 = vmatmul.f32.gmra.mxu0 %v921
  %v2669 = vpop.f32.mrf.mxu0
  %v2670 = vadd.f32 %v596, %v2669
  %2671 = vmatmul.f32.gmra.mxu0 %v924
  %v2672 = vpop.f32.mrf.mxu0
  %v2673 = vadd.f32 %v596, %v2672
  %2674 = vmatmul.f32.gmra.mxu0 %v927
  %v2675 = vpop.f32.mrf.mxu0
  %v2676 = vadd.f32 %v596, %v2675
  %2677 = vmatmul.f32.gmra.mxu0 %v930
  %v2678 = vpop.f32.mrf.mxu0
  %v2679 = vadd.f32 %v596, %v2678
  %2680 = vmatmul.f32.gmra.mxu0 %v933
  %v2681 = vpop.f32.mrf.mxu0
  %v2682 = vadd.f32 %v596, %v2681
  %2683 = vmatmul.f32.gmra.mxu0 %v936
  %v2684 = vpop.f32.mrf.mxu0
  %v2685 = vadd.f32 %v596, %v2684
  %2686 = vmatmul.f32.gmra.mxu0 %v939
  %v2687 = vpop.f32.mrf.mxu0
  %v2688 = vadd.f32 %v596, %v2687
  %2689 = vmatmul.f32.gmra.mxu0 %v942
  %v2690 = vpop.f32.mrf.mxu0
  %v2691 = vadd.f32 %v596, %v2690
  %2692 = vmatmul.f32.gmra.mxu0 %v945
  %v2693 = vpop.f32.mrf.mxu0
  %v2694 = vadd.f32 %v596, %v2693
  %2695 = vmatmul.f32.gmra.mxu0 %v948
  %v2696 = vpop.f32.mrf.mxu0
  %v2697 = vadd.f32 %v596, %v2696
  %2698 = vmatmul.f32.gmra.mxu0 %v951
  %v2699 = vpop.f32.mrf.mxu0
  %v2700 = vadd.f32 %v596, %v2699
  %2701 = vmatmul.f32.gmra.mxu0 %v954
  %v2702 = vpop.f32.mrf.mxu0
  %v2703 = vadd.f32 %v596, %v2702
  %2704 = vmatmul.f32.gmra.mxu0 %v957
  %v2705 = vpop.f32.mrf.mxu0
  %v2706 = vadd.f32 %v596, %v2705
  %2707 = vmatmul.f32.gmra.mxu0 %v960
  %v2708 = vpop.f32.mrf.mxu0
  %v2709 = vadd.f32 %v596, %v2708
  %2710 = vmatmul.f32.gmra.mxu0 %v963
  %v2711 = vpop.f32.mrf.mxu0
  %v2712 = vadd.f32 %v596, %v2711
  %2713 = vmatmul.f32.gmra.mxu0 %v966
  %v2714 = vpop.f32.mrf.mxu0
  %v2715 = vadd.f32 %v596, %v2714
  %2716 = vmatmul.f32.gmra.mxu0 %v969
  %v2717 = vpop.f32.mrf.mxu0
  %v2718 = vadd.f32 %v596, %v2717
  %2719 = vmatmul.f32.gmra.mxu0 %v972
  %v2720 = vpop.f32.mrf.mxu0
  %v2721 = vadd.f32 %v596, %v2720
  %2722 = vmatmul.f32.gmra.mxu0 %v975
  %v2723 = vpop.f32.mrf.mxu0
  %v2724 = vadd.f32 %v596, %v2723
  %2725 = vmatmul.f32.gmra.mxu0 %v978
  %v2726 = vpop.f32.mrf.mxu0
  %v2727 = vadd.f32 %v596, %v2726
  %2728 = vmatmul.f32.gmra.mxu0 %v981
  %v2729 = vpop.f32.mrf.mxu0
  %v2730 = vadd.f32 %v596, %v2729
  %2731 = vmatmul.f32.gmra.mxu0 %v984
  %v2732 = vpop.f32.mrf.mxu0
  %v2733 = vadd.f32 %v596, %v2732
  %2734 = vmatmul.f32.gmra.mxu0 %v987
  %v2735 = vpop.f32.mrf.mxu0
  %v2736 = vadd.f32 %v596, %v2735
  %2737 = vmatmul.f32.gmra.mxu0 %v990
  %v2738 = vpop.f32.mrf.mxu0
  %v2739 = vadd.f32 %v596, %v2738
  %2740 = vmatmul.f32.gmra.mxu0 %v993
  %v2741 = vpop.f32.mrf.mxu0
  %v2742 = vadd.f32 %v596, %v2741
  %2743 = vmatmul.f32.gmra.mxu0 %v996
  %v2744 = vpop.f32.mrf.mxu0
  %v2745 = vadd.f32 %v596, %v2744
  %2746 = vmatmul.f32.gmra.mxu0 %v999
  %v2747 = vpop.f32.mrf.mxu0
  %v2748 = vadd.f32 %v596, %v2747
  %2749 = vmatmul.f32.gmra.mxu0 %v1002
  %v2750 = vpop.f32.mrf.mxu0
  %v2751 = vadd.f32 %v596, %v2750
  %2752 = vmatmul.f32.gmra.mxu0 %v1005
  %v2753 = vpop.f32.mrf.mxu0
  %v2754 = vadd.f32 %v596, %v2753
  %2755 = vmatmul.f32.gmra.mxu0 %v1008
  %v2756 = vpop.f32.mrf.mxu0
  %v2757 = vadd.f32 %v596, %v2756
  %2758 = vmatmul.f32.gmra.mxu0 %v1011
  %v2759 = vpop.f32.mrf.mxu0
  %v2760 = vadd.f32 %v596, %v2759
  %2761 = vmatmul.f32.gmra.mxu0 %v1014
  %v2762 = vpop.f32.mrf.mxu0
  %v2763 = vadd.f32 %v596, %v2762
  %2764 = vmatmul.f32.gmra.mxu0 %v1017
  %v2765 = vpop.f32.mrf.mxu0
  %v2766 = vadd.f32 %v596, %v2765
  %2767 = vmatmul.f32.gmra.mxu0 %v1020
  %v2768 = vpop.f32.mrf.mxu0
  %v2769 = vadd.f32 %v596, %v2768
  %2770 = vmatmul.f32.gmra.mxu0 %v1023
  %v2771 = vpop.f32.mrf.mxu0
  %v2772 = vadd.f32 %v596, %v2771
  %2773 = vmatmul.f32.gmra.mxu0 %v1026
  %v2774 = vpop.f32.mrf.mxu0
  %v2775 = vadd.f32 %v596, %v2774
  %2776 = vmatmul.f32.gmra.mxu0 %v1029
  %v2777 = vpop.f32.mrf.mxu0
  %v2778 = vadd.f32 %v596, %v2777
  %2779 = vmatmul.f32.gmra.mxu0 %v1032
  %v2780 = vpop.f32.mrf.mxu0
  %v2781 = vadd.f32 %v596, %v2780
  %2782 = vmatmul.f32.gmra.mxu0 %v1035
  %v2783 = vpop.f32.mrf.mxu0
  %v2784 = vadd.f32 %v596, %v2783
  %2785 = vmatmul.f32.gmra.mxu0 %v1038
  %v2786 = vpop.f32.mrf.mxu0
  %v2787 = vadd.f32 %v596, %v2786
  %2788 = vmatmul.f32.gmra.mxu0 %v1041
  %v2789 = vpop.f32.mrf.mxu0
  %v2790 = vadd.f32 %v596, %v2789
  %2791 = vmatmul.f32.gmra.mxu0 %v1044
  %v2792 = vpop.f32.mrf.mxu0
  %v2793 = vadd.f32 %v596, %v2792
  %2794 = vmatmul.f32.gmra.mxu0 %v1047
  %v2795 = vpop.f32.mrf.mxu0
  %v2796 = vadd.f32 %v596, %v2795
  %2797 = vmatmul.f32.gmra.mxu0 %v1050
  %v2798 = vpop.f32.mrf.mxu0
  %v2799 = vadd.f32 %v596, %v2798
  %2800 = vmatmul.f32.gmra.mxu0 %v1053
  %v2801 = vpop.f32.mrf.mxu0
  %v2802 = vadd.f32 %v596, %v2801
  %2803 = vmatmul.f32.gmra.mxu0 %v1056
  %v2804 = vpop.f32.mrf.mxu0
  %v2805 = vadd.f32 %v596, %v2804
  %2806 = vmatmul.f32.gmra.mxu0 %v1059
  %v2807 = vpop.f32.mrf.mxu0
  %v2808 = vadd.f32 %v596, %v2807
  %2809 = vmatmul.f32.gmra.mxu0 %v1062
  %v2810 = vpop.f32.mrf.mxu0
  %v2811 = vadd.f32 %v596, %v2810
  %2812 = vmatmul.f32.gmra.mxu0 %v1065
  %v2813 = vpop.f32.mrf.mxu0
  %v2814 = vadd.f32 %v596, %v2813
  %2815 = vmatmul.f32.gmra.mxu0 %v1068
  %v2816 = vpop.f32.mrf.mxu0
  %v2817 = vadd.f32 %v596, %v2816
  %2818 = vmatmul.f32.gmra.mxu0 %v1071
  %v2819 = vpop.f32.mrf.mxu0
  %v2820 = vadd.f32 %v596, %v2819
  %2821 = vmatmul.f32.gmra.mxu0 %v1074
  %v2822 = vpop.f32.mrf.mxu0
  %v2823 = vadd.f32 %v596, %v2822
  %2824 = vmatmul.f32.gmra.mxu0 %v1077
  %v2825 = vpop.f32.mrf.mxu0
  %v2826 = vadd.f32 %v596, %v2825
  %2827 = vmatmul.f32.gmra.mxu0 %v1080
  %v2828 = vpop.f32.mrf.mxu0
  %v2829 = vadd.f32 %v596, %v2828
  %2830 = vmatmul.f32.gmra.mxu0 %v1083
  %v2831 = vpop.f32.mrf.mxu0
  %v2832 = vadd.f32 %v596, %v2831
  %2833 = vmatmul.f32.gmra.mxu0 %v1086
  %v2834 = vpop.f32.mrf.mxu0
  %v2835 = vadd.f32 %v596, %v2834
  %2836 = vmatmul.f32.gmra.mxu0 %v1089
  %v2837 = vpop.f32.mrf.mxu0
  %v2838 = vadd.f32 %v596, %v2837
  %2839 = vmatmul.f32.gmra.mxu0 %v1092
  %v2840 = vpop.f32.mrf.mxu0
  %v2841 = vadd.f32 %v596, %v2840
  %2842 = vmatmul.f32.gmra.mxu0 %v1095
  %v2843 = vpop.f32.mrf.mxu0
  %v2844 = vadd.f32 %v596, %v2843
  %2845 = vmatmul.f32.gmra.mxu0 %v1098
  %v2846 = vpop.f32.mrf.mxu0
  %v2847 = vadd.f32 %v596, %v2846
  %2848 = vmatmul.f32.gmra.mxu0 %v1101
  %v2849 = vpop.f32.mrf.mxu0
  %v2850 = vadd.f32 %v596, %v2849
  %2851 = vmatmul.f32.gmra.mxu0 %v1104
  %v2852 = vpop.f32.mrf.mxu0
  %v2853 = vadd.f32 %v596, %v2852
  %2854 = vmatmul.f32.gmra.mxu0 %v1107
  %v2855 = vpop.f32.mrf.mxu0
  %v2856 = vadd.f32 %v596, %v2855
  %2857 = vmatmul.f32.gmra.mxu0 %v1110
  %v2858 = vpop.f32.mrf.mxu0
  %v2859 = vadd.f32 %v596, %v2858
  %2860 = vmatmul.f32.gmra.mxu0 %v1113
  %v2861 = vpop.f32.mrf.mxu0
  %v2862 = vadd.f32 %v596, %v2861
  %2863 = vmatmul.f32.gmra.mxu0 %v1116
  %v2864 = vpop.f32.mrf.mxu0
  %v2865 = vadd.f32 %v596, %v2864
  %2866 = vmatmul.f32.gmra.mxu0 %v1119
  %v2867 = vpop.f32.mrf.mxu0
  %v2868 = vadd.f32 %v596, %v2867
  %2869 = vmatmul.f32.gmra.mxu0 %v1122
  %v2870 = vpop.f32.mrf.mxu0
  %v2871 = vadd.f32 %v596, %v2870
  %2872 = vmatmul.f32.gmra.mxu0 %v1125
  %v2873 = vpop.f32.mrf.mxu0
  %v2874 = vadd.f32 %v596, %v2873
  %2875 = vmatmul.f32.gmra.mxu0 %v1128
  %v2876 = vpop.f32.mrf.mxu0
  %v2877 = vadd.f32 %v596, %v2876
  %2878 = vmatmul.f32.gmra.mxu0 %v1131
  %v2879 = vpop.f32.mrf.mxu0
  %v2880 = vadd.f32 %v596, %v2879
  %2881 = vmatmul.f32.gmra.mxu0 %v1134
  %v2882 = vpop.f32.mrf.mxu0
  %v2883 = vadd.f32 %v596, %v2882
  %2884 = vmatmul.f32.gmra.mxu0 %v1137
  %v2885 = vpop.f32.mrf.mxu0
  %v2886 = vadd.f32 %v596, %v2885
  %2887 = vmatmul.f32.gmra.mxu0 %v1140
  %v2888 = vpop.f32.mrf.mxu0
  %v2889 = vadd.f32 %v596, %v2888
  %2890 = vmatmul.f32.gmra.mxu0 %v1143
  %v2891 = vpop.f32.mrf.mxu0
  %v2892 = vadd.f32 %v596, %v2891
  %2893 = vmatmul.f32.gmra.mxu0 %v1146
  %v2894 = vpop.f32.mrf.mxu0
  %v2895 = vadd.f32 %v596, %v2894
  %2896 = vmatmul.f32.gmra.mxu0 %v1149
  %v2897 = vpop.f32.mrf.mxu0
  %v2898 = vadd.f32 %v596, %v2897
  %2899 = vmatmul.f32.gmra.mxu0 %v1152
  %v2900 = vpop.f32.mrf.mxu0
  %v2901 = vadd.f32 %v596, %v2900
  %2902 = vmatmul.f32.gmra.mxu0 %v1155
  %v2903 = vpop.f32.mrf.mxu0
  %v2904 = vadd.f32 %v596, %v2903
  %2905 = vmatmul.f32.gmra.mxu0 %v1158
  %v2906 = vpop.f32.mrf.mxu0
  %v2907 = vadd.f32 %v596, %v2906
  %2908 = vmatmul.f32.gmra.mxu0 %v1161
  %v2909 = vpop.f32.mrf.mxu0
  %v2910 = vadd.f32 %v596, %v2909
  %2911 = vmatmul.f32.gmra.mxu0 %v1164
  %v2912 = vpop.f32.mrf.mxu0
  %v2913 = vadd.f32 %v596, %v2912
  %2914 = vmatmul.f32.gmra.mxu0 %v1167
  %v2915 = vpop.f32.mrf.mxu0
  %v2916 = vadd.f32 %v596, %v2915
  %2917 = vmatmul.f32.gmra.mxu0 %v1170
  %v2918 = vpop.f32.mrf.mxu0
  %v2919 = vadd.f32 %v596, %v2918
  %2920 = vmatmul.f32.gmra.mxu0 %v1173
  %v2921 = vpop.f32.mrf.mxu0
  %v2922 = vadd.f32 %v596, %v2921
  %2923 = vmatmul.f32.gmra.mxu0 %v1176
  %v2924 = vpop.f32.mrf.mxu0
  %v2925 = vadd.f32 %v596, %v2924
  %2926 = vmatmul.f32.gmra.mxu0 %v1179
  %v2927 = vpop.f32.mrf.mxu0
  %v2928 = vadd.f32 %v596, %v2927
  %2929 = vmatmul.f32.gmra.mxu0 %v1182
  %v2930 = vpop.f32.mrf.mxu0
  %v2931 = vadd.f32 %v596, %v2930
  %2932 = vmatmul.f32.gmra.mxu0 %v1185
  %v2933 = vpop.f32.mrf.mxu0
  %v2934 = vadd.f32 %v596, %v2933
  %2935 = vmatmul.f32.gmra.mxu0 %v1188
  %v2936 = vpop.f32.mrf.mxu0
  %v2937 = vadd.f32 %v596, %v2936
  %2938 = vmatmul.f32.gmra.mxu0 %v1191
  %v2939 = vpop.f32.mrf.mxu0
  %v2940 = vadd.f32 %v596, %v2939
  %2941 = vmatmul.f32.gmra.mxu0 %v1194
  %v2942 = vpop.f32.mrf.mxu0
  %v2943 = vadd.f32 %v596, %v2942
  %2944 = vmatmul.f32.gmra.mxu0 %v1197
  %v2945 = vpop.f32.mrf.mxu0
  %v2946 = vadd.f32 %v596, %v2945
  %2947 = vmatmul.f32.gmra.mxu0 %v1200
  %v2948 = vpop.f32.mrf.mxu0
  %v2949 = vadd.f32 %v596, %v2948
  %2950 = vmatmul.f32.gmra.mxu0 %v1203
  %v2951 = vpop.f32.mrf.mxu0
  %v2952 = vadd.f32 %v596, %v2951
  %2953 = vmatmul.f32.gmra.mxu0 %v1206
  %v2954 = vpop.f32.mrf.mxu0
  %v2955 = vadd.f32 %v596, %v2954
  %2956 = vmatmul.f32.gmra.mxu0 %v1209
  %v2957 = vpop.f32.mrf.mxu0
  %v2958 = vadd.f32 %v596, %v2957
  %2959 = vmatmul.f32.gmra.mxu0 %v1212
  %v2960 = vpop.f32.mrf.mxu0
  %v2961 = vadd.f32 %v596, %v2960
  %2962 = vmatmul.f32.gmra.mxu0 %v1215
  %v2963 = vpop.f32.mrf.mxu0
  %v2964 = vadd.f32 %v596, %v2963
  %2965 = vmatmul.f32.gmra.mxu0 %v1218
  %v2966 = vpop.f32.mrf.mxu0
  %v2967 = vadd.f32 %v596, %v2966
  %2968 = vmatmul.f32.gmra.mxu0 %v1221
  %v2969 = vpop.f32.mrf.mxu0
  %v2970 = vadd.f32 %v596, %v2969
  %2971 = vmatmul.f32.gmra.mxu0 %v1224
  %v2972 = vpop.f32.mrf.mxu0
  %v2973 = vadd.f32 %v596, %v2972
  %2974 = vmatmul.f32.gmra.mxu0 %v1227
  %v2975 = vpop.f32.mrf.mxu0
  %v2976 = vadd.f32 %v596, %v2975
  %2977 = vmatmul.f32.gmra.mxu0 %v1230
  %v2978 = vpop.f32.mrf.mxu0
  %v2979 = vadd.f32 %v596, %v2978
  %2980 = vmatmul.f32.gmra.mxu0 %v1233
  %v2981 = vpop.f32.mrf.mxu0
  %v2982 = vadd.f32 %v596, %v2981
  %2983 = vmatmul.f32.gmra.mxu0 %v1236
  %v2984 = vpop.f32.mrf.mxu0
  %v2985 = vadd.f32 %v596, %v2984
  %2986 = vmatmul.f32.gmra.mxu0 %v1239
  %v2987 = vpop.f32.mrf.mxu0
  %v2988 = vadd.f32 %v596, %v2987
  %2989 = vmatmul.f32.gmra.mxu0 %v1242
  %v2990 = vpop.f32.mrf.mxu0
  %v2991 = vadd.f32 %v596, %v2990
  %2992 = vmatmul.f32.gmra.mxu0 %v1245
  %v2993 = vpop.f32.mrf.mxu0
  %v2994 = vadd.f32 %v596, %v2993
  %2995 = vmatmul.f32.gmra.mxu0 %v1248
  %v2996 = vpop.f32.mrf.mxu0
  %v2997 = vadd.f32 %v596, %v2996
  %2998 = vmatmul.f32.gmra.mxu0 %v1251
  %v2999 = vpop.f32.mrf.mxu0
  %v3000 = vadd.f32 %v596, %v2999
  %3001 = vmatmul.f32.gmra.mxu0 %v1254
  %v3002 = vpop.f32.mrf.mxu0
  %v3003 = vadd.f32 %v596, %v3002
  %3004 = vmatmul.f32.gmra.mxu0 %v1257
  %v3005 = vpop.f32.mrf.mxu0
  %v3006 = vadd.f32 %v596, %v3005
  %3007 = vmatmul.f32.gmra.mxu0 %v1260
  %v3008 = vpop.f32.mrf.mxu0
  %v3009 = vadd.f32 %v596, %v3008
  %3010 = vmatmul.f32.gmra.mxu0 %v1263
  %v3011 = vpop.f32.mrf.mxu0
  %v3012 = vadd.f32 %v596, %v3011
  %3013 = vmatmul.f32.gmra.mxu0 %v1266
  %v3014 = vpop.f32.mrf.mxu0
  %v3015 = vadd.f32 %v596, %v3014
  %3016 = vmatmul.f32.gmra.mxu0 %v1269
  %v3017 = vpop.f32.mrf.mxu0
  %v3018 = vadd.f32 %v596, %v3017
  %3019 = vmatmul.f32.gmra.mxu0 %v1272
  %v3020 = vpop.f32.mrf.mxu0
  %v3021 = vadd.f32 %v596, %v3020
  %3022 = vmatmul.f32.gmra.mxu0 %v1275
  %v3023 = vpop.f32.mrf.mxu0
  %v3024 = vadd.f32 %v596, %v3023
  %3025 = vmatmul.f32.gmra.mxu0 %v1278
  %v3026 = vpop.f32.mrf.mxu0
  %v3027 = vadd.f32 %v596, %v3026
  %3028 = vmatmul.f32.gmra.mxu0 %v1281
  %v3029 = vpop.f32.mrf.mxu0
  %v3030 = vadd.f32 %v596, %v3029
  %3031 = vmatmul.f32.gmra.mxu0 %v1284
  %v3032 = vpop.f32.mrf.mxu0
  %v3033 = vadd.f32 %v596, %v3032
  %3034 = vmatmul.f32.gmra.mxu0 %v1287
  %v3035 = vpop.f32.mrf.mxu0
  %v3036 = vadd.f32 %v596, %v3035
  %3037 = vmatmul.f32.gmra.mxu0 %v1290
  %v3038 = vpop.f32.mrf.mxu0
  %v3039 = vadd.f32 %v596, %v3038
  %3040 = vmatmul.f32.gmra.mxu0 %v1293
  %v3041 = vpop.f32.mrf.mxu0
  %v3042 = vadd.f32 %v596, %v3041
  %3043 = vmatmul.f32.gmra.mxu0 %v1296
  %v3044 = vpop.f32.mrf.mxu0
  %v3045 = vadd.f32 %v596, %v3044
  %3046 = vmatmul.f32.gmra.mxu0 %v1299
  %v3047 = vpop.f32.mrf.mxu0
  %v3048 = vadd.f32 %v596, %v3047
  %3049 = vmatmul.f32.gmra.mxu0 %v1302
  %v3050 = vpop.f32.mrf.mxu0
  %v3051 = vadd.f32 %v596, %v3050
  %3052 = vmatmul.f32.gmra.mxu0 %v1305
  %v3053 = vpop.f32.mrf.mxu0
  %v3054 = vadd.f32 %v596, %v3053
  %3055 = vmatmul.f32.gmra.mxu0 %v1308
  %v3056 = vpop.f32.mrf.mxu0
  %v3057 = vadd.f32 %v596, %v3056
  %3058 = vmatmul.f32.gmra.mxu0 %v1311
  %v3059 = vpop.f32.mrf.mxu0
  %v3060 = vadd.f32 %v596, %v3059
  %3061 = vmatmul.f32.gmra.mxu0 %v1314
  %v3062 = vpop.f32.mrf.mxu0
  %v3063 = vadd.f32 %v596, %v3062
  %3064 = vmatmul.f32.gmra.mxu0 %v1317
  %v3065 = vpop.f32.mrf.mxu0
  %v3066 = vadd.f32 %v596, %v3065
  %3067 = vmatmul.f32.gmra.mxu0 %v1320
  %v3068 = vpop.f32.mrf.mxu0
  %v3069 = vadd.f32 %v596, %v3068
  %3070 = vmatmul.f32.gmra.mxu0 %v1323
  %v3071 = vpop.f32.mrf.mxu0
  %v3072 = vadd.f32 %v596, %v3071
  %3073 = vmatmul.f32.gmra.mxu0 %v1326
  %v3074 = vpop.f32.mrf.mxu0
  %v3075 = vadd.f32 %v596, %v3074
  %3076 = vmatmul.f32.gmra.mxu0 %v1329
  %v3077 = vpop.f32.mrf.mxu0
  %v3078 = vadd.f32 %v596, %v3077
  %3079 = vmatmul.f32.gmra.mxu0 %v1332
  %v3080 = vpop.f32.mrf.mxu0
  %v3081 = vadd.f32 %v596, %v3080
  %3082 = vmatmul.f32.gmra.mxu0 %v1335
  %v3083 = vpop.f32.mrf.mxu0
  %v3084 = vadd.f32 %v596, %v3083
  %3085 = vmatmul.f32.gmra.mxu0 %v1338
  %v3086 = vpop.f32.mrf.mxu0
  %v3087 = vadd.f32 %v596, %v3086
  %3088 = vmatmul.f32.gmra.mxu0 %v1341
  %v3089 = vpop.f32.mrf.mxu0
  %v3090 = vadd.f32 %v596, %v3089
  %3091 = vmatmul.f32.gmra.mxu0 %v1344
  %v3092 = vpop.f32.mrf.mxu0
  %v3093 = vadd.f32 %v596, %v3092
  %3094 = vmatmul.f32.gmra.mxu0 %v1347
  %v3095 = vpop.f32.mrf.mxu0
  %v3096 = vadd.f32 %v596, %v3095
  %3097 = vmatmul.f32.gmra.mxu0 %v1350
  %v3098 = vpop.f32.mrf.mxu0
  %v3099 = vadd.f32 %v596, %v3098
  %3100 = vmatmul.f32.gmra.mxu0 %v1353
  %v3101 = vpop.f32.mrf.mxu0
  %v3102 = vadd.f32 %v596, %v3101
  %3103 = vmatmul.f32.gmra.mxu0 %v1356
  %v3104 = vpop.f32.mrf.mxu0
  %v3105 = vadd.f32 %v596, %v3104
  %3106 = vmatmul.f32.gmra.mxu0 %v1359
  %v3107 = vpop.f32.mrf.mxu0
  %v3108 = vadd.f32 %v596, %v3107
  %3109 = vmatmul.f32.gmra.mxu0 %v1362
  %v3110 = vpop.f32.mrf.mxu0
  %v3111 = vadd.f32 %v596, %v3110
  %3112 = vmatmul.f32.gmra.mxu0 %v1365
  %v3113 = vpop.f32.mrf.mxu0
  %v3114 = vadd.f32 %v596, %v3113
  %3115 = vmatmul.f32.gmra.mxu0 %v1368
  %v3116 = vpop.f32.mrf.mxu0
  %v3117 = vadd.f32 %v596, %v3116
  %3118 = vmatmul.f32.gmra.mxu0 %v1371
  %v3119 = vpop.f32.mrf.mxu0
  %v3120 = vadd.f32 %v596, %v3119
  %3121 = vmatmul.f32.gmra.mxu0 %v1374
  %v3122 = vpop.f32.mrf.mxu0
  %v3123 = vadd.f32 %v596, %v3122
  %3124 = vmatmul.f32.gmra.mxu0 %v1377
  %v3125 = vpop.f32.mrf.mxu0
  %v3126 = vadd.f32 %v596, %v3125
  %3127 = vmatmul.f32.gmra.mxu0 %v1380
  %v3128 = vpop.f32.mrf.mxu0
  %v3129 = vadd.f32 %v596, %v3128
  %3130 = vmatmul.f32.gmra.mxu0 %v1383
  %v3131 = vpop.f32.mrf.mxu0
  %v3132 = vadd.f32 %v596, %v3131
  %3133 = vmatmul.f32.gmra.mxu0 %v1386
  %v3134 = vpop.f32.mrf.mxu0
  %v3135 = vadd.f32 %v596, %v3134
  %3136 = vmatmul.f32.gmra.mxu0 %v1389
  %v3137 = vpop.f32.mrf.mxu0
  %v3138 = vadd.f32 %v596, %v3137
  %3139 = vmatmul.f32.gmra.mxu0 %v1392
  %v3140 = vpop.f32.mrf.mxu0
  %v3141 = vadd.f32 %v596, %v3140
  %3142 = vmatmul.f32.gmra.mxu0 %v1395
  %v3143 = vpop.f32.mrf.mxu0
  %v3144 = vadd.f32 %v596, %v3143
  %3145 = vmatmul.f32.gmra.mxu0 %v1398
  %v3146 = vpop.f32.mrf.mxu0
  %v3147 = vadd.f32 %v596, %v3146
  %3148 = vmatmul.f32.gmra.mxu0 %v1401
  %v3149 = vpop.f32.mrf.mxu0
  %v3150 = vadd.f32 %v596, %v3149
  %3151 = vmatmul.f32.gmra.mxu0 %v1404
  %v3152 = vpop.f32.mrf.mxu0
  %v3153 = vadd.f32 %v596, %v3152
  %3154 = vmatmul.f32.gmra.mxu0 %v1407
  %v3155 = vpop.f32.mrf.mxu0
  %v3156 = vadd.f32 %v596, %v3155
  %3157 = vmatmul.f32.gmra.mxu0 %v1410
  %v3158 = vpop.f32.mrf.mxu0
  %v3159 = vadd.f32 %v596, %v3158
  %3160 = vmatmul.f32.gmra.mxu0 %v1413
  %v3161 = vpop.f32.mrf.mxu0
  %v3162 = vadd.f32 %v596, %v3161
  %3163 = vmatmul.f32.gmra.mxu0 %v1416
  %v3164 = vpop.f32.mrf.mxu0
  %v3165 = vadd.f32 %v596, %v3164
  %3166 = vmatmul.f32.gmra.mxu0 %v1419
  %v3167 = vpop.f32.mrf.mxu0
  %v3168 = vadd.f32 %v596, %v3167
  %3169 = vmatmul.f32.gmra.mxu0 %v1422
  %v3170 = vpop.f32.mrf.mxu0
  %v3171 = vadd.f32 %v596, %v3170
  %3172 = vmatmul.f32.gmra.mxu0 %v1425
  %v3173 = vpop.f32.mrf.mxu0
  %v3174 = vadd.f32 %v596, %v3173
  %3175 = vmatmul.f32.gmra.mxu0 %v1428
  %v3176 = vpop.f32.mrf.mxu0
  %v3177 = vadd.f32 %v596, %v3176
  %3178 = vmatmul.f32.gmra.mxu0 %v1431
  %v3179 = vpop.f32.mrf.mxu0
  %v3180 = vadd.f32 %v596, %v3179
  %3181 = vmatmul.f32.gmra.mxu0 %v1434
  %v3182 = vpop.f32.mrf.mxu0
  %v3183 = vadd.f32 %v596, %v3182
  %3184 = vmatmul.f32.gmra.mxu0 %v1437
  %v3185 = vpop.f32.mrf.mxu0
  %v3186 = vadd.f32 %v596, %v3185
  %3187 = vmatmul.f32.gmra.mxu0 %v1440
  %v3188 = vpop.f32.mrf.mxu0
  %v3189 = vadd.f32 %v596, %v3188
  %3190 = vmatmul.f32.gmra.mxu0 %v1443
  %v3191 = vpop.f32.mrf.mxu0
  %v3192 = vadd.f32 %v596, %v3191
  %3193 = vmatmul.f32.gmra.mxu0 %v1446
  %v3194 = vpop.f32.mrf.mxu0
  %v3195 = vadd.f32 %v596, %v3194
  %3196 = vmatmul.f32.gmra.mxu0 %v1449
  %v3197 = vpop.f32.mrf.mxu0
  %v3198 = vadd.f32 %v596, %v3197
  %3199 = vmatmul.f32.gmra.mxu0 %v1452
  %v3200 = vpop.f32.mrf.mxu0
  %v3201 = vadd.f32 %v596, %v3200
  %3202 = vmatmul.f32.gmra.mxu0 %v1455
  %v3203 = vpop.f32.mrf.mxu0
  %v3204 = vadd.f32 %v596, %v3203
  %3205 = vmatmul.f32.gmra.mxu0 %v1458
  %v3206 = vpop.f32.mrf.mxu0
  %v3207 = vadd.f32 %v596, %v3206
  %3208 = vmatmul.f32.gmra.mxu0 %v1461
  %v3209 = vpop.f32.mrf.mxu0
  %v3210 = vadd.f32 %v596, %v3209
  %3211 = vmatmul.f32.gmra.mxu0 %v1464
  %v3212 = vpop.f32.mrf.mxu0
  %v3213 = vadd.f32 %v596, %v3212
  %3214 = vmatmul.f32.gmra.mxu0 %v1467
  %v3215 = vpop.f32.mrf.mxu0
  %v3216 = vadd.f32 %v596, %v3215
  %3217 = vmatmul.f32.gmra.mxu0 %v1470
  %v3218 = vpop.f32.mrf.mxu0
  %v3219 = vadd.f32 %v596, %v3218
  %3220 = vmatmul.f32.gmra.mxu0 %v1473
  %v3221 = vpop.f32.mrf.mxu0
  %v3222 = vadd.f32 %v596, %v3221
  %3223 = vmatmul.f32.gmra.mxu0 %v1476
  %v3224 = vpop.f32.mrf.mxu0
  %v3225 = vadd.f32 %v596, %v3224
  %3226 = vmatmul.f32.gmra.mxu0 %v1479
  %v3227 = vpop.f32.mrf.mxu0
  %v3228 = vadd.f32 %v596, %v3227
  %3229 = vmatmul.f32.gmra.mxu0 %v1482
  %v3230 = vpop.f32.mrf.mxu0
  %v3231 = vadd.f32 %v596, %v3230
  %3232 = vmatmul.f32.gmra.mxu0 %v1485
  %v3233 = vpop.f32.mrf.mxu0
  %v3234 = vadd.f32 %v596, %v3233
  %3235 = vmatmul.f32.gmra.mxu0 %v1488
  %v3236 = vpop.f32.mrf.mxu0
  %v3237 = vadd.f32 %v596, %v3236
  %3238 = vmatmul.f32.gmra.mxu0 %v1491
  %v3239 = vpop.f32.mrf.mxu0
  %v3240 = vadd.f32 %v596, %v3239
  %3241 = vmatmul.f32.gmra.mxu0 %v1494
  %v3242 = vpop.f32.mrf.mxu0
  %v3243 = vadd.f32 %v596, %v3242
  %3244 = vmatmul.f32.gmra.mxu0 %v1497
  %v3245 = vpop.f32.mrf.mxu0
  %v3246 = vadd.f32 %v596, %v3245
  %3247 = vmatmul.f32.gmra.mxu0 %v1500
  %v3248 = vpop.f32.mrf.mxu0
  %v3249 = vadd.f32 %v596, %v3248
  %3250 = vmatmul.f32.gmra.mxu0 %v1503
  %v3251 = vpop.f32.mrf.mxu0
  %v3252 = vadd.f32 %v596, %v3251
  %3253 = vmatmul.f32.gmra.mxu0 %v1506
  %v3254 = vpop.f32.mrf.mxu0
  %v3255 = vadd.f32 %v596, %v3254
  %3256 = vmatmul.f32.gmra.mxu0 %v1509
  %v3257 = vpop.f32.mrf.mxu0
  %v3258 = vadd.f32 %v596, %v3257
  %3259 = vmatmul.f32.gmra.mxu0 %v1512
  %v3260 = vpop.f32.mrf.mxu0
  %v3261 = vadd.f32 %v596, %v3260
  %3262 = vmatmul.f32.gmra.mxu0 %v1515
  %v3263 = vpop.f32.mrf.mxu0
  %v3264 = vadd.f32 %v596, %v3263
  %3265 = vmatmul.f32.gmra.mxu0 %v1518
  %v3266 = vpop.f32.mrf.mxu0
  %v3267 = vadd.f32 %v596, %v3266
  %3268 = vmatmul.f32.gmra.mxu0 %v1521
  %v3269 = vpop.f32.mrf.mxu0
  %v3270 = vadd.f32 %v596, %v3269
  %3271 = vmatmul.f32.gmra.mxu0 %v1524
  %v3272 = vpop.f32.mrf.mxu0
  %v3273 = vadd.f32 %v596, %v3272
  %3274 = vmatmul.f32.gmra.mxu0 %v1527
  %v3275 = vpop.f32.mrf.mxu0
  %v3276 = vadd.f32 %v596, %v3275
  %3277 = vmatmul.f32.gmra.mxu0 %v1530
  %v3278 = vpop.f32.mrf.mxu0
  %v3279 = vadd.f32 %v596, %v3278
  %3280 = vmatmul.f32.gmra.mxu0 %v1533
  %v3281 = vpop.f32.mrf.mxu0
  %v3282 = vadd.f32 %v596, %v3281
  %3283 = vmatmul.f32.gmra.mxu0 %v1536
  %v3284 = vpop.f32.mrf.mxu0
  %v3285 = vadd.f32 %v596, %v3284
  %3286 = vmatmul.f32.gmra.mxu0 %v1539
  %v3287 = vpop.f32.mrf.mxu0
  %v3288 = vadd.f32 %v596, %v3287
  %3289 = vmatmul.f32.gmra.mxu0 %v1542
  %v3290 = vpop.f32.mrf.mxu0
  %v3291 = vadd.f32 %v596, %v3290
  %3292 = vmatmul.f32.gmra.mxu0 %v1545
  %v3293 = vpop.f32.mrf.mxu0
  %v3294 = vadd.f32 %v596, %v3293
  %3295 = vmatmul.f32.gmra.mxu0 %v1548
  %v3296 = vpop.f32.mrf.mxu0
  %v3297 = vadd.f32 %v596, %v3296
  %3298 = vmatmul.f32.gmra.mxu0 %v1551
  %v3299 = vpop.f32.mrf.mxu0
  %v3300 = vadd.f32 %v596, %v3299
  %3301 = vmatmul.f32.gmra.mxu0 %v1554
  %v3302 = vpop.f32.mrf.mxu0
  %v3303 = vadd.f32 %v596, %v3302
  %3304 = vmatmul.f32.gmra.mxu0 %v1557
  %v3305 = vpop.f32.mrf.mxu0
  %v3306 = vadd.f32 %v596, %v3305
  %3307 = vmatmul.f32.gmra.mxu0 %v1560
  %v3308 = vpop.f32.mrf.mxu0
  %v3309 = vadd.f32 %v596, %v3308
  %3310 = vmatmul.f32.gmra.mxu0 %v1563
  %v3311 = vpop.f32.mrf.mxu0
  %v3312 = vadd.f32 %v596, %v3311
  %3313 = vmatmul.f32.gmra.mxu0 %v1566
  %v3314 = vpop.f32.mrf.mxu0
  %v3315 = vadd.f32 %v596, %v3314
  %3316 = vmatmul.f32.gmra.mxu0 %v1569
  %v3317 = vpop.f32.mrf.mxu0
  %v3318 = vadd.f32 %v596, %v3317
  %3319 = vmatmul.f32.gmra.mxu0 %v1572
  %v3320 = vpop.f32.mrf.mxu0
  %v3321 = vadd.f32 %v596, %v3320
  %3322 = vmatmul.f32.gmra.mxu0 %v1575
  %v3323 = vpop.f32.mrf.mxu0
  %v3324 = vadd.f32 %v596, %v3323
  %3325 = vmatmul.f32.gmra.mxu0 %v1578
  %v3326 = vpop.f32.mrf.mxu0
  %v3327 = vadd.f32 %v596, %v3326
  %3328 = vmatmul.f32.gmra.mxu0 %v1581
  %v3329 = vpop.f32.mrf.mxu0
  %v3330 = vadd.f32 %v596, %v3329
  %3331 = vmatmul.f32.gmra.mxu0 %v1584
  %v3332 = vpop.f32.mrf.mxu0
  %v3333 = vadd.f32 %v596, %v3332
  %3334 = vmatmul.f32.gmra.mxu0 %v1587
  %v3335 = vpop.f32.mrf.mxu0
  %v3336 = vadd.f32 %v596, %v3335
  %3337 = vmatmul.f32.gmra.mxu0 %v1590
  %v3338 = vpop.f32.mrf.mxu0
  %v3339 = vadd.f32 %v596, %v3338
  %3340 = vmatmul.f32.gmra.mxu0 %v1593
  %v3341 = vpop.f32.mrf.mxu0
  %v3342 = vadd.f32 %v596, %v3341
  %3343 = vmatmul.f32.gmra.mxu0 %v1596
  %v3344 = vpop.f32.mrf.mxu0
  %v3345 = vadd.f32 %v596, %v3344
  %3346 = vmatmul.f32.gmra.mxu0 %v1599
  %v3347 = vpop.f32.mrf.mxu0
  %v3348 = vadd.f32 %v596, %v3347
  %3349 = vmatmul.f32.gmra.mxu0 %v1602
  %v3350 = vpop.f32.mrf.mxu0
  %v3351 = vadd.f32 %v596, %v3350
  %3352 = vmatmul.f32.gmra.mxu0 %v1605
  %v3353 = vpop.f32.mrf.mxu0
  %v3354 = vadd.f32 %v596, %v3353
  %3355 = vmatmul.f32.gmra.mxu0 %v1608
  %v3356 = vpop.f32.mrf.mxu0
  %v3357 = vadd.f32 %v596, %v3356
  %3358 = vmatmul.f32.gmra.mxu0 %v1611
  %v3359 = vpop.f32.mrf.mxu0
  %v3360 = vadd.f32 %v596, %v3359
  %3361 = vmatmul.f32.gmra.mxu0 %v1614
  %v3362 = vpop.f32.mrf.mxu0
  %v3363 = vadd.f32 %v596, %v3362
  %3364 = vmatmul.f32.gmra.mxu0 %v1617
  %v3365 = vpop.f32.mrf.mxu0
  %v3366 = vadd.f32 %v596, %v3365
  %3367 = vmatmul.f32.gmra.mxu0 %v1620
  %v3368 = vpop.f32.mrf.mxu0
  %v3369 = vadd.f32 %v596, %v3368
  %3370 = vmatmul.f32.gmra.mxu0 %v1623
  %v3371 = vpop.f32.mrf.mxu0
  %v3372 = vadd.f32 %v596, %v3371
  %3373 = vmatmul.f32.gmra.mxu0 %v1626
  %v3374 = vpop.f32.mrf.mxu0
  %v3375 = vadd.f32 %v596, %v3374
  %3376 = vmatmul.f32.gmra.mxu0 %v1629
  %v3377 = vpop.f32.mrf.mxu0
  %v3378 = vadd.f32 %v596, %v3377
  %3379 = vmatmul.f32.gmra.mxu0 %v1632
  %v3380 = vpop.f32.mrf.mxu0
  %v3381 = vadd.f32 %v596, %v3380
  %3382 = vmatmul.f32.gmra.mxu0 %v1635
  %v3383 = vpop.f32.mrf.mxu0
  %v3384 = vadd.f32 %v596, %v3383
  %3385 = vmatmul.f32.gmra.mxu0 %v1638
  %v3386 = vpop.f32.mrf.mxu0
  %v3387 = vadd.f32 %v596, %v3386
  %3388 = vmatmul.f32.gmra.mxu0 %v1641
  %v3389 = vpop.f32.mrf.mxu0
  %v3390 = vadd.f32 %v596, %v3389
  %3391 = vmatmul.f32.gmra.mxu0 %v1644
  %v3392 = vpop.f32.mrf.mxu0
  %v3393 = vadd.f32 %v596, %v3392
  %3394 = vmatmul.f32.gmra.mxu0 %v1647
  %v3395 = vpop.f32.mrf.mxu0
  %v3396 = vadd.f32 %v596, %v3395
  %3397 = vmatmul.f32.gmra.mxu0 %v1650
  %v3398 = vpop.f32.mrf.mxu0
  %v3399 = vadd.f32 %v596, %v3398
  %3400 = vmatmul.f32.gmra.mxu0 %v1653
  %v3401 = vpop.f32.mrf.mxu0
  %v3402 = vadd.f32 %v596, %v3401
  %3403 = vmatmul.f32.gmra.mxu0 %v1656
  %v3404 = vpop.f32.mrf.mxu0
  %v3405 = vadd.f32 %v596, %v3404
  %3406 = vmatmul.f32.gmra.mxu0 %v1659
  %v3407 = vpop.f32.mrf.mxu0
  %v3408 = vadd.f32 %v596, %v3407
  %3409 = vmatmul.f32.gmra.mxu0 %v1662
  %v3410 = vpop.f32.mrf.mxu0
  %v3411 = vadd.f32 %v596, %v3410
  %3412 = vmatmul.f32.gmra.mxu0 %v1665
  %v3413 = vpop.f32.mrf.mxu0
  %v3414 = vadd.f32 %v596, %v3413
  %3415 = vmatmul.f32.gmra.mxu0 %v1668
  %v3416 = vpop.f32.mrf.mxu0
  %v3417 = vadd.f32 %v596, %v3416
  %3418 = vmatmul.f32.gmra.mxu0 %v1671
  %v3419 = vpop.f32.mrf.mxu0
  %v3420 = vadd.f32 %v596, %v3419
  %3421 = vmatmul.f32.gmra.mxu0 %v1674
  %v3422 = vpop.f32.mrf.mxu0
  %v3423 = vadd.f32 %v596, %v3422
  %3424 = vmatmul.f32.gmra.mxu0 %v1677
  %v3425 = vpop.f32.mrf.mxu0
  %v3426 = vadd.f32 %v596, %v3425
  %3427 = vmatmul.f32.gmra.mxu0 %v1680
  %v3428 = vpop.f32.mrf.mxu0
  %v3429 = vadd.f32 %v596, %v3428
  %3430 = vmatmul.f32.gmra.mxu0 %v1683
  %v3431 = vpop.f32.mrf.mxu0
  %v3432 = vadd.f32 %v596, %v3431
  %3433 = vmatmul.f32.gmra.mxu0 %v1686
  %v3434 = vpop.f32.mrf.mxu0
  %v3435 = vadd.f32 %v596, %v3434
  %3436 = vmatmul.f32.gmra.mxu0 %v1689
  %v3437 = vpop.f32.mrf.mxu0
  %v3438 = vadd.f32 %v596, %v3437
  %3439 = vmatmul.f32.gmra.mxu0 %v1692
  %v3440 = vpop.f32.mrf.mxu0
  %v3441 = vadd.f32 %v596, %v3440
  %3442 = vmatmul.f32.gmra.mxu0 %v1695
  %v3443 = vpop.f32.mrf.mxu0
  %v3444 = vadd.f32 %v596, %v3443
  %3445 = vmatmul.f32.gmra.mxu0 %v1698
  %v3446 = vpop.f32.mrf.mxu0
  %v3447 = vadd.f32 %v596, %v3446
  %3448 = vmatmul.f32.gmra.mxu0 %v1701
  %v3449 = vpop.f32.mrf.mxu0
  %v3450 = vadd.f32 %v596, %v3449
  %3451 = vmatmul.f32.gmra.mxu0 %v1704
  %v3452 = vpop.f32.mrf.mxu0
  %v3453 = vadd.f32 %v596, %v3452
  %3454 = vmatmul.f32.gmra.mxu0 %v1707
  %v3455 = vpop.f32.mrf.mxu0
  %v3456 = vadd.f32 %v596, %v3455
  %3457 = vmatmul.f32.gmra.mxu0 %v1710
  %v3458 = vpop.f32.mrf.mxu0
  %v3459 = vadd.f32 %v596, %v3458
  %3460 = vmatmul.f32.gmra.mxu0 %v1713
  %v3461 = vpop.f32.mrf.mxu0
  %v3462 = vadd.f32 %v596, %v3461
  %3463 = vmatmul.f32.gmra.mxu0 %v1716
  %v3464 = vpop.f32.mrf.mxu0
  %v3465 = vadd.f32 %v596, %v3464
  %3466 = vmatmul.f32.gmra.mxu0 %v1719
  %v3467 = vpop.f32.mrf.mxu0
  %v3468 = vadd.f32 %v596, %v3467
  %3469 = vmatmul.f32.gmra.mxu0 %v1722
  %v3470 = vpop.f32.mrf.mxu0
  %v3471 = vadd.f32 %v596, %v3470
  %3472 = vmatmul.f32.gmra.mxu0 %v1725
  %v3473 = vpop.f32.mrf.mxu0
  %v3474 = vadd.f32 %v596, %v3473
  %3475 = vmatmul.f32.gmra.mxu0 %v1728
  %v3476 = vpop.f32.mrf.mxu0
  %v3477 = vadd.f32 %v596, %v3476
  %3478 = vmatmul.f32.gmra.mxu0 %v1731
  %v3479 = vpop.f32.mrf.mxu0
  %v3480 = vadd.f32 %v596, %v3479
  %3481 = vmatmul.f32.gmra.mxu0 %v1734
  %v3482 = vpop.f32.mrf.mxu0
  %v3483 = vadd.f32 %v596, %v3482
  %3484 = vmatmul.f32.gmra.mxu0 %v1737
  %v3485 = vpop.f32.mrf.mxu0
  %v3486 = vadd.f32 %v596, %v3485
  %3487 = vmatmul.f32.gmra.mxu0 %v1740
  %v3488 = vpop.f32.mrf.mxu0
  %v3489 = vadd.f32 %v596, %v3488
  %3490 = vmatmul.f32.gmra.mxu0 %v1743
  %v3491 = vpop.f32.mrf.mxu0
  %v3492 = vadd.f32 %v596, %v3491
  %3493 = vmatmul.f32.gmra.mxu0 %v1746
  %v3494 = vpop.f32.mrf.mxu0
  %v3495 = vadd.f32 %v596, %v3494
  %3496 = vmatmul.f32.gmra.mxu0 %v1749
  %v3497 = vpop.f32.mrf.mxu0
  %v3498 = vadd.f32 %v596, %v3497
  %3499 = vmatmul.f32.gmra.mxu0 %v1752
  %v3500 = vpop.f32.mrf.mxu0
  %v3501 = vadd.f32 %v596, %v3500
  %3502 = vmatmul.f32.gmra.mxu0 %v1755
  %v3503 = vpop.f32.mrf.mxu0
  %v3504 = vadd.f32 %v596, %v3503
  %3505 = vmatmul.f32.gmra.mxu0 %v1758
  %v3506 = vpop.f32.mrf.mxu0
  %v3507 = vadd.f32 %v596, %v3506
  %3508 = vmatmul.f32.gmra.mxu0 %v1761
  %v3509 = vpop.f32.mrf.mxu0
  %v3510 = vadd.f32 %v596, %v3509
  %3511 = vmatmul.f32.gmra.mxu0 %v1764
  %v3512 = vpop.f32.mrf.mxu0
  %v3513 = vadd.f32 %v596, %v3512
  %3514 = vmatmul.f32.gmra.mxu0 %v1767
  %v3515 = vpop.f32.mrf.mxu0
  %v3516 = vadd.f32 %v596, %v3515
  %3517 = vmatmul.f32.gmra.mxu0 %v1770
  %v3518 = vpop.f32.mrf.mxu0
  %v3519 = vadd.f32 %v596, %v3518
  %3520 = vmatmul.f32.gmra.mxu0 %v1773
  %v3521 = vpop.f32.mrf.mxu0
  %v3522 = vadd.f32 %v596, %v3521
  %3523 = vmatmul.f32.gmra.mxu0 %v1776
  %v3524 = vpop.f32.mrf.mxu0
  %v3525 = vadd.f32 %v596, %v3524
  %3526 = vmatmul.f32.gmra.mxu0 %v1779
  %v3527 = vpop.f32.mrf.mxu0
  %v3528 = vadd.f32 %v596, %v3527
  %3529 = vmatmul.f32.gmra.mxu0 %v1782
  %v3530 = vpop.f32.mrf.mxu0
  %v3531 = vadd.f32 %v596, %v3530
  %3532 = vmatmul.f32.gmra.mxu0 %v1785
  %v3533 = vpop.f32.mrf.mxu0
  %v3534 = vadd.f32 %v596, %v3533
  %3535 = vmatmul.f32.gmra.mxu0 %v1788
  %v3536 = vpop.f32.mrf.mxu0
  %v3537 = vadd.f32 %v596, %v3536
  %3538 = vmatmul.f32.gmra.mxu0 %v1791
  %v3539 = vpop.f32.mrf.mxu0
  %v3540 = vadd.f32 %v596, %v3539
  %3541 = vmatmul.f32.gmra.mxu0 %v1794
  %v3542 = vpop.f32.mrf.mxu0
  %v3543 = vadd.f32 %v596, %v3542
  %3544 = vmatmul.f32.gmra.mxu0 %v1797
  %v3545 = vpop.f32.mrf.mxu0
  %v3546 = vadd.f32 %v596, %v3545
  %3547 = vmatmul.f32.gmra.mxu0 %v1800
  %v3548 = vpop.f32.mrf.mxu0
  %v3549 = vadd.f32 %v596, %v3548
  %3550 = vmatmul.f32.gmra.mxu0 %v1803
  %v3551 = vpop.f32.mrf.mxu0
  %v3552 = vadd.f32 %v596, %v3551
  %3553 = vmatmul.f32.gmra.mxu0 %v1806
  %v3554 = vpop.f32.mrf.mxu0
  %v3555 = vadd.f32 %v596, %v3554
  %3556 = vmatmul.f32.gmra.mxu0 %v1809
  %v3557 = vpop.f32.mrf.mxu0
  %v3558 = vadd.f32 %v596, %v3557
  %3559 = vmatmul.f32.gmra.mxu0 %v1812
  %v3560 = vpop.f32.mrf.mxu0
  %v3561 = vadd.f32 %v596, %v3560
  %3562 = vmatmul.f32.gmra.mxu0 %v1815
  %v3563 = vpop.f32.mrf.mxu0
  %v3564 = vadd.f32 %v596, %v3563
  %3565 = vmatmul.f32.gmra.mxu0 %v1818
  %v3566 = vpop.f32.mrf.mxu0
  %v3567 = vadd.f32 %v596, %v3566
  %3568 = vmatmul.f32.gmra.mxu0 %v1821
  %v3569 = vpop.f32.mrf.mxu0
  %v3570 = vadd.f32 %v596, %v3569
  %3571 = vmatmul.f32.gmra.mxu0 %v1824
  %v3572 = vpop.f32.mrf.mxu0
  %v3573 = vadd.f32 %v596, %v3572
  %3574 = vmatmul.f32.gmra.mxu0 %v1827
  %v3575 = vpop.f32.mrf.mxu0
  %v3576 = vadd.f32 %v596, %v3575
  %3577 = vmatmul.f32.gmra.mxu0 %v1830
  %v3578 = vpop.f32.mrf.mxu0
  %v3579 = vadd.f32 %v596, %v3578
  %3580 = vmatmul.f32.gmra.mxu0 %v1833
  %v3581 = vpop.f32.mrf.mxu0
  %v3582 = vadd.f32 %v596, %v3581
  %3583 = vmatmul.f32.gmra.mxu0 %v1836
  %v3584 = vpop.f32.mrf.mxu0
  %v3585 = vadd.f32 %v596, %v3584
  %3586 = vmatmul.f32.gmra.mxu0 %v1839
  %v3587 = vpop.f32.mrf.mxu0
  %v3588 = vadd.f32 %v596, %v3587
  %3589 = vmatmul.f32.gmra.mxu0 %v1842
  %v3590 = vpop.f32.mrf.mxu0
  %v3591 = vadd.f32 %v596, %v3590
  %3592 = vmatmul.f32.gmra.mxu0 %v1845
  %v3593 = vpop.f32.mrf.mxu0
  %v3594 = vadd.f32 %v596, %v3593
  %3595 = vmatmul.f32.gmra.mxu0 %v1848
  %v3596 = vpop.f32.mrf.mxu0
  %v3597 = vadd.f32 %v596, %v3596
  %3598 = vmatmul.f32.gmra.mxu0 %v1851
  %v3599 = vpop.f32.mrf.mxu0
  %v3600 = vadd.f32 %v596, %v3599
  %3601 = vmatmul.f32.gmra.mxu0 %v1854
  %v3602 = vpop.f32.mrf.mxu0
  %v3603 = vadd.f32 %v596, %v3602
  %3604 = vmatmul.f32.gmra.mxu0 %v1857
  %v3605 = vpop.f32.mrf.mxu0
  %v3606 = vadd.f32 %v596, %v3605
  %3607 = vmatmul.f32.gmra.mxu0 %v1860
  %v3608 = vpop.f32.mrf.mxu0
  %v3609 = vadd.f32 %v596, %v3608
  %3610 = vmatmul.f32.gmra.mxu0 %v1863
  %v3611 = vpop.f32.mrf.mxu0
  %v3612 = vadd.f32 %v596, %v3611
  %3613 = vmatmul.f32.gmra.mxu0 %v1866
  %v3614 = vpop.f32.mrf.mxu0
  %v3615 = vadd.f32 %v596, %v3614
  %3616 = vmatmul.f32.gmra.mxu0 %v1869
  %v3617 = vpop.f32.mrf.mxu0
  %v3618 = vadd.f32 %v596, %v3617
  %3619 = vmatmul.f32.gmra.mxu0 %v1872
  %v3620 = vpop.f32.mrf.mxu0
  %v3621 = vadd.f32 %v596, %v3620
  %3622 = vmatmul.f32.gmra.mxu0 %v1875
  %v3623 = vpop.f32.mrf.mxu0
  %v3624 = vadd.f32 %v596, %v3623
  %3625 = vmatmul.f32.gmra.mxu0 %v1878
  %v3626 = vpop.f32.mrf.mxu0
  %v3627 = vadd.f32 %v596, %v3626
  %3628 = vmatmul.f32.gmra.mxu0 %v1881
  %v3629 = vpop.f32.mrf.mxu0
  %v3630 = vadd.f32 %v596, %v3629
  %3631 = vmatmul.f32.gmra.mxu0 %v1884
  %v3632 = vpop.f32.mrf.mxu0
  %v3633 = vadd.f32 %v596, %v3632
  %3634 = vmatmul.f32.gmra.mxu0 %v1887
  %v3635 = vpop.f32.mrf.mxu0
  %v3636 = vadd.f32 %v596, %v3635
  %3637 = vmatmul.f32.gmra.mxu0 %v1890
  %v3638 = vpop.f32.mrf.mxu0
  %v3639 = vadd.f32 %v596, %v3638
  %3640 = vmatmul.f32.gmra.mxu0 %v1893
  %v3641 = vpop.f32.mrf.mxu0
  %v3642 = vadd.f32 %v596, %v3641
  %3643 = vmatmul.f32.gmra.mxu0 %v1896
  %v3644 = vpop.f32.mrf.mxu0
  %v3645 = vadd.f32 %v596, %v3644
  %3646 = vmatmul.f32.gmra.mxu0 %v1899
  %v3647 = vpop.f32.mrf.mxu0
  %v3648 = vadd.f32 %v596, %v3647
  %3649 = vmatmul.f32.gmra.mxu0 %v1902
  %v3650 = vpop.f32.mrf.mxu0
  %v3651 = vadd.f32 %v596, %v3650
  %3652 = vmatmul.f32.gmra.mxu0 %v1905
  %v3653 = vpop.f32.mrf.mxu0
  %v3654 = vadd.f32 %v596, %v3653
  %3655 = vmatmul.f32.gmra.mxu0 %v1908
  %v3656 = vpop.f32.mrf.mxu0
  %v3657 = vadd.f32 %v596, %v3656
  %3658 = vmatmul.f32.gmra.mxu0 %v1911
  %v3659 = vpop.f32.mrf.mxu0
  %v3660 = vadd.f32 %v596, %v3659
  %3661 = vmatmul.f32.gmra.mxu0 %v1914
  %v3662 = vpop.f32.mrf.mxu0
  %v3663 = vadd.f32 %v596, %v3662
  %3664 = vmatmul.f32.gmra.mxu0 %v1917
  %v3665 = vpop.f32.mrf.mxu0
  %v3666 = vadd.f32 %v596, %v3665
  %3667 = vmatmul.f32.gmra.mxu0 %v1920
  %v3668 = vpop.f32.mrf.mxu0
  %v3669 = vadd.f32 %v596, %v3668
  %3670 = vmatmul.f32.gmra.mxu0 %v1923
  %v3671 = vpop.f32.mrf.mxu0
  %v3672 = vadd.f32 %v596, %v3671
  %3673 = vmatmul.f32.gmra.mxu0 %v1926
  %v3674 = vpop.f32.mrf.mxu0
  %v3675 = vadd.f32 %v596, %v3674
  %3676 = vmatmul.f32.gmra.mxu0 %v1929
  %v3677 = vpop.f32.mrf.mxu0
  %v3678 = vadd.f32 %v596, %v3677
  %3679 = vmatmul.f32.gmra.mxu0 %v1932
  %v3680 = vpop.f32.mrf.mxu0
  %v3681 = vadd.f32 %v596, %v3680
  %3682 = vmatmul.f32.gmra.mxu0 %v1935
  %v3683 = vpop.f32.mrf.mxu0
  %v3684 = vadd.f32 %v596, %v3683
  %3685 = vmatmul.f32.gmra.mxu0 %v1938
  %v3686 = vpop.f32.mrf.mxu0
  %v3687 = vadd.f32 %v596, %v3686
  %3688 = vmatmul.f32.gmra.mxu0 %v1941
  %v3689 = vpop.f32.mrf.mxu0
  %v3690 = vadd.f32 %v596, %v3689
  %3691 = vmatmul.f32.gmra.mxu0 %v1944
  %v3692 = vpop.f32.mrf.mxu0
  %v3693 = vadd.f32 %v596, %v3692
  %3694 = vmatmul.f32.gmra.mxu0 %v1947
  %v3695 = vpop.f32.mrf.mxu0
  %v3696 = vadd.f32 %v596, %v3695
  %3697 = vmatmul.f32.gmra.mxu0 %v1950
  %v3698 = vpop.f32.mrf.mxu0
  %v3699 = vadd.f32 %v596, %v3698
  %3700 = vmatmul.f32.gmra.mxu0 %v1953
  %v3701 = vpop.f32.mrf.mxu0
  %v3702 = vadd.f32 %v596, %v3701
  %3703 = vmatmul.f32.gmra.mxu0 %v1956
  %v3704 = vpop.f32.mrf.mxu0
  %v3705 = vadd.f32 %v596, %v3704
  %3706 = vmatmul.f32.gmra.mxu0 %v1959
  %v3707 = vpop.f32.mrf.mxu0
  %v3708 = vadd.f32 %v596, %v3707
  %3709 = vmatmul.f32.gmra.mxu0 %v1962
  %v3710 = vpop.f32.mrf.mxu0
  %v3711 = vadd.f32 %v596, %v3710
  %3712 = vmatmul.f32.gmra.mxu0 %v1965
  %v3713 = vpop.f32.mrf.mxu0
  %v3714 = vadd.f32 %v596, %v3713
  %3715 = vmatmul.f32.gmra.mxu0 %v1968
  %v3716 = vpop.f32.mrf.mxu0
  %v3717 = vadd.f32 %v596, %v3716
  %3718 = vmatmul.f32.gmra.mxu0 %v1971
  %v3719 = vpop.f32.mrf.mxu0
  %v3720 = vadd.f32 %v596, %v3719
  %3721 = vmatmul.f32.gmra.mxu0 %v1974
  %v3722 = vpop.f32.mrf.mxu0
  %v3723 = vadd.f32 %v596, %v3722
  %3724 = vmatmul.f32.gmra.mxu0 %v1977
  %v3725 = vpop.f32.mrf.mxu0
  %v3726 = vadd.f32 %v596, %v3725
  %3727 = vmatmul.f32.gmra.mxu0 %v1980
  %v3728 = vpop.f32.mrf.mxu0
  %v3729 = vadd.f32 %v596, %v3728
  %3730 = vmatmul.f32.gmra.mxu0 %v1983
  %v3731 = vpop.f32.mrf.mxu0
  %v3732 = vadd.f32 %v596, %v3731
  %3733 = vmatmul.f32.gmra.mxu0 %v1986
  %v3734 = vpop.f32.mrf.mxu0
  %v3735 = vadd.f32 %v596, %v3734
  %3736 = vmatmul.f32.gmra.mxu0 %v1989
  %v3737 = vpop.f32.mrf.mxu0
  %v3738 = vadd.f32 %v596, %v3737
  %3739 = vmatmul.f32.gmra.mxu0 %v1992
  %v3740 = vpop.f32.mrf.mxu0
  %v3741 = vadd.f32 %v596, %v3740
  %3742 = vmatmul.f32.gmra.mxu0 %v1995
  %v3743 = vpop.f32.mrf.mxu0
  %v3744 = vadd.f32 %v596, %v3743
  %3745 = vmatmul.f32.gmra.mxu0 %v1998
  %v3746 = vpop.f32.mrf.mxu0
  %v3747 = vadd.f32 %v596, %v3746
  %3748 = vmatmul.f32.gmra.mxu0 %v2001
  %v3749 = vpop.f32.mrf.mxu0
  %v3750 = vadd.f32 %v596, %v3749
  %3751 = vmatmul.f32.gmra.mxu0 %v2004
  %v3752 = vpop.f32.mrf.mxu0
  %v3753 = vadd.f32 %v596, %v3752
  %3754 = vmatmul.f32.gmra.mxu0 %v2007
  %v3755 = vpop.f32.mrf.mxu0
  %v3756 = vadd.f32 %v596, %v3755
  %3757 = vmatmul.f32.gmra.mxu0 %v2010
  %v3758 = vpop.f32.mrf.mxu0
  %v3759 = vadd.f32 %v596, %v3758
  %3760 = vmatmul.f32.gmra.mxu0 %v2013
  %v3761 = vpop.f32.mrf.mxu0
  %v3762 = vadd.f32 %v596, %v3761
  %3763 = vmatmul.f32.gmra.mxu0 %v2016
  %v3764 = vpop.f32.mrf.mxu0
  %v3765 = vadd.f32 %v596, %v3764
  %3766 = vmatmul.f32.gmra.mxu0 %v2019
  %v3767 = vpop.f32.mrf.mxu0
  %v3768 = vadd.f32 %v596, %v3767
  %3769 = vmatmul.f32.gmra.mxu0 %v2022
  %v3770 = vpop.f32.mrf.mxu0
  %v3771 = vadd.f32 %v596, %v3770
  %3772 = vmatmul.f32.gmra.mxu0 %v2025
  %v3773 = vpop.f32.mrf.mxu0
  %v3774 = vadd.f32 %v596, %v3773
  %3775 = vmatmul.f32.gmra.mxu0 %v2028
  %v3776 = vpop.f32.mrf.mxu0
  %v3777 = vadd.f32 %v596, %v3776
  %3778 = vmatmul.f32.gmra.mxu0 %v2031
  %v3779 = vpop.f32.mrf.mxu0
  %v3780 = vadd.f32 %v596, %v3779
  %3781 = vmatmul.f32.gmra.mxu0 %v2034
  %v3782 = vpop.f32.mrf.mxu0
  %v3783 = vadd.f32 %v596, %v3782
  %3784 = vmatmul.f32.gmra.mxu0 %v2037
  %v3785 = vpop.f32.mrf.mxu0
  %v3786 = vadd.f32 %v596, %v3785
  %3787 = vmatmul.f32.gmra.mxu0 %v2040
  %v3788 = vpop.f32.mrf.mxu0
  %v3789 = vadd.f32 %v596, %v3788
  %3790 = vmatmul.f32.gmra.mxu0 %v2043
  %v3791 = vpop.f32.mrf.mxu0
  %v3792 = vadd.f32 %v596, %v3791
  %3793 = vmatmul.f32.gmra.mxu0 %v2046
  %v3794 = vpop.f32.mrf.mxu0
  %v3795 = vadd.f32 %v596, %v3794
  %3796 = vmatmul.f32.gmra.mxu0 %v2049
  %v3797 = vpop.f32.mrf.mxu0
  %v3798 = vadd.f32 %v596, %v3797
  %3799 = vmatmul.f32.gmra.mxu0 %v2052
  %v3800 = vpop.f32.mrf.mxu0
  %v3801 = vadd.f32 %v596, %v3800
  %3802 = vmatmul.f32.gmra.mxu0 %v2055
  %v3803 = vpop.f32.mrf.mxu0
  %v3804 = vadd.f32 %v596, %v3803
  %3805 = vmatmul.f32.gmra.mxu0 %v2058
  %v3806 = vpop.f32.mrf.mxu0
  %v3807 = vadd.f32 %v596, %v3806
  %3808 = vmatmul.f32.gmra.mxu0 %v2061
  %v3809 = vpop.f32.mrf.mxu0
  %v3810 = vadd.f32 %v596, %v3809
  %3811 = vmatmul.f32.gmra.mxu0 %v2064
  %v3812 = vpop.f32.mrf.mxu0
  %v3813 = vadd.f32 %v596, %v3812
  %3814 = vmatmul.f32.gmra.mxu0 %v2067
  %v3815 = vpop.f32.mrf.mxu0
  %v3816 = vadd.f32 %v596, %v3815
  %3817 = vmatmul.f32.gmra.mxu0 %v2070
  %v3818 = vpop.f32.mrf.mxu0
  %v3819 = vadd.f32 %v596, %v3818
  %3820 = vmatmul.f32.gmra.mxu0 %v2073
  %v3821 = vpop.f32.mrf.mxu0
  %v3822 = vadd.f32 %v596, %v3821
  %3823 = vmatmul.f32.gmra.mxu0 %v2076
  %v3824 = vpop.f32.mrf.mxu0
  %v3825 = vadd.f32 %v596, %v3824
  %3826 = vmatmul.f32.gmra.mxu0 %v2079
  %v3827 = vpop.f32.mrf.mxu0
  %v3828 = vadd.f32 %v596, %v3827
  %3829 = vmatmul.f32.gmra.mxu0 %v2082
  %v3830 = vpop.f32.mrf.mxu0
  %v3831 = vadd.f32 %v596, %v3830
  %3832 = vmatmul.f32.gmra.mxu0 %v2085
  %v3833 = vpop.f32.mrf.mxu0
  %v3834 = vadd.f32 %v596, %v3833
  %3835 = vmatmul.f32.gmra.mxu0 %v2088
  %v3836 = vpop.f32.mrf.mxu0
  %v3837 = vadd.f32 %v596, %v3836
  %3838 = vmatmul.f32.gmra.mxu0 %v2091
  %v3839 = vpop.f32.mrf.mxu0
  %v3840 = vadd.f32 %v596, %v3839
  %3841 = vmatmul.f32.gmra.mxu0 %v2094
  %v3842 = vpop.f32.mrf.mxu0
  %v3843 = vadd.f32 %v596, %v3842
  %3844 = vmatmul.f32.gmra.mxu0 %v2097
  %v3845 = vpop.f32.mrf.mxu0
  %v3846 = vadd.f32 %v596, %v3845
  %3847 = vmatmul.f32.gmra.mxu0 %v2100
  %v3848 = vpop.f32.mrf.mxu0
  %v3849 = vadd.f32 %v596, %v3848
  %3850 = vmatmul.f32.gmra.mxu0 %v2103
  %v3851 = vpop.f32.mrf.mxu0
  %v3852 = vadd.f32 %v596, %v3851
  %3853 = vmatmul.f32.gmra.mxu0 %v2106
  %v3854 = vpop.f32.mrf.mxu0
  %v3855 = vadd.f32 %v596, %v3854
  %3856 = vmatmul.f32.gmra.mxu0 %v2109
  %v3857 = vpop.f32.mrf.mxu0
  %v3858 = vadd.f32 %v596, %v3857
  %3859 = vmatmul.f32.gmra.mxu0 %v2112
  %v3860 = vpop.f32.mrf.mxu0
  %v3861 = vadd.f32 %v596, %v3860
  %3862 = vmatmul.f32.gmra.mxu0 %v2115
  %v3863 = vpop.f32.mrf.mxu0
  %v3864 = vadd.f32 %v596, %v3863
  %3865 = vmatmul.f32.gmra.mxu0 %v2118
  %v3866 = vpop.f32.mrf.mxu0
  %v3867 = vadd.f32 %v596, %v3866
  %3868 = vmatmul.f32.gmra.mxu0 %v2121
  %v3869 = vpop.f32.mrf.mxu0
  %v3870 = vadd.f32 %v596, %v3869
  %3871 = vmatmul.f32.gmra.mxu0 %v2124
  %v3872 = vpop.f32.mrf.mxu0
  %v3873 = vadd.f32 %v596, %v3872
  %3874 = vmatmul.f32.gmra.mxu0 %v2127
  %v3875 = vpop.f32.mrf.mxu0
  %v3876 = vadd.f32 %v596, %v3875
  %3877 = vmatmul.f32.gmra.mxu0 %v2130
  %v3878 = vpop.f32.mrf.mxu0
  %v3879 = vadd.f32 %v596, %v3878
  %3880 = vmatmul.f32.gmra.mxu0 %v2133
  %v3881 = vpop.f32.mrf.mxu0
  %v3882 = vadd.f32 %v596, %v3881
  %3883 = vmatmul.f32.gmra.mxu0 %v2136
  %v3884 = vpop.f32.mrf.mxu0
  %v3885 = vadd.f32 %v596, %v3884
  %3886 = vmatmul.f32.gmra.mxu0 %v2139
  %v3887 = vpop.f32.mrf.mxu0
  %v3888 = vadd.f32 %v596, %v3887
  %3889 = vmatmul.f32.gmra.mxu0 %v2142
  %v3890 = vpop.f32.mrf.mxu0
  %v3891 = vadd.f32 %v596, %v3890
  %3892 = vmatmul.f32.gmra.mxu0 %v2145
  %v3893 = vpop.f32.mrf.mxu0
  %v3894 = vadd.f32 %v596, %v3893
  %3895 = vmatmul.f32.gmra.mxu0 %v2148
  %v3896 = vpop.f32.mrf.mxu0
  %v3897 = vadd.f32 %v596, %v3896
  %3898 = vmatmul.f32.gmra.mxu0 %v2151
  %v3899 = vpop.f32.mrf.mxu0
  %v3900 = vadd.f32 %v596, %v3899
  %3901 = vmatmul.f32.gmra.mxu0 %v2154
  %v3902 = vpop.f32.mrf.mxu0
  %v3903 = vadd.f32 %v596, %v3902
  %3904 = vmatmul.f32.gmra.mxu0 %v2157
  %v3905 = vpop.f32.mrf.mxu0
  %v3906 = vadd.f32 %v596, %v3905
  %3907 = vmatmul.f32.gmra.mxu0 %v2160
  %v3908 = vpop.f32.mrf.mxu0
  %v3909 = vadd.f32 %v596, %v3908
  %3910 = vmatmul.f32.gmra.mxu0 %v2163
  %v3911 = vpop.f32.mrf.mxu0
  %v3912 = vadd.f32 %v596, %v3911
  %3913 = vmatmul.f32.gmra.mxu0 %v2166
  %v3914 = vpop.f32.mrf.mxu0
  %v3915 = vadd.f32 %v596, %v3914
  %3916 = vmatmul.f32.gmra.mxu0 %v2169
  %v3917 = vpop.f32.mrf.mxu0
  %v3918 = vadd.f32 %v596, %v3917
  %3919 = vmatmul.f32.gmra.mxu0 %v2172
  %v3920 = vpop.f32.mrf.mxu0
  %v3921 = vadd.f32 %v596, %v3920
  %3922 = vmatmul.f32.gmra.mxu0 %v2175
  %v3923 = vpop.f32.mrf.mxu0
  %v3924 = vadd.f32 %v596, %v3923
  %3925 = vmatmul.f32.gmra.mxu0 %v2178
  %v3926 = vpop.f32.mrf.mxu0
  %v3927 = vadd.f32 %v596, %v3926
  %3928 = vmatmul.f32.gmra.mxu0 %v2181
  %v3929 = vpop.f32.mrf.mxu0
  %v3930 = vadd.f32 %v596, %v3929
  %3931 = vmatmul.f32.gmra.mxu0 %v2184
  %v3932 = vpop.f32.mrf.mxu0
  %v3933 = vadd.f32 %v596, %v3932
  %3934 = vmatmul.f32.gmra.mxu0 %v2187
  %v3935 = vpop.f32.mrf.mxu0
  %v3936 = vadd.f32 %v596, %v3935
  %3937 = vmatmul.f32.gmra.mxu0 %v2190
  %v3938 = vpop.f32.mrf.mxu0
  %v3939 = vadd.f32 %v596, %v3938
  %3940 = vmatmul.f32.gmra.mxu0 %v2193
  %v3941 = vpop.f32.mrf.mxu0
  %v3942 = vadd.f32 %v596, %v3941
  %3943 = vmatmul.f32.gmra.mxu0 %v2196
  %v3944 = vpop.f32.mrf.mxu0
  %v3945 = vadd.f32 %v596, %v3944
  %3946 = vmatmul.f32.gmra.mxu0 %v2199
  %v3947 = vpop.f32.mrf.mxu0
  %v3948 = vadd.f32 %v596, %v3947
  %3949 = vmatmul.f32.gmra.mxu0 %v2202
  %v3950 = vpop.f32.mrf.mxu0
  %v3951 = vadd.f32 %v596, %v3950
  %3952 = vmatmul.f32.gmra.mxu0 %v2205
  %v3953 = vpop.f32.mrf.mxu0
  %v3954 = vadd.f32 %v596, %v3953
  %3955 = vmatmul.f32.gmra.mxu0 %v2208
  %v3956 = vpop.f32.mrf.mxu0
  %v3957 = vadd.f32 %v596, %v3956
  %3958 = vmatmul.f32.gmra.mxu0 %v2211
  %v3959 = vpop.f32.mrf.mxu0
  %v3960 = vadd.f32 %v596, %v3959
  %3961 = vmatmul.f32.gmra.mxu0 %v2214
  %v3962 = vpop.f32.mrf.mxu0
  %v3963 = vadd.f32 %v596, %v3962
  %3964 = vmatmul.f32.gmra.mxu0 %v2217
  %v3965 = vpop.f32.mrf.mxu0
  %v3966 = vadd.f32 %v596, %v3965
  %3967 = vmatmul.f32.gmra.mxu0 %v2220
  %v3968 = vpop.f32.mrf.mxu0
  %v3969 = vadd.f32 %v596, %v3968
  %3970 = vmatmul.f32.gmra.mxu0 %v2223
  %v3971 = vpop.f32.mrf.mxu0
  %v3972 = vadd.f32 %v596, %v3971
  %3973 = vmatmul.f32.gmra.mxu0 %v2226
  %v3974 = vpop.f32.mrf.mxu0
  %v3975 = vadd.f32 %v596, %v3974
  %3976 = vmatmul.f32.gmra.mxu0 %v2229
  %v3977 = vpop.f32.mrf.mxu0
  %v3978 = vadd.f32 %v596, %v3977
  %3979 = vmatmul.f32.gmra.mxu0 %v2232
  %v3980 = vpop.f32.mrf.mxu0
  %v3981 = vadd.f32 %v596, %v3980
  %3982 = vmatmul.f32.gmra.mxu0 %v2235
  %v3983 = vpop.f32.mrf.mxu0
  %v3984 = vadd.f32 %v596, %v3983
  %3985 = vmatmul.f32.gmra.mxu0 %v2238
  %v3986 = vpop.f32.mrf.mxu0
  %v3987 = vadd.f32 %v596, %v3986
  %3988 = vmatmul.f32.gmra.mxu0 %v2241
  %v3989 = vpop.f32.mrf.mxu0
  %v3990 = vadd.f32 %v596, %v3989
  %3991 = vmatmul.f32.gmra.mxu0 %v2244
  %v3992 = vpop.f32.mrf.mxu0
  %v3993 = vadd.f32 %v596, %v3992
  %3994 = vmatmul.f32.gmra.mxu0 %v2247
  %v3995 = vpop.f32.mrf.mxu0
  %v3996 = vadd.f32 %v596, %v3995
  %3997 = vmatmul.f32.gmra.mxu0 %v2250
  %v3998 = vpop.f32.mrf.mxu0
  %v3999 = vadd.f32 %v596, %v3998
  %4000 = vmatmul.f32.gmra.mxu0 %v2253
  %v4001 = vpop.f32.mrf.mxu0
  %v4002 = vadd.f32 %v596, %v4001
  %4003 = vmatmul.f32.gmra.mxu0 %v2256
  %v4004 = vpop.f32.mrf.mxu0
  %v4005 = vadd.f32 %v596, %v4004
  %4006 = vmatmul.f32.gmra.mxu0 %v2259
  %v4007 = vpop.f32.mrf.mxu0
  %v4008 = vadd.f32 %v596, %v4007
  %4009 = vmatmul.f32.gmra.mxu0 %v2262
  %v4010 = vpop.f32.mrf.mxu0
  %v4011 = vadd.f32 %v596, %v4010
  %4012 = vmatmul.f32.gmra.mxu0 %v2265
  %v4013 = vpop.f32.mrf.mxu0
  %v4014 = vadd.f32 %v596, %v4013
  %4015 = vmatmul.f32.gmra.mxu0 %v2268
  %v4016 = vpop.f32.mrf.mxu0
  %v4017 = vadd.f32 %v596, %v4016
  %4018 = vmatmul.f32.gmra.mxu0 %v2271
  %v4019 = vpop.f32.mrf.mxu0
  %v4020 = vadd.f32 %v596, %v4019
  %4021 = vmatmul.f32.gmra.mxu0 %v2274
  %v4022 = vpop.f32.mrf.mxu0
  %v4023 = vadd.f32 %v596, %v4022
  %4024 = vmatmul.f32.gmra.mxu0 %v2277
  %v4025 = vpop.f32.mrf.mxu0
  %v4026 = vadd.f32 %v596, %v4025
  %4027 = vmatmul.f32.gmra.mxu0 %v2280
  %v4028 = vpop.f32.mrf.mxu0
  %v4029 = vadd.f32 %v596, %v4028
  %4030 = vmatmul.f32.gmra.mxu0 %v2283
  %v4031 = vpop.f32.mrf.mxu0
  %v4032 = vadd.f32 %v596, %v4031
  %4033 = vmatmul.f32.gmra.mxu0 %v2286
  %v4034 = vpop.f32.mrf.mxu0
  %v4035 = vadd.f32 %v596, %v4034
  %4036 = vmatmul.f32.gmra.mxu0 %v2289
  %v4037 = vpop.f32.mrf.mxu0
  %v4038 = vadd.f32 %v596, %v4037
  %4039 = vmatmul.f32.gmra.mxu0 %v2292
  %v4040 = vpop.f32.mrf.mxu0
  %v4041 = vadd.f32 %v596, %v4040
  %4042 = vmatmul.f32.gmra.mxu0 %v2295
  %v4043 = vpop.f32.mrf.mxu0
  %v4044 = vadd.f32 %v596, %v4043
  %4045 = vmatmul.f32.gmra.mxu0 %v2298
  %v4046 = vpop.f32.mrf.mxu0
  %v4047 = vadd.f32 %v596, %v4046
  %4048 = vmatmul.f32.gmra.mxu0 %v2301
  %v4049 = vpop.f32.mrf.mxu0
  %v4050 = vadd.f32 %v596, %v4049
  %4051 = vmatmul.f32.gmra.mxu0 %v2304
  %v4052 = vpop.f32.mrf.mxu0
  %v4053 = vadd.f32 %v596, %v4052
  %4054 = vmatmul.f32.gmra.mxu0 %v2307
  %v4055 = vpop.f32.mrf.mxu0
  %v4056 = vadd.f32 %v596, %v4055
  %4057 = vmatmul.f32.gmra.mxu0 %v2310
  %v4058 = vpop.f32.mrf.mxu0
  %v4059 = vadd.f32 %v596, %v4058
  %4060 = vmatmul.f32.gmra.mxu0 %v2313
  %v4061 = vpop.f32.mrf.mxu0
  %v4062 = vadd.f32 %v596, %v4061
  %4063 = vmatmul.f32.gmra.mxu0 %v2316
  %v4064 = vpop.f32.mrf.mxu0
  %v4065 = vadd.f32 %v596, %v4064
  %4066 = vmatmul.f32.gmra.mxu0 %v2319
  %v4067 = vpop.f32.mrf.mxu0
  %v4068 = vadd.f32 %v596, %v4067
  %4069 = vmatmul.f32.gmra.mxu0 %v2322
  %v4070 = vpop.f32.mrf.mxu0
  %v4071 = vadd.f32 %v596, %v4070
  %4072 = vmatmul.f32.gmra.mxu0 %v2325
  %v4073 = vpop.f32.mrf.mxu0
  %v4074 = vadd.f32 %v596, %v4073
  %4075 = vdwg.mxu0
  %v4076 = vmax.f32 %v2349, 0.0
  %v4077 = vmax.f32 %v2352, 0.0
  %v4078 = vmax.f32 %v2355, 0.0
  %v4079 = vmax.f32 %v2358, 0.0
  %v4080 = vmax.f32 %v2361, 0.0
  %v4081 = vmax.f32 %v2364, 0.0
  %v4082 = vmax.f32 %v2367, 0.0
  %v4083 = vmax.f32 %v2370, 0.0
  %v4084 = vmax.f32 %v2373, 0.0
  %v4085 = vmax.f32 %v2376, 0.0
  %v4086 = vmax.f32 %v2379, 0.0
  %v4087 = vmax.f32 %v2382, 0.0
  %v4088 = vmax.f32 %v2385, 0.0
  %v4089 = vmax.f32 %v2388, 0.0
  %v4090 = vmax.f32 %v2391, 0.0
  %v4091 = vmax.f32 %v2394, 0.0
  %v4092 = vmax.f32 %v2397, 0.0
  %v4093 = vmax.f32 %v2400, 0.0
  %v4094 = vmax.f32 %v2403, 0.0
  %v4095 = vmax.f32 %v2406, 0.0
  %v4096 = vmax.f32 %v2409, 0.0
  %v4097 = vmax.f32 %v2412, 0.0
  %v4098 = vmax.f32 %v2415, 0.0
  %v4099 = vmax.f32 %v2418, 0.0
  %v4100 = vmax.f32 %v2421, 0.0
  %v4101 = vmax.f32 %v2424, 0.0
  %v4102 = vmax.f32 %v2427, 0.0
  %v4103 = vmax.f32 %v2430, 0.0
  %v4104 = vmax.f32 %v2433, 0.0
  %v4105 = vmax.f32 %v2436, 0.0
  %v4106 = vmax.f32 %v2439, 0.0
  %v4107 = vmax.f32 %v2442, 0.0
  %v4108 = vmax.f32 %v2445, 0.0
  %v4109 = vmax.f32 %v2448, 0.0
  %v4110 = vmax.f32 %v2451, 0.0
  %v4111 = vmax.f32 %v2454, 0.0
  %v4112 = vmax.f32 %v2457, 0.0
  %v4113 = vmax.f32 %v2460, 0.0
  %v4114 = vmax.f32 %v2463, 0.0
  %v4115 = vmax.f32 %v2466, 0.0
  %v4116 = vmax.f32 %v2469, 0.0
  %v4117 = vmax.f32 %v2472, 0.0
  %v4118 = vmax.f32 %v2475, 0.0
  %v4119 = vmax.f32 %v2478, 0.0
  %v4120 = vmax.f32 %v2481, 0.0
  %v4121 = vmax.f32 %v2484, 0.0
  %v4122 = vmax.f32 %v2487, 0.0
  %v4123 = vmax.f32 %v2490, 0.0
  %v4124 = vmax.f32 %v2493, 0.0
  %v4125 = vmax.f32 %v2496, 0.0
  %v4126 = vmax.f32 %v2499, 0.0
  %v4127 = vmax.f32 %v2502, 0.0
  %v4128 = vmax.f32 %v2505, 0.0
  %v4129 = vmax.f32 %v2508, 0.0
  %v4130 = vmax.f32 %v2511, 0.0
  %v4131 = vmax.f32 %v2514, 0.0
  %v4132 = vmax.f32 %v2517, 0.0
  %v4133 = vmax.f32 %v2520, 0.0
  %v4134 = vmax.f32 %v2523, 0.0
  %v4135 = vmax.f32 %v2526, 0.0
  %v4136 = vmax.f32 %v2529, 0.0
  %v4137 = vmax.f32 %v2532, 0.0
  %v4138 = vmax.f32 %v2535, 0.0
  %v4139 = vmax.f32 %v2538, 0.0
  %v4140 = vmax.f32 %v2541, 0.0
  %v4141 = vmax.f32 %v2544, 0.0
  %v4142 = vmax.f32 %v2547, 0.0
  %v4143 = vmax.f32 %v2550, 0.0
  %v4144 = vmax.f32 %v2553, 0.0
  %v4145 = vmax.f32 %v2556, 0.0
  %v4146 = vmax.f32 %v2559, 0.0
  %v4147 = vmax.f32 %v2562, 0.0
  %v4148 = vmax.f32 %v2565, 0.0
  %v4149 = vmax.f32 %v2568, 0.0
  %v4150 = vmax.f32 %v2571, 0.0
  %v4151 = vmax.f32 %v2574, 0.0
  %v4152 = vmax.f32 %v2577, 0.0
  %v4153 = vmax.f32 %v2580, 0.0
  %v4154 = vmax.f32 %v2583, 0.0
  %v4155 = vmax.f32 %v2586, 0.0
  %v4156 = vmax.f32 %v2589, 0.0
  %v4157 = vmax.f32 %v2592, 0.0
  %v4158 = vmax.f32 %v2595, 0.0
  %v4159 = vmax.f32 %v2598, 0.0
  %v4160 = vmax.f32 %v2601, 0.0
  %v4161 = vmax.f32 %v2604, 0.0
  %v4162 = vmax.f32 %v2607, 0.0
  %v4163 = vmax.f32 %v2610, 0.0
  %v4164 = vmax.f32 %v2613, 0.0
  %v4165 = vmax.f32 %v2616, 0.0
  %v4166 = vmax.f32 %v2619, 0.0
  %v4167 = vmax.f32 %v2622, 0.0
  %v4168 = vmax.f32 %v2625, 0.0
  %v4169 = vmax.f32 %v2628, 0.0
  %v4170 = vmax.f32 %v2631, 0.0
  %v4171 = vmax.f32 %v2634, 0.0
  %v4172 = vmax.f32 %v2637, 0.0
  %v4173 = vmax.f32 %v2640, 0.0
  %v4174 = vmax.f32 %v2643, 0.0
  %v4175 = vmax.f32 %v2646, 0.0
  %v4176 = vmax.f32 %v2649, 0.0
  %v4177 = vmax.f32 %v2652, 0.0
  %v4178 = vmax.f32 %v2655, 0.0
  %v4179 = vmax.f32 %v2658, 0.0
  %v4180 = vmax.f32 %v2661, 0.0
  %v4181 = vmax.f32 %v2664, 0.0
  %v4182 = vmax.f32 %v2667, 0.0
  %v4183 = vmax.f32 %v2670, 0.0
  %v4184 = vmax.f32 %v2673, 0.0
  %v4185 = vmax.f32 %v2676, 0.0
  %v4186 = vmax.f32 %v2679, 0.0
  %v4187 = vmax.f32 %v2682, 0.0
  %v4188 = vmax.f32 %v2685, 0.0
  %v4189 = vmax.f32 %v2688, 0.0
  %v4190 = vmax.f32 %v2691, 0.0
  %v4191 = vmax.f32 %v2694, 0.0
  %v4192 = vmax.f32 %v2697, 0.0
  %v4193 = vmax.f32 %v2700, 0.0
  %v4194 = vmax.f32 %v2703, 0.0
  %v4195 = vmax.f32 %v2706, 0.0
  %v4196 = vmax.f32 %v2709, 0.0
  %v4197 = vmax.f32 %v2712, 0.0
  %v4198 = vmax.f32 %v2715, 0.0
  %v4199 = vmax.f32 %v2718, 0.0
  %v4200 = vmax.f32 %v2721, 0.0
  %v4201 = vmax.f32 %v2724, 0.0
  %v4202 = vmax.f32 %v2727, 0.0
  %v4203 = vmax.f32 %v2730, 0.0
  %v4204 = vmax.f32 %v2733, 0.0
  %v4205 = vmax.f32 %v2736, 0.0
  %v4206 = vmax.f32 %v2739, 0.0
  %v4207 = vmax.f32 %v2742, 0.0
  %v4208 = vmax.f32 %v2745, 0.0
  %v4209 = vmax.f32 %v2748, 0.0
  %v4210 = vmax.f32 %v2751, 0.0
  %v4211 = vmax.f32 %v2754, 0.0
  %v4212 = vmax.f32 %v2757, 0.0
  %v4213 = vmax.f32 %v2760, 0.0
  %v4214 = vmax.f32 %v2763, 0.0
  %v4215 = vmax.f32 %v2766, 0.0
  %v4216 = vmax.f32 %v2769, 0.0
  %v4217 = vmax.f32 %v2772, 0.0
  %v4218 = vmax.f32 %v2775, 0.0
  %v4219 = vmax.f32 %v2778, 0.0
  %v4220 = vmax.f32 %v2781, 0.0
  %v4221 = vmax.f32 %v2784, 0.0
  %v4222 = vmax.f32 %v2787, 0.0
  %v4223 = vmax.f32 %v2790, 0.0
  %v4224 = vmax.f32 %v2793, 0.0
  %v4225 = vmax.f32 %v2796, 0.0
  %v4226 = vmax.f32 %v2799, 0.0
  %v4227 = vmax.f32 %v2802, 0.0
  %v4228 = vmax.f32 %v2805, 0.0
  %v4229 = vmax.f32 %v2808, 0.0
  %v4230 = vmax.f32 %v2811, 0.0
  %v4231 = vmax.f32 %v2814, 0.0
  %v4232 = vmax.f32 %v2817, 0.0
  %v4233 = vmax.f32 %v2820, 0.0
  %v4234 = vmax.f32 %v2823, 0.0
  %v4235 = vmax.f32 %v2826, 0.0
  %v4236 = vmax.f32 %v2829, 0.0
  %v4237 = vmax.f32 %v2832, 0.0
  %v4238 = vmax.f32 %v2835, 0.0
  %v4239 = vmax.f32 %v2838, 0.0
  %v4240 = vmax.f32 %v2841, 0.0
  %v4241 = vmax.f32 %v2844, 0.0
  %v4242 = vmax.f32 %v2847, 0.0
  %v4243 = vmax.f32 %v2850, 0.0
  %v4244 = vmax.f32 %v2853, 0.0
  %v4245 = vmax.f32 %v2856, 0.0
  %v4246 = vmax.f32 %v2859, 0.0
  %v4247 = vmax.f32 %v2862, 0.0
  %v4248 = vmax.f32 %v2865, 0.0
  %v4249 = vmax.f32 %v2868, 0.0
  %v4250 = vmax.f32 %v2871, 0.0
  %v4251 = vmax.f32 %v2874, 0.0
  %v4252 = vmax.f32 %v2877, 0.0
  %v4253 = vmax.f32 %v2880, 0.0
  %v4254 = vmax.f32 %v2883, 0.0
  %v4255 = vmax.f32 %v2886, 0.0
  %v4256 = vmax.f32 %v2889, 0.0
  %v4257 = vmax.f32 %v2892, 0.0
  %v4258 = vmax.f32 %v2895, 0.0
  %v4259 = vmax.f32 %v2898, 0.0
  %v4260 = vmax.f32 %v2901, 0.0
  %v4261 = vmax.f32 %v2904, 0.0
  %v4262 = vmax.f32 %v2907, 0.0
  %v4263 = vmax.f32 %v2910, 0.0
  %v4264 = vmax.f32 %v2913, 0.0
  %v4265 = vmax.f32 %v2916, 0.0
  %v4266 = vmax.f32 %v2919, 0.0
  %v4267 = vmax.f32 %v2922, 0.0
  %v4268 = vmax.f32 %v2925, 0.0
  %v4269 = vmax.f32 %v2928, 0.0
  %v4270 = vmax.f32 %v2931, 0.0
  %v4271 = vmax.f32 %v2934, 0.0
  %v4272 = vmax.f32 %v2937, 0.0
  %v4273 = vmax.f32 %v2940, 0.0
  %v4274 = vmax.f32 %v2943, 0.0
  %v4275 = vmax.f32 %v2946, 0.0
  %v4276 = vmax.f32 %v2949, 0.0
  %v4277 = vmax.f32 %v2952, 0.0
  %v4278 = vmax.f32 %v2955, 0.0
  %v4279 = vmax.f32 %v2958, 0.0
  %v4280 = vmax.f32 %v2961, 0.0
  %v4281 = vmax.f32 %v2964, 0.0
  %v4282 = vmax.f32 %v2967, 0.0
  %v4283 = vmax.f32 %v2970, 0.0
  %v4284 = vmax.f32 %v2973, 0.0
  %v4285 = vmax.f32 %v2976, 0.0
  %v4286 = vmax.f32 %v2979, 0.0
  %v4287 = vmax.f32 %v2982, 0.0
  %v4288 = vmax.f32 %v2985, 0.0
  %v4289 = vmax.f32 %v2988, 0.0
  %v4290 = vmax.f32 %v2991, 0.0
  %v4291 = vmax.f32 %v2994, 0.0
  %v4292 = vmax.f32 %v2997, 0.0
  %v4293 = vmax.f32 %v3000, 0.0
  %v4294 = vmax.f32 %v3003, 0.0
  %v4295 = vmax.f32 %v3006, 0.0
  %v4296 = vmax.f32 %v3009, 0.0
  %v4297 = vmax.f32 %v3012, 0.0
  %v4298 = vmax.f32 %v3015, 0.0
  %v4299 = vmax.f32 %v3018, 0.0
  %v4300 = vmax.f32 %v3021, 0.0
  %v4301 = vmax.f32 %v3024, 0.0
  %v4302 = vmax.f32 %v3027, 0.0
  %v4303 = vmax.f32 %v3030, 0.0
  %v4304 = vmax.f32 %v3033, 0.0
  %v4305 = vmax.f32 %v3036, 0.0
  %v4306 = vmax.f32 %v3039, 0.0
  %v4307 = vmax.f32 %v3042, 0.0
  %v4308 = vmax.f32 %v3045, 0.0
  %v4309 = vmax.f32 %v3048, 0.0
  %v4310 = vmax.f32 %v3051, 0.0
  %v4311 = vmax.f32 %v3054, 0.0
  %v4312 = vmax.f32 %v3057, 0.0
  %v4313 = vmax.f32 %v3060, 0.0
  %v4314 = vmax.f32 %v3063, 0.0
  %v4315 = vmax.f32 %v3066, 0.0
  %v4316 = vmax.f32 %v3069, 0.0
  %v4317 = vmax.f32 %v3072, 0.0
  %v4318 = vmax.f32 %v3075, 0.0
  %v4319 = vmax.f32 %v3078, 0.0
  %v4320 = vmax.f32 %v3081, 0.0
  %v4321 = vmax.f32 %v3084, 0.0
  %v4322 = vmax.f32 %v3087, 0.0
  %v4323 = vmax.f32 %v3090, 0.0
  %v4324 = vmax.f32 %v3093, 0.0
  %v4325 = vmax.f32 %v3096, 0.0
  %v4326 = vmax.f32 %v3099, 0.0
  %v4327 = vmax.f32 %v3102, 0.0
  %v4328 = vmax.f32 %v3105, 0.0
  %v4329 = vmax.f32 %v3108, 0.0
  %v4330 = vmax.f32 %v3111, 0.0
  %v4331 = vmax.f32 %v3114, 0.0
  %v4332 = vmax.f32 %v3117, 0.0
  %v4333 = vmax.f32 %v3120, 0.0
  %v4334 = vmax.f32 %v3123, 0.0
  %v4335 = vmax.f32 %v3126, 0.0
  %v4336 = vmax.f32 %v3129, 0.0
  %v4337 = vmax.f32 %v3132, 0.0
  %v4338 = vmax.f32 %v3135, 0.0
  %v4339 = vmax.f32 %v3138, 0.0
  %v4340 = vmax.f32 %v3141, 0.0
  %v4341 = vmax.f32 %v3144, 0.0
  %v4342 = vmax.f32 %v3147, 0.0
  %v4343 = vmax.f32 %v3150, 0.0
  %v4344 = vmax.f32 %v3153, 0.0
  %v4345 = vmax.f32 %v3156, 0.0
  %v4346 = vmax.f32 %v3159, 0.0
  %v4347 = vmax.f32 %v3162, 0.0
  %v4348 = vmax.f32 %v3165, 0.0
  %v4349 = vmax.f32 %v3168, 0.0
  %v4350 = vmax.f32 %v3171, 0.0
  %v4351 = vmax.f32 %v3174, 0.0
  %v4352 = vmax.f32 %v3177, 0.0
  %v4353 = vmax.f32 %v3180, 0.0
  %v4354 = vmax.f32 %v3183, 0.0
  %v4355 = vmax.f32 %v3186, 0.0
  %v4356 = vmax.f32 %v3189, 0.0
  %v4357 = vmax.f32 %v3192, 0.0
  %v4358 = vmax.f32 %v3195, 0.0
  %v4359 = vmax.f32 %v3198, 0.0
  %v4360 = vmax.f32 %v3201, 0.0
  %v4361 = vmax.f32 %v3204, 0.0
  %v4362 = vmax.f32 %v3207, 0.0
  %v4363 = vmax.f32 %v3210, 0.0
  %v4364 = vmax.f32 %v3213, 0.0
  %v4365 = vmax.f32 %v3216, 0.0
  %v4366 = vmax.f32 %v3219, 0.0
  %v4367 = vmax.f32 %v3222, 0.0
  %v4368 = vmax.f32 %v3225, 0.0
  %v4369 = vmax.f32 %v3228, 0.0
  %v4370 = vmax.f32 %v3231, 0.0
  %v4371 = vmax.f32 %v3234, 0.0
  %v4372 = vmax.f32 %v3237, 0.0
  %v4373 = vmax.f32 %v3240, 0.0
  %v4374 = vmax.f32 %v3243, 0.0
  %v4375 = vmax.f32 %v3246, 0.0
  %v4376 = vmax.f32 %v3249, 0.0
  %v4377 = vmax.f32 %v3252, 0.0
  %v4378 = vmax.f32 %v3255, 0.0
  %v4379 = vmax.f32 %v3258, 0.0
  %v4380 = vmax.f32 %v3261, 0.0
  %v4381 = vmax.f32 %v3264, 0.0
  %v4382 = vmax.f32 %v3267, 0.0
  %v4383 = vmax.f32 %v3270, 0.0
  %v4384 = vmax.f32 %v3273, 0.0
  %v4385 = vmax.f32 %v3276, 0.0
  %v4386 = vmax.f32 %v3279, 0.0
  %v4387 = vmax.f32 %v3282, 0.0
  %v4388 = vmax.f32 %v3285, 0.0
  %v4389 = vmax.f32 %v3288, 0.0
  %v4390 = vmax.f32 %v3291, 0.0
  %v4391 = vmax.f32 %v3294, 0.0
  %v4392 = vmax.f32 %v3297, 0.0
  %v4393 = vmax.f32 %v3300, 0.0
  %v4394 = vmax.f32 %v3303, 0.0
  %v4395 = vmax.f32 %v3306, 0.0
  %v4396 = vmax.f32 %v3309, 0.0
  %v4397 = vmax.f32 %v3312, 0.0
  %v4398 = vmax.f32 %v3315, 0.0
  %v4399 = vmax.f32 %v3318, 0.0
  %v4400 = vmax.f32 %v3321, 0.0
  %v4401 = vmax.f32 %v3324, 0.0
  %v4402 = vmax.f32 %v3327, 0.0
  %v4403 = vmax.f32 %v3330, 0.0
  %v4404 = vmax.f32 %v3333, 0.0
  %v4405 = vmax.f32 %v3336, 0.0
  %v4406 = vmax.f32 %v3339, 0.0
  %v4407 = vmax.f32 %v3342, 0.0
  %v4408 = vmax.f32 %v3345, 0.0
  %v4409 = vmax.f32 %v3348, 0.0
  %v4410 = vmax.f32 %v3351, 0.0
  %v4411 = vmax.f32 %v3354, 0.0
  %v4412 = vmax.f32 %v3357, 0.0
  %v4413 = vmax.f32 %v3360, 0.0
  %v4414 = vmax.f32 %v3363, 0.0
  %v4415 = vmax.f32 %v3366, 0.0
  %v4416 = vmax.f32 %v3369, 0.0
  %v4417 = vmax.f32 %v3372, 0.0
  %v4418 = vmax.f32 %v3375, 0.0
  %v4419 = vmax.f32 %v3378, 0.0
  %v4420 = vmax.f32 %v3381, 0.0
  %v4421 = vmax.f32 %v3384, 0.0
  %v4422 = vmax.f32 %v3387, 0.0
  %v4423 = vmax.f32 %v3390, 0.0
  %v4424 = vmax.f32 %v3393, 0.0
  %v4425 = vmax.f32 %v3396, 0.0
  %v4426 = vmax.f32 %v3399, 0.0
  %v4427 = vmax.f32 %v3402, 0.0
  %v4428 = vmax.f32 %v3405, 0.0
  %v4429 = vmax.f32 %v3408, 0.0
  %v4430 = vmax.f32 %v3411, 0.0
  %v4431 = vmax.f32 %v3414, 0.0
  %v4432 = vmax.f32 %v3417, 0.0
  %v4433 = vmax.f32 %v3420, 0.0
  %v4434 = vmax.f32 %v3423, 0.0
  %v4435 = vmax.f32 %v3426, 0.0
  %v4436 = vmax.f32 %v3429, 0.0
  %v4437 = vmax.f32 %v3432, 0.0
  %v4438 = vmax.f32 %v3435, 0.0
  %v4439 = vmax.f32 %v3438, 0.0
  %v4440 = vmax.f32 %v3441, 0.0
  %v4441 = vmax.f32 %v3444, 0.0
  %v4442 = vmax.f32 %v3447, 0.0
  %v4443 = vmax.f32 %v3450, 0.0
  %v4444 = vmax.f32 %v3453, 0.0
  %v4445 = vmax.f32 %v3456, 0.0
  %v4446 = vmax.f32 %v3459, 0.0
  %v4447 = vmax.f32 %v3462, 0.0
  %v4448 = vmax.f32 %v3465, 0.0
  %v4449 = vmax.f32 %v3468, 0.0
  %v4450 = vmax.f32 %v3471, 0.0
  %v4451 = vmax.f32 %v3474, 0.0
  %v4452 = vmax.f32 %v3477, 0.0
  %v4453 = vmax.f32 %v3480, 0.0
  %v4454 = vmax.f32 %v3483, 0.0
  %v4455 = vmax.f32 %v3486, 0.0
  %v4456 = vmax.f32 %v3489, 0.0
  %v4457 = vmax.f32 %v3492, 0.0
  %v4458 = vmax.f32 %v3495, 0.0
  %v4459 = vmax.f32 %v3498, 0.0
  %v4460 = vmax.f32 %v3501, 0.0
  %v4461 = vmax.f32 %v3504, 0.0
  %v4462 = vmax.f32 %v3507, 0.0
  %v4463 = vmax.f32 %v3510, 0.0
  %v4464 = vmax.f32 %v3513, 0.0
  %v4465 = vmax.f32 %v3516, 0.0
  %v4466 = vmax.f32 %v3519, 0.0
  %v4467 = vmax.f32 %v3522, 0.0
  %v4468 = vmax.f32 %v3525, 0.0
  %v4469 = vmax.f32 %v3528, 0.0
  %v4470 = vmax.f32 %v3531, 0.0
  %v4471 = vmax.f32 %v3534, 0.0
  %v4472 = vmax.f32 %v3537, 0.0
  %v4473 = vmax.f32 %v3540, 0.0
  %v4474 = vmax.f32 %v3543, 0.0
  %v4475 = vmax.f32 %v3546, 0.0
  %v4476 = vmax.f32 %v3549, 0.0
  %v4477 = vmax.f32 %v3552, 0.0
  %v4478 = vmax.f32 %v3555, 0.0
  %v4479 = vmax.f32 %v3558, 0.0
  %v4480 = vmax.f32 %v3561, 0.0
  %v4481 = vmax.f32 %v3564, 0.0
  %v4482 = vmax.f32 %v3567, 0.0
  %v4483 = vmax.f32 %v3570, 0.0
  %v4484 = vmax.f32 %v3573, 0.0
  %v4485 = vmax.f32 %v3576, 0.0
  %v4486 = vmax.f32 %v3579, 0.0
  %v4487 = vmax.f32 %v3582, 0.0
  %v4488 = vmax.f32 %v3585, 0.0
  %v4489 = vmax.f32 %v3588, 0.0
  %v4490 = vmax.f32 %v3591, 0.0
  %v4491 = vmax.f32 %v3594, 0.0
  %v4492 = vmax.f32 %v3597, 0.0
  %v4493 = vmax.f32 %v3600, 0.0
  %v4494 = vmax.f32 %v3603, 0.0
  %v4495 = vmax.f32 %v3606, 0.0
  %v4496 = vmax.f32 %v3609, 0.0
  %v4497 = vmax.f32 %v3612, 0.0
  %v4498 = vmax.f32 %v3615, 0.0
  %v4499 = vmax.f32 %v3618, 0.0
  %v4500 = vmax.f32 %v3621, 0.0
  %v4501 = vmax.f32 %v3624, 0.0
  %v4502 = vmax.f32 %v3627, 0.0
  %v4503 = vmax.f32 %v3630, 0.0
  %v4504 = vmax.f32 %v3633, 0.0
  %v4505 = vmax.f32 %v3636, 0.0
  %v4506 = vmax.f32 %v3639, 0.0
  %v4507 = vmax.f32 %v3642, 0.0
  %v4508 = vmax.f32 %v3645, 0.0
  %v4509 = vmax.f32 %v3648, 0.0
  %v4510 = vmax.f32 %v3651, 0.0
  %v4511 = vmax.f32 %v3654, 0.0
  %v4512 = vmax.f32 %v3657, 0.0
  %v4513 = vmax.f32 %v3660, 0.0
  %v4514 = vmax.f32 %v3663, 0.0
  %v4515 = vmax.f32 %v3666, 0.0
  %v4516 = vmax.f32 %v3669, 0.0
  %v4517 = vmax.f32 %v3672, 0.0
  %v4518 = vmax.f32 %v3675, 0.0
  %v4519 = vmax.f32 %v3678, 0.0
  %v4520 = vmax.f32 %v3681, 0.0
  %v4521 = vmax.f32 %v3684, 0.0
  %v4522 = vmax.f32 %v3687, 0.0
  %v4523 = vmax.f32 %v3690, 0.0
  %v4524 = vmax.f32 %v3693, 0.0
  %v4525 = vmax.f32 %v3696, 0.0
  %v4526 = vmax.f32 %v3699, 0.0
  %v4527 = vmax.f32 %v3702, 0.0
  %v4528 = vmax.f32 %v3705, 0.0
  %v4529 = vmax.f32 %v3708, 0.0
  %v4530 = vmax.f32 %v3711, 0.0
  %v4531 = vmax.f32 %v3714, 0.0
  %v4532 = vmax.f32 %v3717, 0.0
  %v4533 = vmax.f32 %v3720, 0.0
  %v4534 = vmax.f32 %v3723, 0.0
  %v4535 = vmax.f32 %v3726, 0.0
  %v4536 = vmax.f32 %v3729, 0.0
  %v4537 = vmax.f32 %v3732, 0.0
  %v4538 = vmax.f32 %v3735, 0.0
  %v4539 = vmax.f32 %v3738, 0.0
  %v4540 = vmax.f32 %v3741, 0.0
  %v4541 = vmax.f32 %v3744, 0.0
  %v4542 = vmax.f32 %v3747, 0.0
  %v4543 = vmax.f32 %v3750, 0.0
  %v4544 = vmax.f32 %v3753, 0.0
  %v4545 = vmax.f32 %v3756, 0.0
  %v4546 = vmax.f32 %v3759, 0.0
  %v4547 = vmax.f32 %v3762, 0.0
  %v4548 = vmax.f32 %v3765, 0.0
  %v4549 = vmax.f32 %v3768, 0.0
  %v4550 = vmax.f32 %v3771, 0.0
  %v4551 = vmax.f32 %v3774, 0.0
  %v4552 = vmax.f32 %v3777, 0.0
  %v4553 = vmax.f32 %v3780, 0.0
  %v4554 = vmax.f32 %v3783, 0.0
  %v4555 = vmax.f32 %v3786, 0.0
  %v4556 = vmax.f32 %v3789, 0.0
  %v4557 = vmax.f32 %v3792, 0.0
  %v4558 = vmax.f32 %v3795, 0.0
  %v4559 = vmax.f32 %v3798, 0.0
  %v4560 = vmax.f32 %v3801, 0.0
  %v4561 = vmax.f32 %v3804, 0.0
  %v4562 = vmax.f32 %v3807, 0.0
  %v4563 = vmax.f32 %v3810, 0.0
  %v4564 = vmax.f32 %v3813, 0.0
  %v4565 = vmax.f32 %v3816, 0.0
  %v4566 = vmax.f32 %v3819, 0.0
  %v4567 = vmax.f32 %v3822, 0.0
  %v4568 = vmax.f32 %v3825, 0.0
  %v4569 = vmax.f32 %v3828, 0.0
  %v4570 = vmax.f32 %v3831, 0.0
  %v4571 = vmax.f32 %v3834, 0.0
  %v4572 = vmax.f32 %v3837, 0.0
  %v4573 = vmax.f32 %v3840, 0.0
  %v4574 = vmax.f32 %v3843, 0.0
  %v4575 = vmax.f32 %v3846, 0.0
  %v4576 = vmax.f32 %v3849, 0.0
  %v4577 = vmax.f32 %v3852, 0.0
  %v4578 = vmax.f32 %v3855, 0.0
  %v4579 = vmax.f32 %v3858, 0.0
  %v4580 = vmax.f32 %v3861, 0.0
  %v4581 = vmax.f32 %v3864, 0.0
  %v4582 = vmax.f32 %v3867, 0.0
  %v4583 = vmax.f32 %v3870, 0.0
  %v4584 = vmax.f32 %v3873, 0.0
  %v4585 = vmax.f32 %v3876, 0.0
  %v4586 = vmax.f32 %v3879, 0.0
  %v4587 = vmax.f32 %v3882, 0.0
  %v4588 = vmax.f32 %v3885, 0.0
  %v4589 = vmax.f32 %v3888, 0.0
  %v4590 = vmax.f32 %v3891, 0.0
  %v4591 = vmax.f32 %v3894, 0.0
  %v4592 = vmax.f32 %v3897, 0.0
  %v4593 = vmax.f32 %v3900, 0.0
  %v4594 = vmax.f32 %v3903, 0.0
  %v4595 = vmax.f32 %v3906, 0.0
  %v4596 = vmax.f32 %v3909, 0.0
  %v4597 = vmax.f32 %v3912, 0.0
  %v4598 = vmax.f32 %v3915, 0.0
  %v4599 = vmax.f32 %v3918, 0.0
  %v4600 = vmax.f32 %v3921, 0.0
  %v4601 = vmax.f32 %v3924, 0.0
  %v4602 = vmax.f32 %v3927, 0.0
  %v4603 = vmax.f32 %v3930, 0.0
  %v4604 = vmax.f32 %v3933, 0.0
  %v4605 = vmax.f32 %v3936, 0.0
  %v4606 = vmax.f32 %v3939, 0.0
  %v4607 = vmax.f32 %v3942, 0.0
  %v4608 = vmax.f32 %v3945, 0.0
  %v4609 = vmax.f32 %v3948, 0.0
  %v4610 = vmax.f32 %v3951, 0.0
  %v4611 = vmax.f32 %v3954, 0.0
  %v4612 = vmax.f32 %v3957, 0.0
  %v4613 = vmax.f32 %v3960, 0.0
  %v4614 = vmax.f32 %v3963, 0.0
  %v4615 = vmax.f32 %v3966, 0.0
  %v4616 = vmax.f32 %v3969, 0.0
  %v4617 = vmax.f32 %v3972, 0.0
  %v4618 = vmax.f32 %v3975, 0.0
  %v4619 = vmax.f32 %v3978, 0.0
  %v4620 = vmax.f32 %v3981, 0.0
  %v4621 = vmax.f32 %v3984, 0.0
  %v4622 = vmax.f32 %v3987, 0.0
  %v4623 = vmax.f32 %v3990, 0.0
  %v4624 = vmax.f32 %v3993, 0.0
  %v4625 = vmax.f32 %v3996, 0.0
  %v4626 = vmax.f32 %v3999, 0.0
  %v4627 = vmax.f32 %v4002, 0.0
  %v4628 = vmax.f32 %v4005, 0.0
  %v4629 = vmax.f32 %v4008, 0.0
  %v4630 = vmax.f32 %v4011, 0.0
  %v4631 = vmax.f32 %v4014, 0.0
  %v4632 = vmax.f32 %v4017, 0.0
  %v4633 = vmax.f32 %v4020, 0.0
  %v4634 = vmax.f32 %v4023, 0.0
  %v4635 = vmax.f32 %v4026, 0.0
  %v4636 = vmax.f32 %v4029, 0.0
  %v4637 = vmax.f32 %v4032, 0.0
  %v4638 = vmax.f32 %v4035, 0.0
  %v4639 = vmax.f32 %v4038, 0.0
  %v4640 = vmax.f32 %v4041, 0.0
  %v4641 = vmax.f32 %v4044, 0.0
  %v4642 = vmax.f32 %v4047, 0.0
  %v4643 = vmax.f32 %v4050, 0.0
  %v4644 = vmax.f32 %v4053, 0.0
  %v4645 = vmax.f32 %v4056, 0.0
  %v4646 = vmax.f32 %v4059, 0.0
  %v4647 = vmax.f32 %v4062, 0.0
  %v4648 = vmax.f32 %v4065, 0.0
  %v4649 = vmax.f32 %v4068, 0.0
  %v4650 = vmax.f32 %v4071, 0.0
  %v4651 = vmax.f32 %v4074, 0.0
  %vm4652 = vcmask 80896
  %v4653 = vsel %vm4652, %v4076, -inf
  %v4654 = vsel %vm4652, %v4094, -inf
  %v4655 = vmax.f32 %v4653, %v4654
  %v4656 = vsel %vm4652, %v4112, -inf
  %v4657 = vmax.f32 %v4655, %v4656
  %v4658 = vsel %vm4652, %v4130, -inf
  %v4659 = vmax.f32 %v4657, %v4658
  %v4660 = vsel %vm4652, %v4077, -inf
  %v4661 = vsel %vm4652, %v4095, -inf
  %v4662 = vmax.f32 %v4660, %v4661
  %v4663 = vsel %vm4652, %v4113, -inf
  %v4664 = vmax.f32 %v4662, %v4663
  %v4665 = vsel %vm4652, %v4131, -inf
  %v4666 = vmax.f32 %v4664, %v4665
  %v4667 = vsel %vm4652, %v4078, -inf
  %v4668 = vsel %vm4652, %v4096, -inf
  %v4669 = vmax.f32 %v4667, %v4668
  %v4670 = vsel %vm4652, %v4114, -inf
  %v4671 = vmax.f32 %v4669, %v4670
  %v4672 = vsel %vm4652, %v4132, -inf
  %v4673 = vmax.f32 %v4671, %v4672
  %v4674 = vsel %vm4652, %v4079, -inf
  %v4675 = vsel %vm4652, %v4097, -inf
  %v4676 = vmax.f32 %v4674, %v4675
  %v4677 = vsel %vm4652, %v4115, -inf
  %v4678 = vmax.f32 %v4676, %v4677
  %v4679 = vsel %vm4652, %v4133, -inf
  %v4680 = vmax.f32 %v4678, %v4679
  %v4681 = vsel %vm4652, %v4080, -inf
  %v4682 = vsel %vm4652, %v4098, -inf
  %v4683 = vmax.f32 %v4681, %v4682
  %v4684 = vsel %vm4652, %v4116, -inf
  %v4685 = vmax.f32 %v4683, %v4684
  %v4686 = vsel %vm4652, %v4134, -inf
  %v4687 = vmax.f32 %v4685, %v4686
  %v4688 = vsel %vm4652, %v4081, -inf
  %v4689 = vsel %vm4652, %v4099, -inf
  %v4690 = vmax.f32 %v4688, %v4689
  %v4691 = vsel %vm4652, %v4117, -inf
  %v4692 = vmax.f32 %v4690, %v4691
  %v4693 = vsel %vm4652, %v4135, -inf
  %v4694 = vmax.f32 %v4692, %v4693
  %v4695 = vsel %vm4652, %v4082, -inf
  %v4696 = vsel %vm4652, %v4100, -inf
  %v4697 = vmax.f32 %v4695, %v4696
  %v4698 = vsel %vm4652, %v4118, -inf
  %v4699 = vmax.f32 %v4697, %v4698
  %v4700 = vsel %vm4652, %v4136, -inf
  %v4701 = vmax.f32 %v4699, %v4700
  %v4702 = vsel %vm4652, %v4083, -inf
  %v4703 = vsel %vm4652, %v4101, -inf
  %v4704 = vmax.f32 %v4702, %v4703
  %v4705 = vsel %vm4652, %v4119, -inf
  %v4706 = vmax.f32 %v4704, %v4705
  %v4707 = vsel %vm4652, %v4137, -inf
  %v4708 = vmax.f32 %v4706, %v4707
  %v4709 = vsel %vm4652, %v4084, -inf
  %v4710 = vsel %vm4652, %v4102, -inf
  %v4711 = vmax.f32 %v4709, %v4710
  %v4712 = vsel %vm4652, %v4120, -inf
  %v4713 = vmax.f32 %v4711, %v4712
  %v4714 = vsel %vm4652, %v4138, -inf
  %v4715 = vmax.f32 %v4713, %v4714
  %v4716 = vsel %vm4652, %v4085, -inf
  %v4717 = vsel %vm4652, %v4103, -inf
  %v4718 = vmax.f32 %v4716, %v4717
  %v4719 = vsel %vm4652, %v4121, -inf
  %v4720 = vmax.f32 %v4718, %v4719
  %v4721 = vsel %vm4652, %v4139, -inf
  %v4722 = vmax.f32 %v4720, %v4721
  %v4723 = vsel %vm4652, %v4086, -inf
  %v4724 = vsel %vm4652, %v4104, -inf
  %v4725 = vmax.f32 %v4723, %v4724
  %v4726 = vsel %vm4652, %v4122, -inf
  %v4727 = vmax.f32 %v4725, %v4726
  %v4728 = vsel %vm4652, %v4140, -inf
  %v4729 = vmax.f32 %v4727, %v4728
  %v4730 = vsel %vm4652, %v4087, -inf
  %v4731 = vsel %vm4652, %v4105, -inf
  %v4732 = vmax.f32 %v4730, %v4731
  %v4733 = vsel %vm4652, %v4123, -inf
  %v4734 = vmax.f32 %v4732, %v4733
  %v4735 = vsel %vm4652, %v4141, -inf
  %v4736 = vmax.f32 %v4734, %v4735
  %v4737 = vsel %vm4652, %v4088, -inf
  %v4738 = vsel %vm4652, %v4106, -inf
  %v4739 = vmax.f32 %v4737, %v4738
  %v4740 = vsel %vm4652, %v4124, -inf
  %v4741 = vmax.f32 %v4739, %v4740
  %v4742 = vsel %vm4652, %v4142, -inf
  %v4743 = vmax.f32 %v4741, %v4742
  %v4744 = vsel %vm4652, %v4089, -inf
  %v4745 = vsel %vm4652, %v4107, -inf
  %v4746 = vmax.f32 %v4744, %v4745
  %v4747 = vsel %vm4652, %v4125, -inf
  %v4748 = vmax.f32 %v4746, %v4747
  %v4749 = vsel %vm4652, %v4143, -inf
  %v4750 = vmax.f32 %v4748, %v4749
  %v4751 = vsel %vm4652, %v4090, -inf
  %v4752 = vsel %vm4652, %v4108, -inf
  %v4753 = vmax.f32 %v4751, %v4752
  %v4754 = vsel %vm4652, %v4126, -inf
  %v4755 = vmax.f32 %v4753, %v4754
  %v4756 = vsel %vm4652, %v4144, -inf
  %v4757 = vmax.f32 %v4755, %v4756
  %v4758 = vsel %vm4652, %v4091, -inf
  %v4759 = vsel %vm4652, %v4109, -inf
  %v4760 = vmax.f32 %v4758, %v4759
  %v4761 = vsel %vm4652, %v4127, -inf
  %v4762 = vmax.f32 %v4760, %v4761
  %v4763 = vsel %vm4652, %v4145, -inf
  %v4764 = vmax.f32 %v4762, %v4763
  %v4765 = vsel %vm4652, %v4092, -inf
  %v4766 = vsel %vm4652, %v4110, -inf
  %v4767 = vmax.f32 %v4765, %v4766
  %v4768 = vsel %vm4652, %v4128, -inf
  %v4769 = vmax.f32 %v4767, %v4768
  %v4770 = vsel %vm4652, %v4146, -inf
  %v4771 = vmax.f32 %v4769, %v4770
  %v4772 = vsel %vm4652, %v4093, -inf
  %v4773 = vsel %vm4652, %v4111, -inf
  %v4774 = vmax.f32 %v4772, %v4773
  %v4775 = vsel %vm4652, %v4129, -inf
  %v4776 = vmax.f32 %v4774, %v4775
  %v4777 = vsel %vm4652, %v4147, -inf
  %v4778 = vmax.f32 %v4776, %v4777
  %v4779 = vsel %vm4652, %v4148, -inf
  %v4780 = vsel %vm4652, %v4166, -inf
  %v4781 = vmax.f32 %v4779, %v4780
  %v4782 = vsel %vm4652, %v4184, -inf
  %v4783 = vmax.f32 %v4781, %v4782
  %v4784 = vsel %vm4652, %v4202, -inf
  %v4785 = vmax.f32 %v4783, %v4784
  %v4786 = vsel %vm4652, %v4149, -inf
  %v4787 = vsel %vm4652, %v4167, -inf
  %v4788 = vmax.f32 %v4786, %v4787
  %v4789 = vsel %vm4652, %v4185, -inf
  %v4790 = vmax.f32 %v4788, %v4789
  %v4791 = vsel %vm4652, %v4203, -inf
  %v4792 = vmax.f32 %v4790, %v4791
  %v4793 = vsel %vm4652, %v4150, -inf
  %v4794 = vsel %vm4652, %v4168, -inf
  %v4795 = vmax.f32 %v4793, %v4794
  %v4796 = vsel %vm4652, %v4186, -inf
  %v4797 = vmax.f32 %v4795, %v4796
  %v4798 = vsel %vm4652, %v4204, -inf
  %v4799 = vmax.f32 %v4797, %v4798
  %v4800 = vsel %vm4652, %v4151, -inf
  %v4801 = vsel %vm4652, %v4169, -inf
  %v4802 = vmax.f32 %v4800, %v4801
  %v4803 = vsel %vm4652, %v4187, -inf
  %v4804 = vmax.f32 %v4802, %v4803
  %v4805 = vsel %vm4652, %v4205, -inf
  %v4806 = vmax.f32 %v4804, %v4805
  %v4807 = vsel %vm4652, %v4152, -inf
  %v4808 = vsel %vm4652, %v4170, -inf
  %v4809 = vmax.f32 %v4807, %v4808
  %v4810 = vsel %vm4652, %v4188, -inf
  %v4811 = vmax.f32 %v4809, %v4810
  %v4812 = vsel %vm4652, %v4206, -inf
  %v4813 = vmax.f32 %v4811, %v4812
  %v4814 = vsel %vm4652, %v4153, -inf
  %v4815 = vsel %vm4652, %v4171, -inf
  %v4816 = vmax.f32 %v4814, %v4815
  %v4817 = vsel %vm4652, %v4189, -inf
  %v4818 = vmax.f32 %v4816, %v4817
  %v4819 = vsel %vm4652, %v4207, -inf
  %v4820 = vmax.f32 %v4818, %v4819
  %v4821 = vsel %vm4652, %v4154, -inf
  %v4822 = vsel %vm4652, %v4172, -inf
  %v4823 = vmax.f32 %v4821, %v4822
  %v4824 = vsel %vm4652, %v4190, -inf
  %v4825 = vmax.f32 %v4823, %v4824
  %v4826 = vsel %vm4652, %v4208, -inf
  %v4827 = vmax.f32 %v4825, %v4826
  %v4828 = vsel %vm4652, %v4155, -inf
  %v4829 = vsel %vm4652, %v4173, -inf
  %v4830 = vmax.f32 %v4828, %v4829
  %v4831 = vsel %vm4652, %v4191, -inf
  %v4832 = vmax.f32 %v4830, %v4831
  %v4833 = vsel %vm4652, %v4209, -inf
  %v4834 = vmax.f32 %v4832, %v4833
  %v4835 = vsel %vm4652, %v4156, -inf
  %v4836 = vsel %vm4652, %v4174, -inf
  %v4837 = vmax.f32 %v4835, %v4836
  %v4838 = vsel %vm4652, %v4192, -inf
  %v4839 = vmax.f32 %v4837, %v4838
  %v4840 = vsel %vm4652, %v4210, -inf
  %v4841 = vmax.f32 %v4839, %v4840
  %v4842 = vsel %vm4652, %v4157, -inf
  %v4843 = vsel %vm4652, %v4175, -inf
  %v4844 = vmax.f32 %v4842, %v4843
  %v4845 = vsel %vm4652, %v4193, -inf
  %v4846 = vmax.f32 %v4844, %v4845
  %v4847 = vsel %vm4652, %v4211, -inf
  %v4848 = vmax.f32 %v4846, %v4847
  %v4849 = vsel %vm4652, %v4158, -inf
  %v4850 = vsel %vm4652, %v4176, -inf
  %v4851 = vmax.f32 %v4849, %v4850
  %v4852 = vsel %vm4652, %v4194, -inf
  %v4853 = vmax.f32 %v4851, %v4852
  %v4854 = vsel %vm4652, %v4212, -inf
  %v4855 = vmax.f32 %v4853, %v4854
  %v4856 = vsel %vm4652, %v4159, -inf
  %v4857 = vsel %vm4652, %v4177, -inf
  %v4858 = vmax.f32 %v4856, %v4857
  %v4859 = vsel %vm4652, %v4195, -inf
  %v4860 = vmax.f32 %v4858, %v4859
  %v4861 = vsel %vm4652, %v4213, -inf
  %v4862 = vmax.f32 %v4860, %v4861
  %v4863 = vsel %vm4652, %v4160, -inf
  %v4864 = vsel %vm4652, %v4178, -inf
  %v4865 = vmax.f32 %v4863, %v4864
  %v4866 = vsel %vm4652, %v4196, -inf
  %v4867 = vmax.f32 %v4865, %v4866
  %v4868 = vsel %vm4652, %v4214, -inf
  %v4869 = vmax.f32 %v4867, %v4868
  %v4870 = vsel %vm4652, %v4161, -inf
  %v4871 = vsel %vm4652, %v4179, -inf
  %v4872 = vmax.f32 %v4870, %v4871
  %v4873 = vsel %vm4652, %v4197, -inf
  %v4874 = vmax.f32 %v4872, %v4873
  %v4875 = vsel %vm4652, %v4215, -inf
  %v4876 = vmax.f32 %v4874, %v4875
  %v4877 = vsel %vm4652, %v4162, -inf
  %v4878 = vsel %vm4652, %v4180, -inf
  %v4879 = vmax.f32 %v4877, %v4878
  %v4880 = vsel %vm4652, %v4198, -inf
  %v4881 = vmax.f32 %v4879, %v4880
  %v4882 = vsel %vm4652, %v4216, -inf
  %v4883 = vmax.f32 %v4881, %v4882
  %v4884 = vsel %vm4652, %v4163, -inf
  %v4885 = vsel %vm4652, %v4181, -inf
  %v4886 = vmax.f32 %v4884, %v4885
  %v4887 = vsel %vm4652, %v4199, -inf
  %v4888 = vmax.f32 %v4886, %v4887
  %v4889 = vsel %vm4652, %v4217, -inf
  %v4890 = vmax.f32 %v4888, %v4889
  %v4891 = vsel %vm4652, %v4164, -inf
  %v4892 = vsel %vm4652, %v4182, -inf
  %v4893 = vmax.f32 %v4891, %v4892
  %v4894 = vsel %vm4652, %v4200, -inf
  %v4895 = vmax.f32 %v4893, %v4894
  %v4896 = vsel %vm4652, %v4218, -inf
  %v4897 = vmax.f32 %v4895, %v4896
  %v4898 = vsel %vm4652, %v4165, -inf
  %v4899 = vsel %vm4652, %v4183, -inf
  %v4900 = vmax.f32 %v4898, %v4899
  %v4901 = vsel %vm4652, %v4201, -inf
  %v4902 = vmax.f32 %v4900, %v4901
  %v4903 = vsel %vm4652, %v4219, -inf
  %v4904 = vmax.f32 %v4902, %v4903
  %v4905 = vsel %vm4652, %v4220, -inf
  %v4906 = vsel %vm4652, %v4238, -inf
  %v4907 = vmax.f32 %v4905, %v4906
  %v4908 = vsel %vm4652, %v4256, -inf
  %v4909 = vmax.f32 %v4907, %v4908
  %v4910 = vsel %vm4652, %v4274, -inf
  %v4911 = vmax.f32 %v4909, %v4910
  %v4912 = vsel %vm4652, %v4221, -inf
  %v4913 = vsel %vm4652, %v4239, -inf
  %v4914 = vmax.f32 %v4912, %v4913
  %v4915 = vsel %vm4652, %v4257, -inf
  %v4916 = vmax.f32 %v4914, %v4915
  %v4917 = vsel %vm4652, %v4275, -inf
  %v4918 = vmax.f32 %v4916, %v4917
  %v4919 = vsel %vm4652, %v4222, -inf
  %v4920 = vsel %vm4652, %v4240, -inf
  %v4921 = vmax.f32 %v4919, %v4920
  %v4922 = vsel %vm4652, %v4258, -inf
  %v4923 = vmax.f32 %v4921, %v4922
  %v4924 = vsel %vm4652, %v4276, -inf
  %v4925 = vmax.f32 %v4923, %v4924
  %v4926 = vsel %vm4652, %v4223, -inf
  %v4927 = vsel %vm4652, %v4241, -inf
  %v4928 = vmax.f32 %v4926, %v4927
  %v4929 = vsel %vm4652, %v4259, -inf
  %v4930 = vmax.f32 %v4928, %v4929
  %v4931 = vsel %vm4652, %v4277, -inf
  %v4932 = vmax.f32 %v4930, %v4931
  %v4933 = vsel %vm4652, %v4224, -inf
  %v4934 = vsel %vm4652, %v4242, -inf
  %v4935 = vmax.f32 %v4933, %v4934
  %v4936 = vsel %vm4652, %v4260, -inf
  %v4937 = vmax.f32 %v4935, %v4936
  %v4938 = vsel %vm4652, %v4278, -inf
  %v4939 = vmax.f32 %v4937, %v4938
  %v4940 = vsel %vm4652, %v4225, -inf
  %v4941 = vsel %vm4652, %v4243, -inf
  %v4942 = vmax.f32 %v4940, %v4941
  %v4943 = vsel %vm4652, %v4261, -inf
  %v4944 = vmax.f32 %v4942, %v4943
  %v4945 = vsel %vm4652, %v4279, -inf
  %v4946 = vmax.f32 %v4944, %v4945
  %v4947 = vsel %vm4652, %v4226, -inf
  %v4948 = vsel %vm4652, %v4244, -inf
  %v4949 = vmax.f32 %v4947, %v4948
  %v4950 = vsel %vm4652, %v4262, -inf
  %v4951 = vmax.f32 %v4949, %v4950
  %v4952 = vsel %vm4652, %v4280, -inf
  %v4953 = vmax.f32 %v4951, %v4952
  %v4954 = vsel %vm4652, %v4227, -inf
  %v4955 = vsel %vm4652, %v4245, -inf
  %v4956 = vmax.f32 %v4954, %v4955
  %v4957 = vsel %vm4652, %v4263, -inf
  %v4958 = vmax.f32 %v4956, %v4957
  %v4959 = vsel %vm4652, %v4281, -inf
  %v4960 = vmax.f32 %v4958, %v4959
  %v4961 = vsel %vm4652, %v4228, -inf
  %v4962 = vsel %vm4652, %v4246, -inf
  %v4963 = vmax.f32 %v4961, %v4962
  %v4964 = vsel %vm4652, %v4264, -inf
  %v4965 = vmax.f32 %v4963, %v4964
  %v4966 = vsel %vm4652, %v4282, -inf
  %v4967 = vmax.f32 %v4965, %v4966
  %v4968 = vsel %vm4652, %v4229, -inf
  %v4969 = vsel %vm4652, %v4247, -inf
  %v4970 = vmax.f32 %v4968, %v4969
  %v4971 = vsel %vm4652, %v4265, -inf
  %v4972 = vmax.f32 %v4970, %v4971
  %v4973 = vsel %vm4652, %v4283, -inf
  %v4974 = vmax.f32 %v4972, %v4973
  %v4975 = vsel %vm4652, %v4230, -inf
  %v4976 = vsel %vm4652, %v4248, -inf
  %v4977 = vmax.f32 %v4975, %v4976
  %v4978 = vsel %vm4652, %v4266, -inf
  %v4979 = vmax.f32 %v4977, %v4978
  %v4980 = vsel %vm4652, %v4284, -inf
  %v4981 = vmax.f32 %v4979, %v4980
  %v4982 = vsel %vm4652, %v4231, -inf
  %v4983 = vsel %vm4652, %v4249, -inf
  %v4984 = vmax.f32 %v4982, %v4983
  %v4985 = vsel %vm4652, %v4267, -inf
  %v4986 = vmax.f32 %v4984, %v4985
  %v4987 = vsel %vm4652, %v4285, -inf
  %v4988 = vmax.f32 %v4986, %v4987
  %v4989 = vsel %vm4652, %v4232, -inf
  %v4990 = vsel %vm4652, %v4250, -inf
  %v4991 = vmax.f32 %v4989, %v4990
  %v4992 = vsel %vm4652, %v4268, -inf
  %v4993 = vmax.f32 %v4991, %v4992
  %v4994 = vsel %vm4652, %v4286, -inf
  %v4995 = vmax.f32 %v4993, %v4994
  %v4996 = vsel %vm4652, %v4233, -inf
  %v4997 = vsel %vm4652, %v4251, -inf
  %v4998 = vmax.f32 %v4996, %v4997
  %v4999 = vsel %vm4652, %v4269, -inf
  %v5000 = vmax.f32 %v4998, %v4999
  %v5001 = vsel %vm4652, %v4287, -inf
  %v5002 = vmax.f32 %v5000, %v5001
  %v5003 = vsel %vm4652, %v4234, -inf
  %v5004 = vsel %vm4652, %v4252, -inf
  %v5005 = vmax.f32 %v5003, %v5004
  %v5006 = vsel %vm4652, %v4270, -inf
  %v5007 = vmax.f32 %v5005, %v5006
  %v5008 = vsel %vm4652, %v4288, -inf
  %v5009 = vmax.f32 %v5007, %v5008
  %v5010 = vsel %vm4652, %v4235, -inf
  %v5011 = vsel %vm4652, %v4253, -inf
  %v5012 = vmax.f32 %v5010, %v5011
  %v5013 = vsel %vm4652, %v4271, -inf
  %v5014 = vmax.f32 %v5012, %v5013
  %v5015 = vsel %vm4652, %v4289, -inf
  %v5016 = vmax.f32 %v5014, %v5015
  %v5017 = vsel %vm4652, %v4236, -inf
  %v5018 = vsel %vm4652, %v4254, -inf
  %v5019 = vmax.f32 %v5017, %v5018
  %v5020 = vsel %vm4652, %v4272, -inf
  %v5021 = vmax.f32 %v5019, %v5020
  %v5022 = vsel %vm4652, %v4290, -inf
  %v5023 = vmax.f32 %v5021, %v5022
  %v5024 = vsel %vm4652, %v4237, -inf
  %v5025 = vsel %vm4652, %v4255, -inf
  %v5026 = vmax.f32 %v5024, %v5025
  %v5027 = vsel %vm4652, %v4273, -inf
  %v5028 = vmax.f32 %v5026, %v5027
  %v5029 = vsel %vm4652, %v4291, -inf
  %v5030 = vmax.f32 %v5028, %v5029
  %v5031 = vsel %vm4652, %v4292, -inf
  %v5032 = vsel %vm4652, %v4310, -inf
  %v5033 = vmax.f32 %v5031, %v5032
  %v5034 = vsel %vm4652, %v4328, -inf
  %v5035 = vmax.f32 %v5033, %v5034
  %v5036 = vsel %vm4652, %v4346, -inf
  %v5037 = vmax.f32 %v5035, %v5036
  %v5038 = vsel %vm4652, %v4293, -inf
  %v5039 = vsel %vm4652, %v4311, -inf
  %v5040 = vmax.f32 %v5038, %v5039
  %v5041 = vsel %vm4652, %v4329, -inf
  %v5042 = vmax.f32 %v5040, %v5041
  %v5043 = vsel %vm4652, %v4347, -inf
  %v5044 = vmax.f32 %v5042, %v5043
  %v5045 = vsel %vm4652, %v4294, -inf
  %v5046 = vsel %vm4652, %v4312, -inf
  %v5047 = vmax.f32 %v5045, %v5046
  %v5048 = vsel %vm4652, %v4330, -inf
  %v5049 = vmax.f32 %v5047, %v5048
  %v5050 = vsel %vm4652, %v4348, -inf
  %v5051 = vmax.f32 %v5049, %v5050
  %v5052 = vsel %vm4652, %v4295, -inf
  %v5053 = vsel %vm4652, %v4313, -inf
  %v5054 = vmax.f32 %v5052, %v5053
  %v5055 = vsel %vm4652, %v4331, -inf
  %v5056 = vmax.f32 %v5054, %v5055
  %v5057 = vsel %vm4652, %v4349, -inf
  %v5058 = vmax.f32 %v5056, %v5057
  %v5059 = vsel %vm4652, %v4296, -inf
  %v5060 = vsel %vm4652, %v4314, -inf
  %v5061 = vmax.f32 %v5059, %v5060
  %v5062 = vsel %vm4652, %v4332, -inf
  %v5063 = vmax.f32 %v5061, %v5062
  %v5064 = vsel %vm4652, %v4350, -inf
  %v5065 = vmax.f32 %v5063, %v5064
  %v5066 = vsel %vm4652, %v4297, -inf
  %v5067 = vsel %vm4652, %v4315, -inf
  %v5068 = vmax.f32 %v5066, %v5067
  %v5069 = vsel %vm4652, %v4333, -inf
  %v5070 = vmax.f32 %v5068, %v5069
  %v5071 = vsel %vm4652, %v4351, -inf
  %v5072 = vmax.f32 %v5070, %v5071
  %v5073 = vsel %vm4652, %v4298, -inf
  %v5074 = vsel %vm4652, %v4316, -inf
  %v5075 = vmax.f32 %v5073, %v5074
  %v5076 = vsel %vm4652, %v4334, -inf
  %v5077 = vmax.f32 %v5075, %v5076
  %v5078 = vsel %vm4652, %v4352, -inf
  %v5079 = vmax.f32 %v5077, %v5078
  %v5080 = vsel %vm4652, %v4299, -inf
  %v5081 = vsel %vm4652, %v4317, -inf
  %v5082 = vmax.f32 %v5080, %v5081
  %v5083 = vsel %vm4652, %v4335, -inf
  %v5084 = vmax.f32 %v5082, %v5083
  %v5085 = vsel %vm4652, %v4353, -inf
  %v5086 = vmax.f32 %v5084, %v5085
  %v5087 = vsel %vm4652, %v4300, -inf
  %v5088 = vsel %vm4652, %v4318, -inf
  %v5089 = vmax.f32 %v5087, %v5088
  %v5090 = vsel %vm4652, %v4336, -inf
  %v5091 = vmax.f32 %v5089, %v5090
  %v5092 = vsel %vm4652, %v4354, -inf
  %v5093 = vmax.f32 %v5091, %v5092
  %v5094 = vsel %vm4652, %v4301, -inf
  %v5095 = vsel %vm4652, %v4319, -inf
  %v5096 = vmax.f32 %v5094, %v5095
  %v5097 = vsel %vm4652, %v4337, -inf
  %v5098 = vmax.f32 %v5096, %v5097
  %v5099 = vsel %vm4652, %v4355, -inf
  %v5100 = vmax.f32 %v5098, %v5099
  %v5101 = vsel %vm4652, %v4302, -inf
  %v5102 = vsel %vm4652, %v4320, -inf
  %v5103 = vmax.f32 %v5101, %v5102
  %v5104 = vsel %vm4652, %v4338, -inf
  %v5105 = vmax.f32 %v5103, %v5104
  %v5106 = vsel %vm4652, %v4356, -inf
  %v5107 = vmax.f32 %v5105, %v5106
  %v5108 = vsel %vm4652, %v4303, -inf
  %v5109 = vsel %vm4652, %v4321, -inf
  %v5110 = vmax.f32 %v5108, %v5109
  %v5111 = vsel %vm4652, %v4339, -inf
  %v5112 = vmax.f32 %v5110, %v5111
  %v5113 = vsel %vm4652, %v4357, -inf
  %v5114 = vmax.f32 %v5112, %v5113
  %v5115 = vsel %vm4652, %v4304, -inf
  %v5116 = vsel %vm4652, %v4322, -inf
  %v5117 = vmax.f32 %v5115, %v5116
  %v5118 = vsel %vm4652, %v4340, -inf
  %v5119 = vmax.f32 %v5117, %v5118
  %v5120 = vsel %vm4652, %v4358, -inf
  %v5121 = vmax.f32 %v5119, %v5120
  %v5122 = vsel %vm4652, %v4305, -inf
  %v5123 = vsel %vm4652, %v4323, -inf
  %v5124 = vmax.f32 %v5122, %v5123
  %v5125 = vsel %vm4652, %v4341, -inf
  %v5126 = vmax.f32 %v5124, %v5125
  %v5127 = vsel %vm4652, %v4359, -inf
  %v5128 = vmax.f32 %v5126, %v5127
  %v5129 = vsel %vm4652, %v4306, -inf
  %v5130 = vsel %vm4652, %v4324, -inf
  %v5131 = vmax.f32 %v5129, %v5130
  %v5132 = vsel %vm4652, %v4342, -inf
  %v5133 = vmax.f32 %v5131, %v5132
  %v5134 = vsel %vm4652, %v4360, -inf
  %v5135 = vmax.f32 %v5133, %v5134
  %v5136 = vsel %vm4652, %v4307, -inf
  %v5137 = vsel %vm4652, %v4325, -inf
  %v5138 = vmax.f32 %v5136, %v5137
  %v5139 = vsel %vm4652, %v4343, -inf
  %v5140 = vmax.f32 %v5138, %v5139
  %v5141 = vsel %vm4652, %v4361, -inf
  %v5142 = vmax.f32 %v5140, %v5141
  %v5143 = vsel %vm4652, %v4308, -inf
  %v5144 = vsel %vm4652, %v4326, -inf
  %v5145 = vmax.f32 %v5143, %v5144
  %v5146 = vsel %vm4652, %v4344, -inf
  %v5147 = vmax.f32 %v5145, %v5146
  %v5148 = vsel %vm4652, %v4362, -inf
  %v5149 = vmax.f32 %v5147, %v5148
  %v5150 = vsel %vm4652, %v4309, -inf
  %v5151 = vsel %vm4652, %v4327, -inf
  %v5152 = vmax.f32 %v5150, %v5151
  %v5153 = vsel %vm4652, %v4345, -inf
  %v5154 = vmax.f32 %v5152, %v5153
  %v5155 = vsel %vm4652, %v4363, -inf
  %v5156 = vmax.f32 %v5154, %v5155
  %v5157 = vsel %vm4652, %v4364, -inf
  %v5158 = vsel %vm4652, %v4382, -inf
  %v5159 = vmax.f32 %v5157, %v5158
  %v5160 = vsel %vm4652, %v4400, -inf
  %v5161 = vmax.f32 %v5159, %v5160
  %v5162 = vsel %vm4652, %v4418, -inf
  %v5163 = vmax.f32 %v5161, %v5162
  %v5164 = vsel %vm4652, %v4365, -inf
  %v5165 = vsel %vm4652, %v4383, -inf
  %v5166 = vmax.f32 %v5164, %v5165
  %v5167 = vsel %vm4652, %v4401, -inf
  %v5168 = vmax.f32 %v5166, %v5167
  %v5169 = vsel %vm4652, %v4419, -inf
  %v5170 = vmax.f32 %v5168, %v5169
  %v5171 = vsel %vm4652, %v4366, -inf
  %v5172 = vsel %vm4652, %v4384, -inf
  %v5173 = vmax.f32 %v5171, %v5172
  %v5174 = vsel %vm4652, %v4402, -inf
  %v5175 = vmax.f32 %v5173, %v5174
  %v5176 = vsel %vm4652, %v4420, -inf
  %v5177 = vmax.f32 %v5175, %v5176
  %v5178 = vsel %vm4652, %v4367, -inf
  %v5179 = vsel %vm4652, %v4385, -inf
  %v5180 = vmax.f32 %v5178, %v5179
  %v5181 = vsel %vm4652, %v4403, -inf
  %v5182 = vmax.f32 %v5180, %v5181
  %v5183 = vsel %vm4652, %v4421, -inf
  %v5184 = vmax.f32 %v5182, %v5183
  %v5185 = vsel %vm4652, %v4368, -inf
  %v5186 = vsel %vm4652, %v4386, -inf
  %v5187 = vmax.f32 %v5185, %v5186
  %v5188 = vsel %vm4652, %v4404, -inf
  %v5189 = vmax.f32 %v5187, %v5188
  %v5190 = vsel %vm4652, %v4422, -inf
  %v5191 = vmax.f32 %v5189, %v5190
  %v5192 = vsel %vm4652, %v4369, -inf
  %v5193 = vsel %vm4652, %v4387, -inf
  %v5194 = vmax.f32 %v5192, %v5193
  %v5195 = vsel %vm4652, %v4405, -inf
  %v5196 = vmax.f32 %v5194, %v5195
  %v5197 = vsel %vm4652, %v4423, -inf
  %v5198 = vmax.f32 %v5196, %v5197
  %v5199 = vsel %vm4652, %v4370, -inf
  %v5200 = vsel %vm4652, %v4388, -inf
  %v5201 = vmax.f32 %v5199, %v5200
  %v5202 = vsel %vm4652, %v4406, -inf
  %v5203 = vmax.f32 %v5201, %v5202
  %v5204 = vsel %vm4652, %v4424, -inf
  %v5205 = vmax.f32 %v5203, %v5204
  %v5206 = vsel %vm4652, %v4371, -inf
  %v5207 = vsel %vm4652, %v4389, -inf
  %v5208 = vmax.f32 %v5206, %v5207
  %v5209 = vsel %vm4652, %v4407, -inf
  %v5210 = vmax.f32 %v5208, %v5209
  %v5211 = vsel %vm4652, %v4425, -inf
  %v5212 = vmax.f32 %v5210, %v5211
  %v5213 = vsel %vm4652, %v4372, -inf
  %v5214 = vsel %vm4652, %v4390, -inf
  %v5215 = vmax.f32 %v5213, %v5214
  %v5216 = vsel %vm4652, %v4408, -inf
  %v5217 = vmax.f32 %v5215, %v5216
  %v5218 = vsel %vm4652, %v4426, -inf
  %v5219 = vmax.f32 %v5217, %v5218
  %v5220 = vsel %vm4652, %v4373, -inf
  %v5221 = vsel %vm4652, %v4391, -inf
  %v5222 = vmax.f32 %v5220, %v5221
  %v5223 = vsel %vm4652, %v4409, -inf
  %v5224 = vmax.f32 %v5222, %v5223
  %v5225 = vsel %vm4652, %v4427, -inf
  %v5226 = vmax.f32 %v5224, %v5225
  %v5227 = vsel %vm4652, %v4374, -inf
  %v5228 = vsel %vm4652, %v4392, -inf
  %v5229 = vmax.f32 %v5227, %v5228
  %v5230 = vsel %vm4652, %v4410, -inf
  %v5231 = vmax.f32 %v5229, %v5230
  %v5232 = vsel %vm4652, %v4428, -inf
  %v5233 = vmax.f32 %v5231, %v5232
  %v5234 = vsel %vm4652, %v4375, -inf
  %v5235 = vsel %vm4652, %v4393, -inf
  %v5236 = vmax.f32 %v5234, %v5235
  %v5237 = vsel %vm4652, %v4411, -inf
  %v5238 = vmax.f32 %v5236, %v5237
  %v5239 = vsel %vm4652, %v4429, -inf
  %v5240 = vmax.f32 %v5238, %v5239
  %v5241 = vsel %vm4652, %v4376, -inf
  %v5242 = vsel %vm4652, %v4394, -inf
  %v5243 = vmax.f32 %v5241, %v5242
  %v5244 = vsel %vm4652, %v4412, -inf
  %v5245 = vmax.f32 %v5243, %v5244
  %v5246 = vsel %vm4652, %v4430, -inf
  %v5247 = vmax.f32 %v5245, %v5246
  %v5248 = vsel %vm4652, %v4377, -inf
  %v5249 = vsel %vm4652, %v4395, -inf
  %v5250 = vmax.f32 %v5248, %v5249
  %v5251 = vsel %vm4652, %v4413, -inf
  %v5252 = vmax.f32 %v5250, %v5251
  %v5253 = vsel %vm4652, %v4431, -inf
  %v5254 = vmax.f32 %v5252, %v5253
  %v5255 = vsel %vm4652, %v4378, -inf
  %v5256 = vsel %vm4652, %v4396, -inf
  %v5257 = vmax.f32 %v5255, %v5256
  %v5258 = vsel %vm4652, %v4414, -inf
  %v5259 = vmax.f32 %v5257, %v5258
  %v5260 = vsel %vm4652, %v4432, -inf
  %v5261 = vmax.f32 %v5259, %v5260
  %v5262 = vsel %vm4652, %v4379, -inf
  %v5263 = vsel %vm4652, %v4397, -inf
  %v5264 = vmax.f32 %v5262, %v5263
  %v5265 = vsel %vm4652, %v4415, -inf
  %v5266 = vmax.f32 %v5264, %v5265
  %v5267 = vsel %vm4652, %v4433, -inf
  %v5268 = vmax.f32 %v5266, %v5267
  %v5269 = vsel %vm4652, %v4380, -inf
  %v5270 = vsel %vm4652, %v4398, -inf
  %v5271 = vmax.f32 %v5269, %v5270
  %v5272 = vsel %vm4652, %v4416, -inf
  %v5273 = vmax.f32 %v5271, %v5272
  %v5274 = vsel %vm4652, %v4434, -inf
  %v5275 = vmax.f32 %v5273, %v5274
  %v5276 = vsel %vm4652, %v4381, -inf
  %v5277 = vsel %vm4652, %v4399, -inf
  %v5278 = vmax.f32 %v5276, %v5277
  %v5279 = vsel %vm4652, %v4417, -inf
  %v5280 = vmax.f32 %v5278, %v5279
  %v5281 = vsel %vm4652, %v4435, -inf
  %v5282 = vmax.f32 %v5280, %v5281
  %v5283 = vsel %vm4652, %v4436, -inf
  %v5284 = vsel %vm4652, %v4454, -inf
  %v5285 = vmax.f32 %v5283, %v5284
  %v5286 = vsel %vm4652, %v4472, -inf
  %v5287 = vmax.f32 %v5285, %v5286
  %v5288 = vsel %vm4652, %v4490, -inf
  %v5289 = vmax.f32 %v5287, %v5288
  %v5290 = vsel %vm4652, %v4437, -inf
  %v5291 = vsel %vm4652, %v4455, -inf
  %v5292 = vmax.f32 %v5290, %v5291
  %v5293 = vsel %vm4652, %v4473, -inf
  %v5294 = vmax.f32 %v5292, %v5293
  %v5295 = vsel %vm4652, %v4491, -inf
  %v5296 = vmax.f32 %v5294, %v5295
  %v5297 = vsel %vm4652, %v4438, -inf
  %v5298 = vsel %vm4652, %v4456, -inf
  %v5299 = vmax.f32 %v5297, %v5298
  %v5300 = vsel %vm4652, %v4474, -inf
  %v5301 = vmax.f32 %v5299, %v5300
  %v5302 = vsel %vm4652, %v4492, -inf
  %v5303 = vmax.f32 %v5301, %v5302
  %v5304 = vsel %vm4652, %v4439, -inf
  %v5305 = vsel %vm4652, %v4457, -inf
  %v5306 = vmax.f32 %v5304, %v5305
  %v5307 = vsel %vm4652, %v4475, -inf
  %v5308 = vmax.f32 %v5306, %v5307
  %v5309 = vsel %vm4652, %v4493, -inf
  %v5310 = vmax.f32 %v5308, %v5309
  %v5311 = vsel %vm4652, %v4440, -inf
  %v5312 = vsel %vm4652, %v4458, -inf
  %v5313 = vmax.f32 %v5311, %v5312
  %v5314 = vsel %vm4652, %v4476, -inf
  %v5315 = vmax.f32 %v5313, %v5314
  %v5316 = vsel %vm4652, %v4494, -inf
  %v5317 = vmax.f32 %v5315, %v5316
  %v5318 = vsel %vm4652, %v4441, -inf
  %v5319 = vsel %vm4652, %v4459, -inf
  %v5320 = vmax.f32 %v5318, %v5319
  %v5321 = vsel %vm4652, %v4477, -inf
  %v5322 = vmax.f32 %v5320, %v5321
  %v5323 = vsel %vm4652, %v4495, -inf
  %v5324 = vmax.f32 %v5322, %v5323
  %v5325 = vsel %vm4652, %v4442, -inf
  %v5326 = vsel %vm4652, %v4460, -inf
  %v5327 = vmax.f32 %v5325, %v5326
  %v5328 = vsel %vm4652, %v4478, -inf
  %v5329 = vmax.f32 %v5327, %v5328
  %v5330 = vsel %vm4652, %v4496, -inf
  %v5331 = vmax.f32 %v5329, %v5330
  %v5332 = vsel %vm4652, %v4443, -inf
  %v5333 = vsel %vm4652, %v4461, -inf
  %v5334 = vmax.f32 %v5332, %v5333
  %v5335 = vsel %vm4652, %v4479, -inf
  %v5336 = vmax.f32 %v5334, %v5335
  %v5337 = vsel %vm4652, %v4497, -inf
  %v5338 = vmax.f32 %v5336, %v5337
  %v5339 = vsel %vm4652, %v4444, -inf
  %v5340 = vsel %vm4652, %v4462, -inf
  %v5341 = vmax.f32 %v5339, %v5340
  %v5342 = vsel %vm4652, %v4480, -inf
  %v5343 = vmax.f32 %v5341, %v5342
  %v5344 = vsel %vm4652, %v4498, -inf
  %v5345 = vmax.f32 %v5343, %v5344
  %v5346 = vsel %vm4652, %v4445, -inf
  %v5347 = vsel %vm4652, %v4463, -inf
  %v5348 = vmax.f32 %v5346, %v5347
  %v5349 = vsel %vm4652, %v4481, -inf
  %v5350 = vmax.f32 %v5348, %v5349
  %v5351 = vsel %vm4652, %v4499, -inf
  %v5352 = vmax.f32 %v5350, %v5351
  %v5353 = vsel %vm4652, %v4446, -inf
  %v5354 = vsel %vm4652, %v4464, -inf
  %v5355 = vmax.f32 %v5353, %v5354
  %v5356 = vsel %vm4652, %v4482, -inf
  %v5357 = vmax.f32 %v5355, %v5356
  %v5358 = vsel %vm4652, %v4500, -inf
  %v5359 = vmax.f32 %v5357, %v5358
  %v5360 = vsel %vm4652, %v4447, -inf
  %v5361 = vsel %vm4652, %v4465, -inf
  %v5362 = vmax.f32 %v5360, %v5361
  %v5363 = vsel %vm4652, %v4483, -inf
  %v5364 = vmax.f32 %v5362, %v5363
  %v5365 = vsel %vm4652, %v4501, -inf
  %v5366 = vmax.f32 %v5364, %v5365
  %v5367 = vsel %vm4652, %v4448, -inf
  %v5368 = vsel %vm4652, %v4466, -inf
  %v5369 = vmax.f32 %v5367, %v5368
  %v5370 = vsel %vm4652, %v4484, -inf
  %v5371 = vmax.f32 %v5369, %v5370
  %v5372 = vsel %vm4652, %v4502, -inf
  %v5373 = vmax.f32 %v5371, %v5372
  %v5374 = vsel %vm4652, %v4449, -inf
  %v5375 = vsel %vm4652, %v4467, -inf
  %v5376 = vmax.f32 %v5374, %v5375
  %v5377 = vsel %vm4652, %v4485, -inf
  %v5378 = vmax.f32 %v5376, %v5377
  %v5379 = vsel %vm4652, %v4503, -inf
  %v5380 = vmax.f32 %v5378, %v5379
  %v5381 = vsel %vm4652, %v4450, -inf
  %v5382 = vsel %vm4652, %v4468, -inf
  %v5383 = vmax.f32 %v5381, %v5382
  %v5384 = vsel %vm4652, %v4486, -inf
  %v5385 = vmax.f32 %v5383, %v5384
  %v5386 = vsel %vm4652, %v4504, -inf
  %v5387 = vmax.f32 %v5385, %v5386
  %v5388 = vsel %vm4652, %v4451, -inf
  %v5389 = vsel %vm4652, %v4469, -inf
  %v5390 = vmax.f32 %v5388, %v5389
  %v5391 = vsel %vm4652, %v4487, -inf
  %v5392 = vmax.f32 %v5390, %v5391
  %v5393 = vsel %vm4652, %v4505, -inf
  %v5394 = vmax.f32 %v5392, %v5393
  %v5395 = vsel %vm4652, %v4452, -inf
  %v5396 = vsel %vm4652, %v4470, -inf
  %v5397 = vmax.f32 %v5395, %v5396
  %v5398 = vsel %vm4652, %v4488, -inf
  %v5399 = vmax.f32 %v5397, %v5398
  %v5400 = vsel %vm4652, %v4506, -inf
  %v5401 = vmax.f32 %v5399, %v5400
  %v5402 = vsel %vm4652, %v4453, -inf
  %v5403 = vsel %vm4652, %v4471, -inf
  %v5404 = vmax.f32 %v5402, %v5403
  %v5405 = vsel %vm4652, %v4489, -inf
  %v5406 = vmax.f32 %v5404, %v5405
  %v5407 = vsel %vm4652, %v4507, -inf
  %v5408 = vmax.f32 %v5406, %v5407
  %v5409 = vsel %vm4652, %v4508, -inf
  %v5410 = vsel %vm4652, %v4526, -inf
  %v5411 = vmax.f32 %v5409, %v5410
  %v5412 = vsel %vm4652, %v4544, -inf
  %v5413 = vmax.f32 %v5411, %v5412
  %v5414 = vsel %vm4652, %v4562, -inf
  %v5415 = vmax.f32 %v5413, %v5414
  %v5416 = vsel %vm4652, %v4509, -inf
  %v5417 = vsel %vm4652, %v4527, -inf
  %v5418 = vmax.f32 %v5416, %v5417
  %v5419 = vsel %vm4652, %v4545, -inf
  %v5420 = vmax.f32 %v5418, %v5419
  %v5421 = vsel %vm4652, %v4563, -inf
  %v5422 = vmax.f32 %v5420, %v5421
  %v5423 = vsel %vm4652, %v4510, -inf
  %v5424 = vsel %vm4652, %v4528, -inf
  %v5425 = vmax.f32 %v5423, %v5424
  %v5426 = vsel %vm4652, %v4546, -inf
  %v5427 = vmax.f32 %v5425, %v5426
  %v5428 = vsel %vm4652, %v4564, -inf
  %v5429 = vmax.f32 %v5427, %v5428
  %v5430 = vsel %vm4652, %v4511, -inf
  %v5431 = vsel %vm4652, %v4529, -inf
  %v5432 = vmax.f32 %v5430, %v5431
  %v5433 = vsel %vm4652, %v4547, -inf
  %v5434 = vmax.f32 %v5432, %v5433
  %v5435 = vsel %vm4652, %v4565, -inf
  %v5436 = vmax.f32 %v5434, %v5435
  %v5437 = vsel %vm4652, %v4512, -inf
  %v5438 = vsel %vm4652, %v4530, -inf
  %v5439 = vmax.f32 %v5437, %v5438
  %v5440 = vsel %vm4652, %v4548, -inf
  %v5441 = vmax.f32 %v5439, %v5440
  %v5442 = vsel %vm4652, %v4566, -inf
  %v5443 = vmax.f32 %v5441, %v5442
  %v5444 = vsel %vm4652, %v4513, -inf
  %v5445 = vsel %vm4652, %v4531, -inf
  %v5446 = vmax.f32 %v5444, %v5445
  %v5447 = vsel %vm4652, %v4549, -inf
  %v5448 = vmax.f32 %v5446, %v5447
  %v5449 = vsel %vm4652, %v4567, -inf
  %v5450 = vmax.f32 %v5448, %v5449
  %v5451 = vsel %vm4652, %v4514, -inf
  %v5452 = vsel %vm4652, %v4532, -inf
  %v5453 = vmax.f32 %v5451, %v5452
  %v5454 = vsel %vm4652, %v4550, -inf
  %v5455 = vmax.f32 %v5453, %v5454
  %v5456 = vsel %vm4652, %v4568, -inf
  %v5457 = vmax.f32 %v5455, %v5456
  %v5458 = vsel %vm4652, %v4515, -inf
  %v5459 = vsel %vm4652, %v4533, -inf
  %v5460 = vmax.f32 %v5458, %v5459
  %v5461 = vsel %vm4652, %v4551, -inf
  %v5462 = vmax.f32 %v5460, %v5461
  %v5463 = vsel %vm4652, %v4569, -inf
  %v5464 = vmax.f32 %v5462, %v5463
  %v5465 = vsel %vm4652, %v4516, -inf
  %v5466 = vsel %vm4652, %v4534, -inf
  %v5467 = vmax.f32 %v5465, %v5466
  %v5468 = vsel %vm4652, %v4552, -inf
  %v5469 = vmax.f32 %v5467, %v5468
  %v5470 = vsel %vm4652, %v4570, -inf
  %v5471 = vmax.f32 %v5469, %v5470
  %v5472 = vsel %vm4652, %v4517, -inf
  %v5473 = vsel %vm4652, %v4535, -inf
  %v5474 = vmax.f32 %v5472, %v5473
  %v5475 = vsel %vm4652, %v4553, -inf
  %v5476 = vmax.f32 %v5474, %v5475
  %v5477 = vsel %vm4652, %v4571, -inf
  %v5478 = vmax.f32 %v5476, %v5477
  %v5479 = vsel %vm4652, %v4518, -inf
  %v5480 = vsel %vm4652, %v4536, -inf
  %v5481 = vmax.f32 %v5479, %v5480
  %v5482 = vsel %vm4652, %v4554, -inf
  %v5483 = vmax.f32 %v5481, %v5482
  %v5484 = vsel %vm4652, %v4572, -inf
  %v5485 = vmax.f32 %v5483, %v5484
  %v5486 = vsel %vm4652, %v4519, -inf
  %v5487 = vsel %vm4652, %v4537, -inf
  %v5488 = vmax.f32 %v5486, %v5487
  %v5489 = vsel %vm4652, %v4555, -inf
  %v5490 = vmax.f32 %v5488, %v5489
  %v5491 = vsel %vm4652, %v4573, -inf
  %v5492 = vmax.f32 %v5490, %v5491
  %v5493 = vsel %vm4652, %v4520, -inf
  %v5494 = vsel %vm4652, %v4538, -inf
  %v5495 = vmax.f32 %v5493, %v5494
  %v5496 = vsel %vm4652, %v4556, -inf
  %v5497 = vmax.f32 %v5495, %v5496
  %v5498 = vsel %vm4652, %v4574, -inf
  %v5499 = vmax.f32 %v5497, %v5498
  %v5500 = vsel %vm4652, %v4521, -inf
  %v5501 = vsel %vm4652, %v4539, -inf
  %v5502 = vmax.f32 %v5500, %v5501
  %v5503 = vsel %vm4652, %v4557, -inf
  %v5504 = vmax.f32 %v5502, %v5503
  %v5505 = vsel %vm4652, %v4575, -inf
  %v5506 = vmax.f32 %v5504, %v5505
  %v5507 = vsel %vm4652, %v4522, -inf
  %v5508 = vsel %vm4652, %v4540, -inf
  %v5509 = vmax.f32 %v5507, %v5508
  %v5510 = vsel %vm4652, %v4558, -inf
  %v5511 = vmax.f32 %v5509, %v5510
  %v5512 = vsel %vm4652, %v4576, -inf
  %v5513 = vmax.f32 %v5511, %v5512
  %v5514 = vsel %vm4652, %v4523, -inf
  %v5515 = vsel %vm4652, %v4541, -inf
  %v5516 = vmax.f32 %v5514, %v5515
  %v5517 = vsel %vm4652, %v4559, -inf
  %v5518 = vmax.f32 %v5516, %v5517
  %v5519 = vsel %vm4652, %v4577, -inf
  %v5520 = vmax.f32 %v5518, %v5519
  %v5521 = vsel %vm4652, %v4524, -inf
  %v5522 = vsel %vm4652, %v4542, -inf
  %v5523 = vmax.f32 %v5521, %v5522
  %v5524 = vsel %vm4652, %v4560, -inf
  %v5525 = vmax.f32 %v5523, %v5524
  %v5526 = vsel %vm4652, %v4578, -inf
  %v5527 = vmax.f32 %v5525, %v5526
  %v5528 = vsel %vm4652, %v4525, -inf
  %v5529 = vsel %vm4652, %v4543, -inf
  %v5530 = vmax.f32 %v5528, %v5529
  %v5531 = vsel %vm4652, %v4561, -inf
  %v5532 = vmax.f32 %v5530, %v5531
  %v5533 = vsel %vm4652, %v4579, -inf
  %v5534 = vmax.f32 %v5532, %v5533
  %v5535 = vsel %vm4652, %v4580, -inf
  %v5536 = vsel %vm4652, %v4598, -inf
  %v5537 = vmax.f32 %v5535, %v5536
  %v5538 = vsel %vm4652, %v4616, -inf
  %v5539 = vmax.f32 %v5537, %v5538
  %v5540 = vsel %vm4652, %v4634, -inf
  %v5541 = vmax.f32 %v5539, %v5540
  %v5542 = vsel %vm4652, %v4581, -inf
  %v5543 = vsel %vm4652, %v4599, -inf
  %v5544 = vmax.f32 %v5542, %v5543
  %v5545 = vsel %vm4652, %v4617, -inf
  %v5546 = vmax.f32 %v5544, %v5545
  %v5547 = vsel %vm4652, %v4635, -inf
  %v5548 = vmax.f32 %v5546, %v5547
  %v5549 = vsel %vm4652, %v4582, -inf
  %v5550 = vsel %vm4652, %v4600, -inf
  %v5551 = vmax.f32 %v5549, %v5550
  %v5552 = vsel %vm4652, %v4618, -inf
  %v5553 = vmax.f32 %v5551, %v5552
  %v5554 = vsel %vm4652, %v4636, -inf
  %v5555 = vmax.f32 %v5553, %v5554
  %v5556 = vsel %vm4652, %v4583, -inf
  %v5557 = vsel %vm4652, %v4601, -inf
  %v5558 = vmax.f32 %v5556, %v5557
  %v5559 = vsel %vm4652, %v4619, -inf
  %v5560 = vmax.f32 %v5558, %v5559
  %v5561 = vsel %vm4652, %v4637, -inf
  %v5562 = vmax.f32 %v5560, %v5561
  %v5563 = vsel %vm4652, %v4584, -inf
  %v5564 = vsel %vm4652, %v4602, -inf
  %v5565 = vmax.f32 %v5563, %v5564
  %v5566 = vsel %vm4652, %v4620, -inf
  %v5567 = vmax.f32 %v5565, %v5566
  %v5568 = vsel %vm4652, %v4638, -inf
  %v5569 = vmax.f32 %v5567, %v5568
  %v5570 = vsel %vm4652, %v4585, -inf
  %v5571 = vsel %vm4652, %v4603, -inf
  %v5572 = vmax.f32 %v5570, %v5571
  %v5573 = vsel %vm4652, %v4621, -inf
  %v5574 = vmax.f32 %v5572, %v5573
  %v5575 = vsel %vm4652, %v4639, -inf
  %v5576 = vmax.f32 %v5574, %v5575
  %v5577 = vsel %vm4652, %v4586, -inf
  %v5578 = vsel %vm4652, %v4604, -inf
  %v5579 = vmax.f32 %v5577, %v5578
  %v5580 = vsel %vm4652, %v4622, -inf
  %v5581 = vmax.f32 %v5579, %v5580
  %v5582 = vsel %vm4652, %v4640, -inf
  %v5583 = vmax.f32 %v5581, %v5582
  %v5584 = vsel %vm4652, %v4587, -inf
  %v5585 = vsel %vm4652, %v4605, -inf
  %v5586 = vmax.f32 %v5584, %v5585
  %v5587 = vsel %vm4652, %v4623, -inf
  %v5588 = vmax.f32 %v5586, %v5587
  %v5589 = vsel %vm4652, %v4641, -inf
  %v5590 = vmax.f32 %v5588, %v5589
  %v5591 = vsel %vm4652, %v4588, -inf
  %v5592 = vsel %vm4652, %v4606, -inf
  %v5593 = vmax.f32 %v5591, %v5592
  %v5594 = vsel %vm4652, %v4624, -inf
  %v5595 = vmax.f32 %v5593, %v5594
  %v5596 = vsel %vm4652, %v4642, -inf
  %v5597 = vmax.f32 %v5595, %v5596
  %v5598 = vsel %vm4652, %v4589, -inf
  %v5599 = vsel %vm4652, %v4607, -inf
  %v5600 = vmax.f32 %v5598, %v5599
  %v5601 = vsel %vm4652, %v4625, -inf
  %v5602 = vmax.f32 %v5600, %v5601
  %v5603 = vsel %vm4652, %v4643, -inf
  %v5604 = vmax.f32 %v5602, %v5603
  %v5605 = vsel %vm4652, %v4590, -inf
  %v5606 = vsel %vm4652, %v4608, -inf
  %v5607 = vmax.f32 %v5605, %v5606
  %v5608 = vsel %vm4652, %v4626, -inf
  %v5609 = vmax.f32 %v5607, %v5608
  %v5610 = vsel %vm4652, %v4644, -inf
  %v5611 = vmax.f32 %v5609, %v5610
  %v5612 = vsel %vm4652, %v4591, -inf
  %v5613 = vsel %vm4652, %v4609, -inf
  %v5614 = vmax.f32 %v5612, %v5613
  %v5615 = vsel %vm4652, %v4627, -inf
  %v5616 = vmax.f32 %v5614, %v5615
  %v5617 = vsel %vm4652, %v4645, -inf
  %v5618 = vmax.f32 %v5616, %v5617
  %v5619 = vsel %vm4652, %v4592, -inf
  %v5620 = vsel %vm4652, %v4610, -inf
  %v5621 = vmax.f32 %v5619, %v5620
  %v5622 = vsel %vm4652, %v4628, -inf
  %v5623 = vmax.f32 %v5621, %v5622
  %v5624 = vsel %vm4652, %v4646, -inf
  %v5625 = vmax.f32 %v5623, %v5624
  %v5626 = vsel %vm4652, %v4593, -inf
  %v5627 = vsel %vm4652, %v4611, -inf
  %v5628 = vmax.f32 %v5626, %v5627
  %v5629 = vsel %vm4652, %v4629, -inf
  %v5630 = vmax.f32 %v5628, %v5629
  %v5631 = vsel %vm4652, %v4647, -inf
  %v5632 = vmax.f32 %v5630, %v5631
  %v5633 = vsel %vm4652, %v4594, -inf
  %v5634 = vsel %vm4652, %v4612, -inf
  %v5635 = vmax.f32 %v5633, %v5634
  %v5636 = vsel %vm4652, %v4630, -inf
  %v5637 = vmax.f32 %v5635, %v5636
  %v5638 = vsel %vm4652, %v4648, -inf
  %v5639 = vmax.f32 %v5637, %v5638
  %v5640 = vsel %vm4652, %v4595, -inf
  %v5641 = vsel %vm4652, %v4613, -inf
  %v5642 = vmax.f32 %v5640, %v5641
  %v5643 = vsel %vm4652, %v4631, -inf
  %v5644 = vmax.f32 %v5642, %v5643
  %v5645 = vsel %vm4652, %v4649, -inf
  %v5646 = vmax.f32 %v5644, %v5645
  %v5647 = vsel %vm4652, %v4596, -inf
  %v5648 = vsel %vm4652, %v4614, -inf
  %v5649 = vmax.f32 %v5647, %v5648
  %v5650 = vsel %vm4652, %v4632, -inf
  %v5651 = vmax.f32 %v5649, %v5650
  %v5652 = vsel %vm4652, %v4650, -inf
  %v5653 = vmax.f32 %v5651, %v5652
  %v5654 = vsel %vm4652, %v4597, -inf
  %v5655 = vsel %vm4652, %v4615, -inf
  %v5656 = vmax.f32 %v5654, %v5655
  %v5657 = vsel %vm4652, %v4633, -inf
  %v5658 = vmax.f32 %v5656, %v5657
  %v5659 = vsel %vm4652, %v4651, -inf
  %v5660 = vmax.f32 %v5658, %v5659
  %5661 = vst.msk [vmem:[%s3] sm:$0xff] %vm4652, %v4659
  %5662 = vst.msk [vmem:[%s3 + $0x8] sm:$0xff] %vm4652, %v4666
  %5663 = vst.msk [vmem:[%s3 + $0x10] sm:$0xff] %vm4652, %v4673
  %5664 = vst.msk [vmem:[%s3 + $0x18] sm:$0xff] %vm4652, %v4680
  %5665 = vst.msk [vmem:[%s3 + $0x20] sm:$0xff] %vm4652, %v4687
  %5666 = vst.msk [vmem:[%s3 + $0x28] sm:$0xff] %vm4652, %v4694
  %5667 = vst.msk [vmem:[%s3 + $0x30] sm:$0xff] %vm4652, %v4701
  %5668 = vst.msk [vmem:[%s3 + $0x38] sm:$0xff] %vm4652, %v4708
  %5669 = vst.msk [vmem:[%s3 + $0x40] sm:$0xff] %vm4652, %v4715
  %5670 = vst.msk [vmem:[%s3 + $0x48] sm:$0xff] %vm4652, %v4722
  %5671 = vst.msk [vmem:[%s3 + $0x50] sm:$0xff] %vm4652, %v4729
  %5672 = vst.msk [vmem:[%s3 + $0x58] sm:$0xff] %vm4652, %v4736
  %5673 = vst.msk [vmem:[%s3 + $0x60] sm:$0xff] %vm4652, %v4743
  %5674 = vst.msk [vmem:[%s3 + $0x68] sm:$0xff] %vm4652, %v4750
  %5675 = vst.msk [vmem:[%s3 + $0x70] sm:$0xff] %vm4652, %v4757
  %5676 = vst.msk [vmem:[%s3 + $0x78] sm:$0xff] %vm4652, %v4764
  %5677 = vst.msk [vmem:[%s3 + $0x80] sm:$0xff] %vm4652, %v4771
  %5678 = vst.msk [vmem:[%s3 + $0x88] sm:$0xff] %vm4652, %v4778
  %5679 = vst.msk [vmem:[%s3 + $0x90] sm:$0xff] %vm4652, %v4785
  %5680 = vst.msk [vmem:[%s3 + $0x98] sm:$0xff] %vm4652, %v4792
  %5681 = vst.msk [vmem:[%s3 + $0xa0] sm:$0xff] %vm4652, %v4799
  %5682 = vst.msk [vmem:[%s3 + $0xa8] sm:$0xff] %vm4652, %v4806
  %5683 = vst.msk [vmem:[%s3 + $0xb0] sm:$0xff] %vm4652, %v4813
  %5684 = vst.msk [vmem:[%s3 + $0xb8] sm:$0xff] %vm4652, %v4820
  %5685 = vst.msk [vmem:[%s3 + $0xc0] sm:$0xff] %vm4652, %v4827
  %5686 = vst.msk [vmem:[%s3 + $0xc8] sm:$0xff] %vm4652, %v4834
  %5687 = vst.msk [vmem:[%s3 + $0xd0] sm:$0xff] %vm4652, %v4841
  %5688 = vst.msk [vmem:[%s3 + $0xd8] sm:$0xff] %vm4652, %v4848
  %5689 = vst.msk [vmem:[%s3 + $0xe0] sm:$0xff] %vm4652, %v4855
  %5690 = vst.msk [vmem:[%s3 + $0xe8] sm:$0xff] %vm4652, %v4862
  %5691 = vst.msk [vmem:[%s3 + $0xf0] sm:$0xff] %vm4652, %v4869
  %5692 = vst.msk [vmem:[%s3 + $0xf8] sm:$0xff] %vm4652, %v4876
  %5693 = vst.msk [vmem:[%s3 + $0x100] sm:$0xff] %vm4652, %v4883
  %5694 = vst.msk [vmem:[%s3 + $0x108] sm:$0xff] %vm4652, %v4890
  %5695 = vst.msk [vmem:[%s3 + $0x110] sm:$0xff] %vm4652, %v4897
  %5696 = vst.msk [vmem:[%s3 + $0x118] sm:$0xff] %vm4652, %v4904
  %5697 = vst.msk [vmem:[%s3 + $0x120] sm:$0xff] %vm4652, %v4911
  %5698 = vst.msk [vmem:[%s3 + $0x128] sm:$0xff] %vm4652, %v4918
  %5699 = vst.msk [vmem:[%s3 + $0x130] sm:$0xff] %vm4652, %v4925
  %5700 = vst.msk [vmem:[%s3 + $0x138] sm:$0xff] %vm4652, %v4932
  %5701 = vst.msk [vmem:[%s3 + $0x140] sm:$0xff] %vm4652, %v4939
  %5702 = vst.msk [vmem:[%s3 + $0x148] sm:$0xff] %vm4652, %v4946
  %5703 = vst.msk [vmem:[%s3 + $0x150] sm:$0xff] %vm4652, %v4953
  %5704 = vst.msk [vmem:[%s3 + $0x158] sm:$0xff] %vm4652, %v4960
  %5705 = vst.msk [vmem:[%s3 + $0x160] sm:$0xff] %vm4652, %v4967
  %5706 = vst.msk [vmem:[%s3 + $0x168] sm:$0xff] %vm4652, %v4974
  %5707 = vst.msk [vmem:[%s3 + $0x170] sm:$0xff] %vm4652, %v4981
  %5708 = vst.msk [vmem:[%s3 + $0x178] sm:$0xff] %vm4652, %v4988
  %5709 = vst.msk [vmem:[%s3 + $0x180] sm:$0xff] %vm4652, %v4995
  %5710 = vst.msk [vmem:[%s3 + $0x188] sm:$0xff] %vm4652, %v5002
  %5711 = vst.msk [vmem:[%s3 + $0x190] sm:$0xff] %vm4652, %v5009
  %5712 = vst.msk [vmem:[%s3 + $0x198] sm:$0xff] %vm4652, %v5016
  %5713 = vst.msk [vmem:[%s3 + $0x1a0] sm:$0xff] %vm4652, %v5023
  %5714 = vst.msk [vmem:[%s3 + $0x1a8] sm:$0xff] %vm4652, %v5030
  %5715 = vst.msk [vmem:[%s3 + $0x1b0] sm:$0xff] %vm4652, %v5037
  %5716 = vst.msk [vmem:[%s3 + $0x1b8] sm:$0xff] %vm4652, %v5044
  %5717 = vst.msk [vmem:[%s3 + $0x1c0] sm:$0xff] %vm4652, %v5051
  %5718 = vst.msk [vmem:[%s3 + $0x1c8] sm:$0xff] %vm4652, %v5058
  %5719 = vst.msk [vmem:[%s3 + $0x1d0] sm:$0xff] %vm4652, %v5065
  %5720 = vst.msk [vmem:[%s3 + $0x1d8] sm:$0xff] %vm4652, %v5072
  %5721 = vst.msk [vmem:[%s3 + $0x1e0] sm:$0xff] %vm4652, %v5079
  %5722 = vst.msk [vmem:[%s3 + $0x1e8] sm:$0xff] %vm4652, %v5086
  %5723 = vst.msk [vmem:[%s3 + $0x1f0] sm:$0xff] %vm4652, %v5093
  %5724 = vst.msk [vmem:[%s3 + $0x1f8] sm:$0xff] %vm4652, %v5100
  %5725 = vst.msk [vmem:[%s3 + $0x200] sm:$0xff] %vm4652, %v5107
  %5726 = vst.msk [vmem:[%s3 + $0x208] sm:$0xff] %vm4652, %v5114
  %5727 = vst.msk [vmem:[%s3 + $0x210] sm:$0xff] %vm4652, %v5121
  %5728 = vst.msk [vmem:[%s3 + $0x218] sm:$0xff] %vm4652, %v5128
  %5729 = vst.msk [vmem:[%s3 + $0x220] sm:$0xff] %vm4652, %v5135
  %5730 = vst.msk [vmem:[%s3 + $0x228] sm:$0xff] %vm4652, %v5142
  %5731 = vst.msk [vmem:[%s3 + $0x230] sm:$0xff] %vm4652, %v5149
  %5732 = vst.msk [vmem:[%s3 + $0x238] sm:$0xff] %vm4652, %v5156
  %5733 = vst.msk [vmem:[%s3 + $0x240] sm:$0xff] %vm4652, %v5163
  %5734 = vst.msk [vmem:[%s3 + $0x248] sm:$0xff] %vm4652, %v5170
  %5735 = vst.msk [vmem:[%s3 + $0x250] sm:$0xff] %vm4652, %v5177
  %5736 = vst.msk [vmem:[%s3 + $0x258] sm:$0xff] %vm4652, %v5184
  %5737 = vst.msk [vmem:[%s3 + $0x260] sm:$0xff] %vm4652, %v5191
  %5738 = vst.msk [vmem:[%s3 + $0x268] sm:$0xff] %vm4652, %v5198
  %5739 = vst.msk [vmem:[%s3 + $0x270] sm:$0xff] %vm4652, %v5205
  %5740 = vst.msk [vmem:[%s3 + $0x278] sm:$0xff] %vm4652, %v5212
  %5741 = vst.msk [vmem:[%s3 + $0x280] sm:$0xff] %vm4652, %v5219
  %5742 = vst.msk [vmem:[%s3 + $0x288] sm:$0xff] %vm4652, %v5226
  %5743 = vst.msk [vmem:[%s3 + $0x290] sm:$0xff] %vm4652, %v5233
  %5744 = vst.msk [vmem:[%s3 + $0x298] sm:$0xff] %vm4652, %v5240
  %5745 = vst.msk [vmem:[%s3 + $0x2a0] sm:$0xff] %vm4652, %v5247
  %5746 = vst.msk [vmem:[%s3 + $0x2a8] sm:$0xff] %vm4652, %v5254
  %5747 = vst.msk [vmem:[%s3 + $0x2b0] sm:$0xff] %vm4652, %v5261
  %5748 = vst.msk [vmem:[%s3 + $0x2b8] sm:$0xff] %vm4652, %v5268
  %5749 = vst.msk [vmem:[%s3 + $0x2c0] sm:$0xff] %vm4652, %v5275
  %5750 = vst.msk [vmem:[%s3 + $0x2c8] sm:$0xff] %vm4652, %v5282
  %5751 = vst.msk [vmem:[%s3 + $0x2d0] sm:$0xff] %vm4652, %v5289
  %5752 = vst.msk [vmem:[%s3 + $0x2d8] sm:$0xff] %vm4652, %v5296
  %5753 = vst.msk [vmem:[%s3 + $0x2e0] sm:$0xff] %vm4652, %v5303
  %5754 = vst.msk [vmem:[%s3 + $0x2e8] sm:$0xff] %vm4652, %v5310
  %5755 = vst.msk [vmem:[%s3 + $0x2f0] sm:$0xff] %vm4652, %v5317
  %5756 = vst.msk [vmem:[%s3 + $0x2f8] sm:$0xff] %vm4652, %v5324
  %5757 = vst.msk [vmem:[%s3 + $0x300] sm:$0xff] %vm4652, %v5331
  %5758 = vst.msk [vmem:[%s3 + $0x308] sm:$0xff] %vm4652, %v5338
  %5759 = vst.msk [vmem:[%s3 + $0x310] sm:$0xff] %vm4652, %v5345
  %5760 = vst.msk [vmem:[%s3 + $0x318] sm:$0xff] %vm4652, %v5352
  %5761 = vst.msk [vmem:[%s3 + $0x320] sm:$0xff] %vm4652, %v5359
  %5762 = vst.msk [vmem:[%s3 + $0x328] sm:$0xff] %vm4652, %v5366
  %5763 = vst.msk [vmem:[%s3 + $0x330] sm:$0xff] %vm4652, %v5373
  %5764 = vst.msk [vmem:[%s3 + $0x338] sm:$0xff] %vm4652, %v5380
  %5765 = vst.msk [vmem:[%s3 + $0x340] sm:$0xff] %vm4652, %v5387
  %5766 = vst.msk [vmem:[%s3 + $0x348] sm:$0xff] %vm4652, %v5394
  %5767 = vst.msk [vmem:[%s3 + $0x350] sm:$0xff] %vm4652, %v5401
  %5768 = vst.msk [vmem:[%s3 + $0x358] sm:$0xff] %vm4652, %v5408
  %5769 = vst.msk [vmem:[%s3 + $0x360] sm:$0xff] %vm4652, %v5415
  %5770 = vst.msk [vmem:[%s3 + $0x368] sm:$0xff] %vm4652, %v5422
  %5771 = vst.msk [vmem:[%s3 + $0x370] sm:$0xff] %vm4652, %v5429
  %5772 = vst.msk [vmem:[%s3 + $0x378] sm:$0xff] %vm4652, %v5436
  %5773 = vst.msk [vmem:[%s3 + $0x380] sm:$0xff] %vm4652, %v5443
  %5774 = vst.msk [vmem:[%s3 + $0x388] sm:$0xff] %vm4652, %v5450
  %5775 = vst.msk [vmem:[%s3 + $0x390] sm:$0xff] %vm4652, %v5457
  %5776 = vst.msk [vmem:[%s3 + $0x398] sm:$0xff] %vm4652, %v5464
  %5777 = vst.msk [vmem:[%s3 + $0x3a0] sm:$0xff] %vm4652, %v5471
  %5778 = vst.msk [vmem:[%s3 + $0x3a8] sm:$0xff] %vm4652, %v5478
  %5779 = vst.msk [vmem:[%s3 + $0x3b0] sm:$0xff] %vm4652, %v5485
  %5780 = vst.msk [vmem:[%s3 + $0x3b8] sm:$0xff] %vm4652, %v5492
  %5781 = vst.msk [vmem:[%s3 + $0x3c0] sm:$0xff] %vm4652, %v5499
  %5782 = vst.msk [vmem:[%s3 + $0x3c8] sm:$0xff] %vm4652, %v5506
  %5783 = vst.msk [vmem:[%s3 + $0x3d0] sm:$0xff] %vm4652, %v5513
  %5784 = vst.msk [vmem:[%s3 + $0x3d8] sm:$0xff] %vm4652, %v5520
  %5785 = vst.msk [vmem:[%s3 + $0x3e0] sm:$0xff] %vm4652, %v5527
  %5786 = vst.msk [vmem:[%s3 + $0x3e8] sm:$0xff] %vm4652, %v5534
  %5787 = vst.msk [vmem:[%s3 + $0x3f0] sm:$0xff] %vm4652, %v5541
  %5788 = vst.msk [vmem:[%s3 + $0x3f8] sm:$0xff] %vm4652, %v5548
  %5789 = vst.msk [vmem:[%s3 + $0x400] sm:$0xff] %vm4652, %v5555
  %5790 = vst.msk [vmem:[%s3 + $0x408] sm:$0xff] %vm4652, %v5562
  %5791 = vst.msk [vmem:[%s3 + $0x410] sm:$0xff] %vm4652, %v5569
  %5792 = vst.msk [vmem:[%s3 + $0x418] sm:$0xff] %vm4652, %v5576
  %5793 = vst.msk [vmem:[%s3 + $0x420] sm:$0xff] %vm4652, %v5583
  %5794 = vst.msk [vmem:[%s3 + $0x428] sm:$0xff] %vm4652, %v5590
  %5795 = vst.msk [vmem:[%s3 + $0x430] sm:$0xff] %vm4652, %v5597
  %5796 = vst.msk [vmem:[%s3 + $0x438] sm:$0xff] %vm4652, %v5604
  %5797 = vst.msk [vmem:[%s3 + $0x440] sm:$0xff] %vm4652, %v5611
  %5798 = vst.msk [vmem:[%s3 + $0x448] sm:$0xff] %vm4652, %v5618
  %5799 = vst.msk [vmem:[%s3 + $0x450] sm:$0xff] %vm4652, %v5625
  %5800 = vst.msk [vmem:[%s3 + $0x458] sm:$0xff] %vm4652, %v5632
  %5801 = vst.msk [vmem:[%s3 + $0x460] sm:$0xff] %vm4652, %v5639
  %5802 = vst.msk [vmem:[%s3 + $0x468] sm:$0xff] %vm4652, %v5646
  %5803 = vst.msk [vmem:[%s3 + $0x470] sm:$0xff] %vm4652, %v5653
  %5804 = vst.msk [vmem:[%s3 + $0x478] sm:$0xff] %vm4652, %v5660
  // Predicated region
  $region14: #{net_forward.2} parent=0 // pred_check
    _
  $region15: #{net_forward.2} parent=0 // pred_check_branch
    %5806 = sbr.rel (0) target = $region17
  $region16: #{net_forward.2} parent=0 // pred_region
    _
  $region17: #{net_forward.2} parent=0 // pred_fallthru
    _
  // Predicated region
  $region18: #{net_forward.2} parent=0 // pred_check
    _
  $region19: #{net_forward.2} parent=0 // pred_check_branch
    %5808 = sbr.rel (0) target = $region21
  $region20: #{net_forward.2} parent=0 // pred_region
    _
  $region21: #{net_forward.2} parent=0 // pred_fallthru
    _

// kernel: net_forward.3
$region0: #{net_forward.3}
  #allocation0 [shape = 'u32[]', space=smem, size = 0x4, offset = 0x4, fixed_abs, tag = 'smem constant byte address 0x4 - core index']
  #allocation1 [shape = 'u32[72,128]{1,0:T(1,128)}', space=vmem, size = 0x9000, scoped, tag = 'internal scratch']
  %s0 = inlined_call_operand.vmem [shape: f32[4,16,8,250], index: 0, kind: input, shape index: {}]
  %s1 = inlined_call_operand.vmem [shape: f32[250,20], index: 1, kind: input, shape index: {}]
  %s2 = inlined_call_operand.vmem [shape: f32[1,20], index: 2, kind: input, shape index: {}]
  %s3 = inlined_call_operand.vmem [shape: f32[16,20,50], index: 3, kind: input, shape index: {}]
  %s4 = inlined_call_operand.vmem [shape: f32[1,50], index: 4, kind: input, shape index: {}]
  %s5 = inlined_call_operand.vmem [shape: f32[50,10], index: 5, kind: input, shape index: {}]
  %s6 = inlined_call_operand.vmem [shape: f32[1,10], index: 6, kind: input, shape index: {}]
  %s7 = inlined_call_operand.vmem [shape: f32[8,10], index: 7, kind: output, shape index: {}]
  %s8 = sld [smem:[#allocation0]]
  $region38: #{net_forward.3} parent=0
    _
  %s10 = ssub.s32 1, %s8
  %s11 = scalar_select 0, %s10, %s8
  // Predicated region
  $region2: #{net_forward.3} parent=0 // pred_check
    _
  $region3: #{net_forward.3} parent=0 // pred_check_branch
    %13 = sbr.rel (0) target = $region5
  $region4: #{net_forward.3} parent=0 // pred_region
    _
  $region5: #{net_forward.3} parent=0 // pred_fallthru
    _
  // Predicated region
  $region6: #{net_forward.3} parent=0 // pred_check
    _
  $region7: #{net_forward.3} parent=0 // pred_check_branch
    %15 = sbr.rel (0) target = $region9
  $region8: #{net_forward.3} parent=0 // pred_region
    _
  $region9: #{net_forward.3} parent=0 // pred_fallthru
    _
  // Predicated region
  $region10: #{net_forward.3} parent=0 // pred_check
    _
  $region11: #{net_forward.3} parent=0 // pred_check_branch
    %17 = sbr.rel (0) target = $region13
  $region12: #{net_forward.3} parent=0 // pred_region
    _
  $region13: #{net_forward.3} parent=0 // pred_fallthru
    _
  // Predicated region
  $region14: #{net_forward.3} parent=0 // pred_check
    _
  $region15: #{net_forward.3} parent=0 // pred_check_branch
    %19 = sbr.rel (0) target = $region17
  $region16: #{net_forward.3} parent=0 // pred_region
    _
  $region17: #{net_forward.3} parent=0 // pred_fallthru
    _
  // Predicated region
  $region18: #{net_forward.3} parent=0 // pred_check
    _
  $region19: #{net_forward.3} parent=0 // pred_check_branch
    %21 = sbr.rel (0) target = $region21
  $region20: #{net_forward.3} parent=0 // pred_region
    _
  $region21: #{net_forward.3} parent=0 // pred_fallthru
    _
  // Predicated region
  $region22: #{net_forward.3} parent=0 // pred_check
    _
  $region23: #{net_forward.3} parent=0 // pred_check_branch
    %23 = sbr.rel (0) target = $region25
  $region24: #{net_forward.3} parent=0 // pred_region
    _
  $region25: #{net_forward.3} parent=0 // pred_fallthru
    _
  // Predicated region
  $region26: #{net_forward.3} parent=0 // pred_check
    _
  $region27: #{net_forward.3} parent=0 // pred_check_branch
    %25 = sbr.rel (0) target = $region29
  $region28: #{net_forward.3} parent=0 // pred_region
    _
  $region29: #{net_forward.3} parent=0 // pred_fallthru
    _
  %v26 = vld [vmem:[%s0] sm:$0xff]
  %v27 = vld [vmem:[%s0 + $0x8] sm:$0xff]
  %v28 = vld [vmem:[%s0 + $0x10] sm:$0xff]
  %v29 = vld [vmem:[%s0 + $0x18] sm:$0xff]
  %v30 = vld [vmem:[%s0 + $0x20] sm:$0xff]
  %v31 = vld [vmem:[%s0 + $0x28] sm:$0xff]
  %v32 = vld [vmem:[%s0 + $0x30] sm:$0xff]
  %v33 = vld [vmem:[%s0 + $0x38] sm:$0xff]
  %v34 = vld [vmem:[%s0 + $0x40] sm:$0xff]
  %v35 = vld [vmem:[%s0 + $0x48] sm:$0xff]
  %v36 = vld [vmem:[%s0 + $0x50] sm:$0xff]
  %v37 = vld [vmem:[%s0 + $0x58] sm:$0xff]
  %v38 = vld [vmem:[%s0 + $0x60] sm:$0xff]
  %v39 = vld [vmem:[%s0 + $0x68] sm:$0xff]
  %v40 = vld [vmem:[%s0 + $0x70] sm:$0xff]
  %v41 = vld [vmem:[%s0 + $0x78] sm:$0xff]
  %v42 = vld [vmem:[%s0 + $0x80] sm:$0xff]
  %v43 = vld [vmem:[%s0 + $0x88] sm:$0xff]
  %v44 = vld [vmem:[%s0 + $0x90] sm:$0xff]
  %v45 = vld [vmem:[%s0 + $0x98] sm:$0xff]
  %v46 = vld [vmem:[%s0 + $0xa0] sm:$0xff]
  %v47 = vld [vmem:[%s0 + $0xa8] sm:$0xff]
  %v48 = vld [vmem:[%s0 + $0xb0] sm:$0xff]
  %v49 = vld [vmem:[%s0 + $0xb8] sm:$0xff]
  %v50 = vld [vmem:[%s0 + $0xc0] sm:$0xff]
  %v51 = vld [vmem:[%s0 + $0xc8] sm:$0xff]
  %v52 = vld [vmem:[%s0 + $0xd0] sm:$0xff]
  %v53 = vld [vmem:[%s0 + $0xd8] sm:$0xff]
  %v54 = vld [vmem:[%s0 + $0xe0] sm:$0xff]
  %v55 = vld [vmem:[%s0 + $0xe8] sm:$0xff]
  %v56 = vld [vmem:[%s0 + $0xf0] sm:$0xff]
  %v57 = vld [vmem:[%s0 + $0xf8] sm:$0xff]
  %v58 = vld [vmem:[%s0 + $0x100] sm:$0xff]
  %v59 = vld [vmem:[%s0 + $0x108] sm:$0xff]
  %v60 = vld [vmem:[%s0 + $0x110] sm:$0xff]
  %v61 = vld [vmem:[%s0 + $0x118] sm:$0xff]
  %v62 = vld [vmem:[%s0 + $0x120] sm:$0xff]
  %v63 = vld [vmem:[%s0 + $0x128] sm:$0xff]
  %v64 = vld [vmem:[%s0 + $0x130] sm:$0xff]
  %v65 = vld [vmem:[%s0 + $0x138] sm:$0xff]
  %v66 = vld [vmem:[%s0 + $0x140] sm:$0xff]
  %v67 = vld [vmem:[%s0 + $0x148] sm:$0xff]
  %v68 = vld [vmem:[%s0 + $0x150] sm:$0xff]
  %v69 = vld [vmem:[%s0 + $0x158] sm:$0xff]
  %v70 = vld [vmem:[%s0 + $0x160] sm:$0xff]
  %v71 = vld [vmem:[%s0 + $0x168] sm:$0xff]
  %v72 = vld [vmem:[%s0 + $0x170] sm:$0xff]
  %v73 = vld [vmem:[%s0 + $0x178] sm:$0xff]
  %v74 = vld [vmem:[%s0 + $0x180] sm:$0xff]
  %v75 = vld [vmem:[%s0 + $0x188] sm:$0xff]
  %v76 = vld [vmem:[%s0 + $0x190] sm:$0xff]
  %v77 = vld [vmem:[%s0 + $0x198] sm:$0xff]
  %v78 = vld [vmem:[%s0 + $0x1a0] sm:$0xff]
  %v79 = vld [vmem:[%s0 + $0x1a8] sm:$0xff]
  %v80 = vld [vmem:[%s0 + $0x1b0] sm:$0xff]
  %v81 = vld [vmem:[%s0 + $0x1b8] sm:$0xff]
  %v82 = vld [vmem:[%s0 + $0x1c0] sm:$0xff]
  %v83 = vld [vmem:[%s0 + $0x1c8] sm:$0xff]
  %v84 = vld [vmem:[%s0 + $0x1d0] sm:$0xff]
  %v85 = vld [vmem:[%s0 + $0x1d8] sm:$0xff]
  %v86 = vld [vmem:[%s0 + $0x1e0] sm:$0xff]
  %v87 = vld [vmem:[%s0 + $0x1e8] sm:$0xff]
  %v88 = vld [vmem:[%s0 + $0x1f0] sm:$0xff]
  %v89 = vld [vmem:[%s0 + $0x1f8] sm:$0xff]
  %v90 = vld [vmem:[%s0 + $0x200] sm:$0xff]
  %v91 = vld [vmem:[%s0 + $0x208] sm:$0xff]
  %v92 = vld [vmem:[%s0 + $0x210] sm:$0xff]
  %v93 = vld [vmem:[%s0 + $0x218] sm:$0xff]
  %v94 = vld [vmem:[%s0 + $0x220] sm:$0xff]
  %v95 = vld [vmem:[%s0 + $0x228] sm:$0xff]
  %v96 = vld [vmem:[%s0 + $0x230] sm:$0xff]
  %v97 = vld [vmem:[%s0 + $0x238] sm:$0xff]
  %v98 = vld [vmem:[%s0 + $0x240] sm:$0xff]
  %v99 = vld [vmem:[%s0 + $0x248] sm:$0xff]
  %v100 = vld [vmem:[%s0 + $0x250] sm:$0xff]
  %v101 = vld [vmem:[%s0 + $0x258] sm:$0xff]
  %v102 = vld [vmem:[%s0 + $0x260] sm:$0xff]
  %v103 = vld [vmem:[%s0 + $0x268] sm:$0xff]
  %v104 = vld [vmem:[%s0 + $0x270] sm:$0xff]
  %v105 = vld [vmem:[%s0 + $0x278] sm:$0xff]
  %v106 = vld [vmem:[%s0 + $0x280] sm:$0xff]
  %v107 = vld [vmem:[%s0 + $0x288] sm:$0xff]
  %v108 = vld [vmem:[%s0 + $0x290] sm:$0xff]
  %v109 = vld [vmem:[%s0 + $0x298] sm:$0xff]
  %v110 = vld [vmem:[%s0 + $0x2a0] sm:$0xff]
  %v111 = vld [vmem:[%s0 + $0x2a8] sm:$0xff]
  %v112 = vld [vmem:[%s0 + $0x2b0] sm:$0xff]
  %v113 = vld [vmem:[%s0 + $0x2b8] sm:$0xff]
  %v114 = vld [vmem:[%s0 + $0x2c0] sm:$0xff]
  %v115 = vld [vmem:[%s0 + $0x2c8] sm:$0xff]
  %v116 = vld [vmem:[%s0 + $0x2d0] sm:$0xff]
  %v117 = vld [vmem:[%s0 + $0x2d8] sm:$0xff]
  %v118 = vld [vmem:[%s0 + $0x2e0] sm:$0xff]
  %v119 = vld [vmem:[%s0 + $0x2e8] sm:$0xff]
  %v120 = vld [vmem:[%s0 + $0x2f0] sm:$0xff]
  %v121 = vld [vmem:[%s0 + $0x2f8] sm:$0xff]
  %v122 = vld [vmem:[%s0 + $0x300] sm:$0xff]
  %v123 = vld [vmem:[%s0 + $0x308] sm:$0xff]
  %v124 = vld [vmem:[%s0 + $0x310] sm:$0xff]
  %v125 = vld [vmem:[%s0 + $0x318] sm:$0xff]
  %v126 = vld [vmem:[%s0 + $0x320] sm:$0xff]
  %v127 = vld [vmem:[%s0 + $0x328] sm:$0xff]
  %v128 = vld [vmem:[%s0 + $0x330] sm:$0xff]
  %v129 = vld [vmem:[%s0 + $0x338] sm:$0xff]
  %v130 = vld [vmem:[%s0 + $0x340] sm:$0xff]
  %v131 = vld [vmem:[%s0 + $0x348] sm:$0xff]
  %v132 = vld [vmem:[%s0 + $0x350] sm:$0xff]
  %v133 = vld [vmem:[%s0 + $0x358] sm:$0xff]
  %v134 = vld [vmem:[%s0 + $0x360] sm:$0xff]
  %v135 = vld [vmem:[%s0 + $0x368] sm:$0xff]
  %v136 = vld [vmem:[%s0 + $0x370] sm:$0xff]
  %v137 = vld [vmem:[%s0 + $0x378] sm:$0xff]
  %v138 = vld [vmem:[%s0 + $0x380] sm:$0xff]
  %v139 = vld [vmem:[%s0 + $0x388] sm:$0xff]
  %v140 = vld [vmem:[%s0 + $0x390] sm:$0xff]
  %v141 = vld [vmem:[%s0 + $0x398] sm:$0xff]
  %v142 = vld [vmem:[%s0 + $0x3a0] sm:$0xff]
  %v143 = vld [vmem:[%s0 + $0x3a8] sm:$0xff]
  %v144 = vld [vmem:[%s0 + $0x3b0] sm:$0xff]
  %v145 = vld [vmem:[%s0 + $0x3b8] sm:$0xff]
  %v146 = vld [vmem:[%s0 + $0x3c0] sm:$0xff]
  %v147 = vld [vmem:[%s0 + $0x3c8] sm:$0xff]
  %v148 = vld [vmem:[%s0 + $0x3d0] sm:$0xff]
  %v149 = vld [vmem:[%s0 + $0x3d8] sm:$0xff]
  %v150 = vld [vmem:[%s0 + $0x3e0] sm:$0xff]
  %v151 = vld [vmem:[%s0 + $0x3e8] sm:$0xff]
  %v152 = vld [vmem:[%s0 + $0x3f0] sm:$0xff]
  %v153 = vld [vmem:[%s0 + $0x3f8] sm:$0xff]
  %v154 = vld [vmem:[%s1] sm:$0xff]
  %v155 = vld [vmem:[%s1 + $0x8] sm:$0xff]
  %v156 = vld [vmem:[%s1 + $0x10] sm:$0xff]
  %v157 = vld [vmem:[%s1 + $0x18] sm:$0xff]
  %v158 = vld [vmem:[%s1 + $0x20] sm:$0xff]
  %v159 = vld [vmem:[%s1 + $0x28] sm:$0xff]
  %v160 = vld [vmem:[%s1 + $0x30] sm:$0xff]
  %v161 = vld [vmem:[%s1 + $0x38] sm:$0xff]
  %v162 = vld [vmem:[%s1 + $0x40] sm:$0xff]
  %v163 = vld [vmem:[%s1 + $0x48] sm:$0xff]
  %v164 = vld [vmem:[%s1 + $0x50] sm:$0xff]
  %v165 = vld [vmem:[%s1 + $0x58] sm:$0xff]
  %v166 = vld [vmem:[%s1 + $0x60] sm:$0xff]
  %v167 = vld [vmem:[%s1 + $0x68] sm:$0xff]
  %v168 = vld [vmem:[%s1 + $0x70] sm:$0xff]
  %v169 = vld [vmem:[%s1 + $0x78] sm:$0xff]
  %v170 = vld [vmem:[%s1 + $0x80] sm:$0xff]
  %v171 = vld [vmem:[%s1 + $0x88] sm:$0xff]
  %v172 = vld [vmem:[%s1 + $0x90] sm:$0xff]
  %v173 = vld [vmem:[%s1 + $0x98] sm:$0xff]
  %v174 = vld [vmem:[%s1 + $0xa0] sm:$0xff]
  %v175 = vld [vmem:[%s1 + $0xa8] sm:$0xff]
  %v176 = vld [vmem:[%s1 + $0xb0] sm:$0xff]
  %v177 = vld [vmem:[%s1 + $0xb8] sm:$0xff]
  %v178 = vld [vmem:[%s1 + $0xc0] sm:$0xff]
  %v179 = vld [vmem:[%s1 + $0xc8] sm:$0xff]
  %v180 = vld [vmem:[%s1 + $0xd0] sm:$0xff]
  %v181 = vld [vmem:[%s1 + $0xd8] sm:$0xff]
  %v182 = vld [vmem:[%s1 + $0xe0] sm:$0xff]
  %v183 = vld [vmem:[%s1 + $0xe8] sm:$0xff]
  %v184 = vld [vmem:[%s1 + $0xf0] sm:$0xff]
  %v185 = vld [vmem:[%s1 + $0xf8] sm:$0x3]
  %v186 = vld [vmem:[%s2] sm:$0x1]
  %v188 = vperm.slane %v186, 0
  %vm190 = vcmask 998400
  %v192 = vsel %vm190, %v27, 0
  %v195 = vsel %vm190, %v29, 0
  %v198 = vsel %vm190, %v31, 0
  %v201 = vsel %vm190, %v33, 0
  %v204 = vsel %vm190, %v35, 0
  %v207 = vsel %vm190, %v37, 0
  %v210 = vsel %vm190, %v39, 0
  %v213 = vsel %vm190, %v41, 0
  %v216 = vsel %vm190, %v43, 0
  %v219 = vsel %vm190, %v45, 0
  %v222 = vsel %vm190, %v47, 0
  %v225 = vsel %vm190, %v49, 0
  %v228 = vsel %vm190, %v51, 0
  %v231 = vsel %vm190, %v53, 0
  %v234 = vsel %vm190, %v55, 0
  %v237 = vsel %vm190, %v57, 0
  %v240 = vsel %vm190, %v59, 0
  %v243 = vsel %vm190, %v61, 0
  %v246 = vsel %vm190, %v63, 0
  %v249 = vsel %vm190, %v65, 0
  %v252 = vsel %vm190, %v67, 0
  %v255 = vsel %vm190, %v69, 0
  %v258 = vsel %vm190, %v71, 0
  %v261 = vsel %vm190, %v73, 0
  %v264 = vsel %vm190, %v75, 0
  %v267 = vsel %vm190, %v77, 0
  %v270 = vsel %vm190, %v79, 0
  %v273 = vsel %vm190, %v81, 0
  %v276 = vsel %vm190, %v83, 0
  %v279 = vsel %vm190, %v85, 0
  %v282 = vsel %vm190, %v87, 0
  %v285 = vsel %vm190, %v89, 0
  %v288 = vsel %vm190, %v91, 0
  %v291 = vsel %vm190, %v93, 0
  %v294 = vsel %vm190, %v95, 0
  %v297 = vsel %vm190, %v97, 0
  %v300 = vsel %vm190, %v99, 0
  %v303 = vsel %vm190, %v101, 0
  %v306 = vsel %vm190, %v103, 0
  %v309 = vsel %vm190, %v105, 0
  %v312 = vsel %vm190, %v107, 0
  %v315 = vsel %vm190, %v109, 0
  %v318 = vsel %vm190, %v111, 0
  %v321 = vsel %vm190, %v113, 0
  %v324 = vsel %vm190, %v115, 0
  %v327 = vsel %vm190, %v117, 0
  %v330 = vsel %vm190, %v119, 0
  %v333 = vsel %vm190, %v121, 0
  %v336 = vsel %vm190, %v123, 0
  %v339 = vsel %vm190, %v125, 0
  %v342 = vsel %vm190, %v127, 0
  %v345 = vsel %vm190, %v129, 0
  %v348 = vsel %vm190, %v131, 0
  %v351 = vsel %vm190, %v133, 0
  %v354 = vsel %vm190, %v135, 0
  %v357 = vsel %vm190, %v137, 0
  %v360 = vsel %vm190, %v139, 0
  %v363 = vsel %vm190, %v141, 0
  %v366 = vsel %vm190, %v143, 0
  %v369 = vsel %vm190, %v145, 0
  %v372 = vsel %vm190, %v147, 0
  %v375 = vsel %vm190, %v149, 0
  %v378 = vsel %vm190, %v151, 0
  %v381 = vsel %vm190, %v153, 0
  %vm383 = vcmask 1041408
  %v385 = vsel %vm383, %v185, 0
  %387 = vmatpush.msra.mxu0 %v169
  %388 = vmatpush.msra.mxu0 %v168
  %389 = vmatpush.msra.mxu0 %v167
  %390 = vmatpush.msra.mxu0 %v166
  %391 = vmatpush.msra.mxu0 %v165
  %392 = vmatpush.msra.mxu0 %v164
  %393 = vmatpush.msra.mxu0 %v163
  %394 = vmatpush.msra.mxu0 %v162
  %395 = vmatpush.msra.mxu0 %v161
  %396 = vmatpush.msra.mxu0 %v160
  %397 = vmatpush.msra.mxu0 %v159
  %398 = vmatpush.msra.mxu0 %v158
  %399 = vmatpush.msra.mxu0 %v157
  %400 = vmatpush.msra.mxu0 %v156
  %401 = vmatpush.msra.mxu0 %v155
  %402 = vmatpush.msra.mxu0 %v154
  %403 = vmatmul.f32.gmra.mxu0 %v26
  %v404 = vpop.f32.mrf.mxu0
  %v405 = vadd.f32 %v188, %v404
  %406 = vmatmul.f32.gmra.mxu0 %v28
  %v407 = vpop.f32.mrf.mxu0
  %v408 = vadd.f32 %v188, %v407
  %409 = vmatmul.f32.gmra.mxu0 %v30
  %v410 = vpop.f32.mrf.mxu0
  %v411 = vadd.f32 %v188, %v410
  %412 = vmatmul.f32.gmra.mxu0 %v32
  %v413 = vpop.f32.mrf.mxu0
  %v414 = vadd.f32 %v188, %v413
  %415 = vmatmul.f32.gmra.mxu0 %v34
  %v416 = vpop.f32.mrf.mxu0
  %v417 = vadd.f32 %v188, %v416
  %418 = vmatmul.f32.gmra.mxu0 %v36
  %v419 = vpop.f32.mrf.mxu0
  %v420 = vadd.f32 %v188, %v419
  %421 = vmatmul.f32.gmra.mxu0 %v38
  %v422 = vpop.f32.mrf.mxu0
  %v423 = vadd.f32 %v188, %v422
  %424 = vmatmul.f32.gmra.mxu0 %v40
  %v425 = vpop.f32.mrf.mxu0
  %v426 = vadd.f32 %v188, %v425
  %427 = vmatmul.f32.gmra.mxu0 %v42
  %v428 = vpop.f32.mrf.mxu0
  %v429 = vadd.f32 %v188, %v428
  %430 = vmatmul.f32.gmra.mxu0 %v44
  %v431 = vpop.f32.mrf.mxu0
  %v432 = vadd.f32 %v188, %v431
  %433 = vmatmul.f32.gmra.mxu0 %v46
  %v434 = vpop.f32.mrf.mxu0
  %v435 = vadd.f32 %v188, %v434
  %436 = vmatmul.f32.gmra.mxu0 %v48
  %v437 = vpop.f32.mrf.mxu0
  %v438 = vadd.f32 %v188, %v437
  %439 = vmatmul.f32.gmra.mxu0 %v50
  %v440 = vpop.f32.mrf.mxu0
  %v441 = vadd.f32 %v188, %v440
  %442 = vmatmul.f32.gmra.mxu0 %v52
  %v443 = vpop.f32.mrf.mxu0
  %v444 = vadd.f32 %v188, %v443
  %445 = vmatmul.f32.gmra.mxu0 %v54
  %v446 = vpop.f32.mrf.mxu0
  %v447 = vadd.f32 %v188, %v446
  %448 = vmatmul.f32.gmra.mxu0 %v56
  %v449 = vpop.f32.mrf.mxu0
  %v450 = vadd.f32 %v188, %v449
  %451 = vmatmul.f32.gmra.mxu0 %v58
  %v452 = vpop.f32.mrf.mxu0
  %v453 = vadd.f32 %v188, %v452
  %454 = vmatmul.f32.gmra.mxu0 %v60
  %v455 = vpop.f32.mrf.mxu0
  %v456 = vadd.f32 %v188, %v455
  %457 = vmatmul.f32.gmra.mxu0 %v62
  %v458 = vpop.f32.mrf.mxu0
  %v459 = vadd.f32 %v188, %v458
  %460 = vmatmul.f32.gmra.mxu0 %v64
  %v461 = vpop.f32.mrf.mxu0
  %v462 = vadd.f32 %v188, %v461
  %463 = vmatmul.f32.gmra.mxu0 %v66
  %v464 = vpop.f32.mrf.mxu0
  %v465 = vadd.f32 %v188, %v464
  %466 = vmatmul.f32.gmra.mxu0 %v68
  %v467 = vpop.f32.mrf.mxu0
  %v468 = vadd.f32 %v188, %v467
  %469 = vmatmul.f32.gmra.mxu0 %v70
  %v470 = vpop.f32.mrf.mxu0
  %v471 = vadd.f32 %v188, %v470
  %472 = vmatmul.f32.gmra.mxu0 %v72
  %v473 = vpop.f32.mrf.mxu0
  %v474 = vadd.f32 %v188, %v473
  %475 = vmatmul.f32.gmra.mxu0 %v74
  %v476 = vpop.f32.mrf.mxu0
  %v477 = vadd.f32 %v188, %v476
  %478 = vmatmul.f32.gmra.mxu0 %v76
  %v479 = vpop.f32.mrf.mxu0
  %v480 = vadd.f32 %v188, %v479
  %481 = vmatmul.f32.gmra.mxu0 %v78
  %v482 = vpop.f32.mrf.mxu0
  %v483 = vadd.f32 %v188, %v482
  %484 = vmatmul.f32.gmra.mxu0 %v80
  %v485 = vpop.f32.mrf.mxu0
  %v486 = vadd.f32 %v188, %v485
  %487 = vmatmul.f32.gmra.mxu0 %v82
  %v488 = vpop.f32.mrf.mxu0
  %v489 = vadd.f32 %v188, %v488
  %490 = vmatmul.f32.gmra.mxu0 %v84
  %v491 = vpop.f32.mrf.mxu0
  %v492 = vadd.f32 %v188, %v491
  %493 = vmatmul.f32.gmra.mxu0 %v86
  %v494 = vpop.f32.mrf.mxu0
  %v495 = vadd.f32 %v188, %v494
  %496 = vmatmul.f32.gmra.mxu0 %v88
  %v497 = vpop.f32.mrf.mxu0
  %v498 = vadd.f32 %v188, %v497
  %499 = vmatmul.f32.gmra.mxu0 %v90
  %v500 = vpop.f32.mrf.mxu0
  %v501 = vadd.f32 %v188, %v500
  %502 = vmatmul.f32.gmra.mxu0 %v92
  %v503 = vpop.f32.mrf.mxu0
  %v504 = vadd.f32 %v188, %v503
  %505 = vmatmul.f32.gmra.mxu0 %v94
  %v506 = vpop.f32.mrf.mxu0
  %v507 = vadd.f32 %v188, %v506
  %508 = vmatmul.f32.gmra.mxu0 %v96
  %v509 = vpop.f32.mrf.mxu0
  %v510 = vadd.f32 %v188, %v509
  %511 = vmatmul.f32.gmra.mxu0 %v98
  %v512 = vpop.f32.mrf.mxu0
  %v513 = vadd.f32 %v188, %v512
  %514 = vmatmul.f32.gmra.mxu0 %v100
  %v515 = vpop.f32.mrf.mxu0
  %v516 = vadd.f32 %v188, %v515
  %517 = vmatmul.f32.gmra.mxu0 %v102
  %v518 = vpop.f32.mrf.mxu0
  %v519 = vadd.f32 %v188, %v518
  %520 = vmatmul.f32.gmra.mxu0 %v104
  %v521 = vpop.f32.mrf.mxu0
  %v522 = vadd.f32 %v188, %v521
  %523 = vmatmul.f32.gmra.mxu0 %v106
  %v524 = vpop.f32.mrf.mxu0
  %v525 = vadd.f32 %v188, %v524
  %526 = vmatmul.f32.gmra.mxu0 %v108
  %v527 = vpop.f32.mrf.mxu0
  %v528 = vadd.f32 %v188, %v527
  %529 = vmatmul.f32.gmra.mxu0 %v110
  %v530 = vpop.f32.mrf.mxu0
  %v531 = vadd.f32 %v188, %v530
  %532 = vmatmul.f32.gmra.mxu0 %v112
  %v533 = vpop.f32.mrf.mxu0
  %v534 = vadd.f32 %v188, %v533
  %535 = vmatmul.f32.gmra.mxu0 %v114
  %v536 = vpop.f32.mrf.mxu0
  %v537 = vadd.f32 %v188, %v536
  %538 = vmatmul.f32.gmra.mxu0 %v116
  %v539 = vpop.f32.mrf.mxu0
  %v540 = vadd.f32 %v188, %v539
  %541 = vmatmul.f32.gmra.mxu0 %v118
  %v542 = vpop.f32.mrf.mxu0
  %v543 = vadd.f32 %v188, %v542
  %544 = vmatmul.f32.gmra.mxu0 %v120
  %v545 = vpop.f32.mrf.mxu0
  %v546 = vadd.f32 %v188, %v545
  %547 = vmatmul.f32.gmra.mxu0 %v122
  %v548 = vpop.f32.mrf.mxu0
  %v549 = vadd.f32 %v188, %v548
  %550 = vmatmul.f32.gmra.mxu0 %v124
  %v551 = vpop.f32.mrf.mxu0
  %v552 = vadd.f32 %v188, %v551
  %553 = vmatmul.f32.gmra.mxu0 %v126
  %v554 = vpop.f32.mrf.mxu0
  %v555 = vadd.f32 %v188, %v554
  %556 = vmatmul.f32.gmra.mxu0 %v128
  %v557 = vpop.f32.mrf.mxu0
  %v558 = vadd.f32 %v188, %v557
  %559 = vmatmul.f32.gmra.mxu0 %v130
  %v560 = vpop.f32.mrf.mxu0
  %v561 = vadd.f32 %v188, %v560
  %562 = vmatmul.f32.gmra.mxu0 %v132
  %v563 = vpop.f32.mrf.mxu0
  %v564 = vadd.f32 %v188, %v563
  %565 = vmatmul.f32.gmra.mxu0 %v134
  %v566 = vpop.f32.mrf.mxu0
  %v567 = vadd.f32 %v188, %v566
  %568 = vmatmul.f32.gmra.mxu0 %v136
  %v569 = vpop.f32.mrf.mxu0
  %v570 = vadd.f32 %v188, %v569
  %571 = vmatmul.f32.gmra.mxu0 %v138
  %v572 = vpop.f32.mrf.mxu0
  %v573 = vadd.f32 %v188, %v572
  %574 = vmatmul.f32.gmra.mxu0 %v140
  %v575 = vpop.f32.mrf.mxu0
  %v576 = vadd.f32 %v188, %v575
  %577 = vmatmul.f32.gmra.mxu0 %v142
  %v578 = vpop.f32.mrf.mxu0
  %v579 = vadd.f32 %v188, %v578
  %580 = vmatmul.f32.gmra.mxu0 %v144
  %v581 = vpop.f32.mrf.mxu0
  %v582 = vadd.f32 %v188, %v581
  %583 = vmatmul.f32.gmra.mxu0 %v146
  %v584 = vpop.f32.mrf.mxu0
  %v585 = vadd.f32 %v188, %v584
  %586 = vmatmul.f32.gmra.mxu0 %v148
  %v587 = vpop.f32.mrf.mxu0
  %v588 = vadd.f32 %v188, %v587
  %589 = vmatmul.f32.gmra.mxu0 %v150
  %v590 = vpop.f32.mrf.mxu0
  %v591 = vadd.f32 %v188, %v590
  %592 = vmatmul.f32.gmra.mxu0 %v152
  %v593 = vpop.f32.mrf.mxu0
  %v594 = vadd.f32 %v188, %v593
  %595 = vdwg.mxu0
  %596 = vmatpush.msra.mxu0 %v385
  %597 = vmatpush.msra.mxu0 %v184
  %598 = vmatpush.msra.mxu0 %v183
  %599 = vmatpush.msra.mxu0 %v182
  %600 = vmatpush.msra.mxu0 %v181
  %601 = vmatpush.msra.mxu0 %v180
  %602 = vmatpush.msra.mxu0 %v179
  %603 = vmatpush.msra.mxu0 %v178
  %604 = vmatpush.msra.mxu0 %v177
  %605 = vmatpush.msra.mxu0 %v176
  %606 = vmatpush.msra.mxu0 %v175
  %607 = vmatpush.msra.mxu0 %v174
  %608 = vmatpush.msra.mxu0 %v173
  %609 = vmatpush.msra.mxu0 %v172
  %610 = vmatpush.msra.mxu0 %v171
  %611 = vmatpush.msra.mxu0 %v170
  %612 = vmatmul.f32.gmra.mxu0 %v192
  %v613 = vpop.f32.mrf.mxu0
  %v614 = vadd.f32 %v405, %v613
  %615 = vmatmul.f32.gmra.mxu0 %v195
  %v616 = vpop.f32.mrf.mxu0
  %v617 = vadd.f32 %v408, %v616
  %618 = vmatmul.f32.gmra.mxu0 %v198
  %v619 = vpop.f32.mrf.mxu0
  %v620 = vadd.f32 %v411, %v619
  %621 = vmatmul.f32.gmra.mxu0 %v201
  %v622 = vpop.f32.mrf.mxu0
  %v623 = vadd.f32 %v414, %v622
  %624 = vmatmul.f32.gmra.mxu0 %v204
  %v625 = vpop.f32.mrf.mxu0
  %v626 = vadd.f32 %v417, %v625
  %627 = vmatmul.f32.gmra.mxu0 %v207
  %v628 = vpop.f32.mrf.mxu0
  %v629 = vadd.f32 %v420, %v628
  %630 = vmatmul.f32.gmra.mxu0 %v210
  %v631 = vpop.f32.mrf.mxu0
  %v632 = vadd.f32 %v423, %v631
  %633 = vmatmul.f32.gmra.mxu0 %v213
  %v634 = vpop.f32.mrf.mxu0
  %v635 = vadd.f32 %v426, %v634
  %636 = vmatmul.f32.gmra.mxu0 %v216
  %v637 = vpop.f32.mrf.mxu0
  %v638 = vadd.f32 %v429, %v637
  %639 = vmatmul.f32.gmra.mxu0 %v219
  %v640 = vpop.f32.mrf.mxu0
  %v641 = vadd.f32 %v432, %v640
  %642 = vmatmul.f32.gmra.mxu0 %v222
  %v643 = vpop.f32.mrf.mxu0
  %v644 = vadd.f32 %v435, %v643
  %645 = vmatmul.f32.gmra.mxu0 %v225
  %v646 = vpop.f32.mrf.mxu0
  %v647 = vadd.f32 %v438, %v646
  %648 = vmatmul.f32.gmra.mxu0 %v228
  %v649 = vpop.f32.mrf.mxu0
  %v650 = vadd.f32 %v441, %v649
  %651 = vmatmul.f32.gmra.mxu0 %v231
  %v652 = vpop.f32.mrf.mxu0
  %v653 = vadd.f32 %v444, %v652
  %654 = vmatmul.f32.gmra.mxu0 %v234
  %v655 = vpop.f32.mrf.mxu0
  %v656 = vadd.f32 %v447, %v655
  %657 = vmatmul.f32.gmra.mxu0 %v237
  %v658 = vpop.f32.mrf.mxu0
  %v659 = vadd.f32 %v450, %v658
  %660 = vmatmul.f32.gmra.mxu0 %v240
  %v661 = vpop.f32.mrf.mxu0
  %v662 = vadd.f32 %v453, %v661
  %663 = vmatmul.f32.gmra.mxu0 %v243
  %v664 = vpop.f32.mrf.mxu0
  %v665 = vadd.f32 %v456, %v664
  %666 = vmatmul.f32.gmra.mxu0 %v246
  %v667 = vpop.f32.mrf.mxu0
  %v668 = vadd.f32 %v459, %v667
  %669 = vmatmul.f32.gmra.mxu0 %v249
  %v670 = vpop.f32.mrf.mxu0
  %v671 = vadd.f32 %v462, %v670
  %672 = vmatmul.f32.gmra.mxu0 %v252
  %v673 = vpop.f32.mrf.mxu0
  %v674 = vadd.f32 %v465, %v673
  %675 = vmatmul.f32.gmra.mxu0 %v255
  %v676 = vpop.f32.mrf.mxu0
  %v677 = vadd.f32 %v468, %v676
  %678 = vmatmul.f32.gmra.mxu0 %v258
  %v679 = vpop.f32.mrf.mxu0
  %v680 = vadd.f32 %v471, %v679
  %681 = vmatmul.f32.gmra.mxu0 %v261
  %v682 = vpop.f32.mrf.mxu0
  %v683 = vadd.f32 %v474, %v682
  %684 = vmatmul.f32.gmra.mxu0 %v264
  %v685 = vpop.f32.mrf.mxu0
  %v686 = vadd.f32 %v477, %v685
  %687 = vmatmul.f32.gmra.mxu0 %v267
  %v688 = vpop.f32.mrf.mxu0
  %v689 = vadd.f32 %v480, %v688
  %690 = vmatmul.f32.gmra.mxu0 %v270
  %v691 = vpop.f32.mrf.mxu0
  %v692 = vadd.f32 %v483, %v691
  %693 = vmatmul.f32.gmra.mxu0 %v273
  %v694 = vpop.f32.mrf.mxu0
  %v695 = vadd.f32 %v486, %v694
  %696 = vmatmul.f32.gmra.mxu0 %v276
  %v697 = vpop.f32.mrf.mxu0
  %v698 = vadd.f32 %v489, %v697
  %699 = vmatmul.f32.gmra.mxu0 %v279
  %v700 = vpop.f32.mrf.mxu0
  %v701 = vadd.f32 %v492, %v700
  %702 = vmatmul.f32.gmra.mxu0 %v282
  %v703 = vpop.f32.mrf.mxu0
  %v704 = vadd.f32 %v495, %v703
  %705 = vmatmul.f32.gmra.mxu0 %v285
  %v706 = vpop.f32.mrf.mxu0
  %v707 = vadd.f32 %v498, %v706
  %708 = vmatmul.f32.gmra.mxu0 %v288
  %v709 = vpop.f32.mrf.mxu0
  %v710 = vadd.f32 %v501, %v709
  %711 = vmatmul.f32.gmra.mxu0 %v291
  %v712 = vpop.f32.mrf.mxu0
  %v713 = vadd.f32 %v504, %v712
  %714 = vmatmul.f32.gmra.mxu0 %v294
  %v715 = vpop.f32.mrf.mxu0
  %v716 = vadd.f32 %v507, %v715
  %717 = vmatmul.f32.gmra.mxu0 %v297
  %v718 = vpop.f32.mrf.mxu0
  %v719 = vadd.f32 %v510, %v718
  %720 = vmatmul.f32.gmra.mxu0 %v300
  %v721 = vpop.f32.mrf.mxu0
  %v722 = vadd.f32 %v513, %v721
  %723 = vmatmul.f32.gmra.mxu0 %v303
  %v724 = vpop.f32.mrf.mxu0
  %v725 = vadd.f32 %v516, %v724
  %726 = vmatmul.f32.gmra.mxu0 %v306
  %v727 = vpop.f32.mrf.mxu0
  %v728 = vadd.f32 %v519, %v727
  %729 = vmatmul.f32.gmra.mxu0 %v309
  %v730 = vpop.f32.mrf.mxu0
  %v731 = vadd.f32 %v522, %v730
  %732 = vmatmul.f32.gmra.mxu0 %v312
  %v733 = vpop.f32.mrf.mxu0
  %v734 = vadd.f32 %v525, %v733
  %735 = vmatmul.f32.gmra.mxu0 %v315
  %v736 = vpop.f32.mrf.mxu0
  %v737 = vadd.f32 %v528, %v736
  %738 = vmatmul.f32.gmra.mxu0 %v318
  %v739 = vpop.f32.mrf.mxu0
  %v740 = vadd.f32 %v531, %v739
  %741 = vmatmul.f32.gmra.mxu0 %v321
  %v742 = vpop.f32.mrf.mxu0
  %v743 = vadd.f32 %v534, %v742
  %744 = vmatmul.f32.gmra.mxu0 %v324
  %v745 = vpop.f32.mrf.mxu0
  %v746 = vadd.f32 %v537, %v745
  %747 = vmatmul.f32.gmra.mxu0 %v327
  %v748 = vpop.f32.mrf.mxu0
  %v749 = vadd.f32 %v540, %v748
  %750 = vmatmul.f32.gmra.mxu0 %v330
  %v751 = vpop.f32.mrf.mxu0
  %v752 = vadd.f32 %v543, %v751
  %753 = vmatmul.f32.gmra.mxu0 %v333
  %v754 = vpop.f32.mrf.mxu0
  %v755 = vadd.f32 %v546, %v754
  %756 = vmatmul.f32.gmra.mxu0 %v336
  %v757 = vpop.f32.mrf.mxu0
  %v758 = vadd.f32 %v549, %v757
  %759 = vmatmul.f32.gmra.mxu0 %v339
  %v760 = vpop.f32.mrf.mxu0
  %v761 = vadd.f32 %v552, %v760
  %762 = vmatmul.f32.gmra.mxu0 %v342
  %v763 = vpop.f32.mrf.mxu0
  %v764 = vadd.f32 %v555, %v763
  %765 = vmatmul.f32.gmra.mxu0 %v345
  %v766 = vpop.f32.mrf.mxu0
  %v767 = vadd.f32 %v558, %v766
  %768 = vmatmul.f32.gmra.mxu0 %v348
  %v769 = vpop.f32.mrf.mxu0
  %v770 = vadd.f32 %v561, %v769
  %771 = vmatmul.f32.gmra.mxu0 %v351
  %v772 = vpop.f32.mrf.mxu0
  %v773 = vadd.f32 %v564, %v772
  %774 = vmatmul.f32.gmra.mxu0 %v354
  %v775 = vpop.f32.mrf.mxu0
  %v776 = vadd.f32 %v567, %v775
  %777 = vmatmul.f32.gmra.mxu0 %v357
  %v778 = vpop.f32.mrf.mxu0
  %v779 = vadd.f32 %v570, %v778
  %780 = vmatmul.f32.gmra.mxu0 %v360
  %v781 = vpop.f32.mrf.mxu0
  %v782 = vadd.f32 %v573, %v781
  %783 = vmatmul.f32.gmra.mxu0 %v363
  %v784 = vpop.f32.mrf.mxu0
  %v785 = vadd.f32 %v576, %v784
  %786 = vmatmul.f32.gmra.mxu0 %v366
  %v787 = vpop.f32.mrf.mxu0
  %v788 = vadd.f32 %v579, %v787
  %789 = vmatmul.f32.gmra.mxu0 %v369
  %v790 = vpop.f32.mrf.mxu0
  %v791 = vadd.f32 %v582, %v790
  %792 = vmatmul.f32.gmra.mxu0 %v372
  %v793 = vpop.f32.mrf.mxu0
  %v794 = vadd.f32 %v585, %v793
  %795 = vmatmul.f32.gmra.mxu0 %v375
  %v796 = vpop.f32.mrf.mxu0
  %v797 = vadd.f32 %v588, %v796
  %798 = vmatmul.f32.gmra.mxu0 %v378
  %v799 = vpop.f32.mrf.mxu0
  %v800 = vadd.f32 %v591, %v799
  %801 = vmatmul.f32.gmra.mxu0 %v381
  %v802 = vpop.f32.mrf.mxu0
  %v803 = vadd.f32 %v594, %v802
  %804 = vdwg.mxu0
  %v805 = vmax.f32 %v614, 0.0
  %v806 = vmax.f32 %v617, 0.0
  %v807 = vmax.f32 %v620, 0.0
  %v808 = vmax.f32 %v623, 0.0
  %v809 = vmax.f32 %v626, 0.0
  %v810 = vmax.f32 %v629, 0.0
  %v811 = vmax.f32 %v632, 0.0
  %v812 = vmax.f32 %v635, 0.0
  %v813 = vmax.f32 %v638, 0.0
  %v814 = vmax.f32 %v641, 0.0
  %v815 = vmax.f32 %v644, 0.0
  %v816 = vmax.f32 %v647, 0.0
  %v817 = vmax.f32 %v650, 0.0
  %v818 = vmax.f32 %v653, 0.0
  %v819 = vmax.f32 %v656, 0.0
  %v820 = vmax.f32 %v659, 0.0
  %v821 = vmax.f32 %v662, 0.0
  %v822 = vmax.f32 %v665, 0.0
  %v823 = vmax.f32 %v668, 0.0
  %v824 = vmax.f32 %v671, 0.0
  %v825 = vmax.f32 %v674, 0.0
  %v826 = vmax.f32 %v677, 0.0
  %v827 = vmax.f32 %v680, 0.0
  %v828 = vmax.f32 %v683, 0.0
  %v829 = vmax.f32 %v686, 0.0
  %v830 = vmax.f32 %v689, 0.0
  %v831 = vmax.f32 %v692, 0.0
  %v832 = vmax.f32 %v695, 0.0
  %v833 = vmax.f32 %v698, 0.0
  %v834 = vmax.f32 %v701, 0.0
  %v835 = vmax.f32 %v704, 0.0
  %v836 = vmax.f32 %v707, 0.0
  %v837 = vmax.f32 %v710, 0.0
  %v838 = vmax.f32 %v713, 0.0
  %v839 = vmax.f32 %v716, 0.0
  %v840 = vmax.f32 %v719, 0.0
  %v841 = vmax.f32 %v722, 0.0
  %v842 = vmax.f32 %v725, 0.0
  %v843 = vmax.f32 %v728, 0.0
  %v844 = vmax.f32 %v731, 0.0
  %v845 = vmax.f32 %v734, 0.0
  %v846 = vmax.f32 %v737, 0.0
  %v847 = vmax.f32 %v740, 0.0
  %v848 = vmax.f32 %v743, 0.0
  %v849 = vmax.f32 %v746, 0.0
  %v850 = vmax.f32 %v749, 0.0
  %v851 = vmax.f32 %v752, 0.0
  %v852 = vmax.f32 %v755, 0.0
  %v853 = vmax.f32 %v758, 0.0
  %v854 = vmax.f32 %v761, 0.0
  %v855 = vmax.f32 %v764, 0.0
  %v856 = vmax.f32 %v767, 0.0
  %v857 = vmax.f32 %v770, 0.0
  %v858 = vmax.f32 %v773, 0.0
  %v859 = vmax.f32 %v776, 0.0
  %v860 = vmax.f32 %v779, 0.0
  %v861 = vmax.f32 %v782, 0.0
  %v862 = vmax.f32 %v785, 0.0
  %v863 = vmax.f32 %v788, 0.0
  %v864 = vmax.f32 %v791, 0.0
  %v865 = vmax.f32 %v794, 0.0
  %v866 = vmax.f32 %v797, 0.0
  %v867 = vmax.f32 %v800, 0.0
  %v868 = vmax.f32 %v803, 0.0
  %vm869 = vcmask 162816
  %v870 = vsel %vm869, %v805, -inf
  %v871 = vsel %vm869, %v821, -inf
  %v872 = vmax.f32 %v870, %v871
  %v873 = vsel %vm869, %v837, -inf
  %v874 = vmax.f32 %v872, %v873
  %v875 = vsel %vm869, %v853, -inf
  %v876 = vmax.f32 %v874, %v875
  %v877 = vsel %vm869, %v806, -inf
  %v878 = vsel %vm869, %v822, -inf
  %v879 = vmax.f32 %v877, %v878
  %v880 = vsel %vm869, %v838, -inf
  %v881 = vmax.f32 %v879, %v880
  %v882 = vsel %vm869, %v854, -inf
  %v883 = vmax.f32 %v881, %v882
  %v884 = vsel %vm869, %v807, -inf
  %v885 = vsel %vm869, %v823, -inf
  %v886 = vmax.f32 %v884, %v885
  %v887 = vsel %vm869, %v839, -inf
  %v888 = vmax.f32 %v886, %v887
  %v889 = vsel %vm869, %v855, -inf
  %v890 = vmax.f32 %v888, %v889
  %v891 = vsel %vm869, %v808, -inf
  %v892 = vsel %vm869, %v824, -inf
  %v893 = vmax.f32 %v891, %v892
  %v894 = vsel %vm869, %v840, -inf
  %v895 = vmax.f32 %v893, %v894
  %v896 = vsel %vm869, %v856, -inf
  %v897 = vmax.f32 %v895, %v896
  %v898 = vsel %vm869, %v809, -inf
  %v899 = vsel %vm869, %v825, -inf
  %v900 = vmax.f32 %v898, %v899
  %v901 = vsel %vm869, %v841, -inf
  %v902 = vmax.f32 %v900, %v901
  %v903 = vsel %vm869, %v857, -inf
  %v904 = vmax.f32 %v902, %v903
  %v905 = vsel %vm869, %v810, -inf
  %v906 = vsel %vm869, %v826, -inf
  %v907 = vmax.f32 %v905, %v906
  %v908 = vsel %vm869, %v842, -inf
  %v909 = vmax.f32 %v907, %v908
  %v910 = vsel %vm869, %v858, -inf
  %v911 = vmax.f32 %v909, %v910
  %v912 = vsel %vm869, %v811, -inf
  %v913 = vsel %vm869, %v827, -inf
  %v914 = vmax.f32 %v912, %v913
  %v915 = vsel %vm869, %v843, -inf
  %v916 = vmax.f32 %v914, %v915
  %v917 = vsel %vm869, %v859, -inf
  %v918 = vmax.f32 %v916, %v917
  %v919 = vsel %vm869, %v812, -inf
  %v920 = vsel %vm869, %v828, -inf
  %v921 = vmax.f32 %v919, %v920
  %v922 = vsel %vm869, %v844, -inf
  %v923 = vmax.f32 %v921, %v922
  %v924 = vsel %vm869, %v860, -inf
  %v925 = vmax.f32 %v923, %v924
  %v926 = vsel %vm869, %v813, -inf
  %v927 = vsel %vm869, %v829, -inf
  %v928 = vmax.f32 %v926, %v927
  %v929 = vsel %vm869, %v845, -inf
  %v930 = vmax.f32 %v928, %v929
  %v931 = vsel %vm869, %v861, -inf
  %v932 = vmax.f32 %v930, %v931
  %v933 = vsel %vm869, %v814, -inf
  %v934 = vsel %vm869, %v830, -inf
  %v935 = vmax.f32 %v933, %v934
  %v936 = vsel %vm869, %v846, -inf
  %v937 = vmax.f32 %v935, %v936
  %v938 = vsel %vm869, %v862, -inf
  %v939 = vmax.f32 %v937, %v938
  %v940 = vsel %vm869, %v815, -inf
  %v941 = vsel %vm869, %v831, -inf
  %v942 = vmax.f32 %v940, %v941
  %v943 = vsel %vm869, %v847, -inf
  %v944 = vmax.f32 %v942, %v943
  %v945 = vsel %vm869, %v863, -inf
  %v946 = vmax.f32 %v944, %v945
  %v947 = vsel %vm869, %v816, -inf
  %v948 = vsel %vm869, %v832, -inf
  %v949 = vmax.f32 %v947, %v948
  %v950 = vsel %vm869, %v848, -inf
  %v951 = vmax.f32 %v949, %v950
  %v952 = vsel %vm869, %v864, -inf
  %v953 = vmax.f32 %v951, %v952
  %v954 = vsel %vm869, %v817, -inf
  %v955 = vsel %vm869, %v833, -inf
  %v956 = vmax.f32 %v954, %v955
  %v957 = vsel %vm869, %v849, -inf
  %v958 = vmax.f32 %v956, %v957
  %v959 = vsel %vm869, %v865, -inf
  %v960 = vmax.f32 %v958, %v959
  %v961 = vsel %vm869, %v818, -inf
  %v962 = vsel %vm869, %v834, -inf
  %v963 = vmax.f32 %v961, %v962
  %v964 = vsel %vm869, %v850, -inf
  %v965 = vmax.f32 %v963, %v964
  %v966 = vsel %vm869, %v866, -inf
  %v967 = vmax.f32 %v965, %v966
  %v968 = vsel %vm869, %v819, -inf
  %v969 = vsel %vm869, %v835, -inf
  %v970 = vmax.f32 %v968, %v969
  %v971 = vsel %vm869, %v851, -inf
  %v972 = vmax.f32 %v970, %v971
  %v973 = vsel %vm869, %v867, -inf
  %v974 = vmax.f32 %v972, %v973
  %v975 = vsel %vm869, %v820, -inf
  %v976 = vsel %vm869, %v836, -inf
  %v977 = vmax.f32 %v975, %v976
  %v978 = vsel %vm869, %v852, -inf
  %v979 = vmax.f32 %v977, %v978
  %v980 = vsel %vm869, %v868, -inf
  %v981 = vmax.f32 %v979, %v980
  %v982 = vld [vmem:[%s3] sm:$0xff]
  %v983 = vld [vmem:[%s3 + $0x8] sm:$0xff]
  %v984 = vld [vmem:[%s3 + $0x10] sm:$0xf]
  %v985 = vld [vmem:[%s3 + $0x18] sm:$0xff]
  %v986 = vld [vmem:[%s3 + $0x20] sm:$0xff]
  %v987 = vld [vmem:[%s3 + $0x28] sm:$0xf]
  %v988 = vld [vmem:[%s3 + $0x30] sm:$0xff]
  %v989 = vld [vmem:[%s3 + $0x38] sm:$0xff]
  %v990 = vld [vmem:[%s3 + $0x40] sm:$0xf]
  %v991 = vld [vmem:[%s3 + $0x48] sm:$0xff]
  %v992 = vld [vmem:[%s3 + $0x50] sm:$0xff]
  %v993 = vld [vmem:[%s3 + $0x58] sm:$0xf]
  %v994 = vld [vmem:[%s3 + $0x60] sm:$0xff]
  %v995 = vld [vmem:[%s3 + $0x68] sm:$0xff]
  %v996 = vld [vmem:[%s3 + $0x70] sm:$0xf]
  %v997 = vld [vmem:[%s3 + $0x78] sm:$0xff]
  %v998 = vld [vmem:[%s3 + $0x80] sm:$0xff]
  %v999 = vld [vmem:[%s3 + $0x88] sm:$0xf]
  %v1000 = vld [vmem:[%s3 + $0x90] sm:$0xff]
  %v1001 = vld [vmem:[%s3 + $0x98] sm:$0xff]
  %v1002 = vld [vmem:[%s3 + $0xa0] sm:$0xf]
  %v1003 = vld [vmem:[%s3 + $0xa8] sm:$0xff]
  %v1004 = vld [vmem:[%s3 + $0xb0] sm:$0xff]
  %v1005 = vld [vmem:[%s3 + $0xb8] sm:$0xf]
  %v1006 = vld [vmem:[%s3 + $0xc0] sm:$0xff]
  %v1007 = vld [vmem:[%s3 + $0xc8] sm:$0xff]
  %v1008 = vld [vmem:[%s3 + $0xd0] sm:$0xf]
  %v1009 = vld [vmem:[%s3 + $0xd8] sm:$0xff]
  %v1010 = vld [vmem:[%s3 + $0xe0] sm:$0xff]
  %v1011 = vld [vmem:[%s3 + $0xe8] sm:$0xf]
  %v1012 = vld [vmem:[%s3 + $0xf0] sm:$0xff]
  %v1013 = vld [vmem:[%s3 + $0xf8] sm:$0xff]
  %v1014 = vld [vmem:[%s3 + $0x100] sm:$0xf]
  %v1015 = vld [vmem:[%s3 + $0x108] sm:$0xff]
  %v1016 = vld [vmem:[%s3 + $0x110] sm:$0xff]
  %v1017 = vld [vmem:[%s3 + $0x118] sm:$0xf]
  %v1018 = vld [vmem:[%s3 + $0x120] sm:$0xff]
  %v1019 = vld [vmem:[%s3 + $0x128] sm:$0xff]
  %v1020 = vld [vmem:[%s3 + $0x130] sm:$0xf]
  %v1021 = vld [vmem:[%s3 + $0x138] sm:$0xff]
  %v1022 = vld [vmem:[%s3 + $0x140] sm:$0xff]
  %v1023 = vld [vmem:[%s3 + $0x148] sm:$0xf]
  %v1024 = vld [vmem:[%s3 + $0x150] sm:$0xff]
  %v1025 = vld [vmem:[%s3 + $0x158] sm:$0xff]
  %v1026 = vld [vmem:[%s3 + $0x160] sm:$0xf]
  %v1027 = vld [vmem:[%s3 + $0x168] sm:$0xff]
  %v1028 = vld [vmem:[%s3 + $0x170] sm:$0xff]
  %v1029 = vld [vmem:[%s3 + $0x178] sm:$0xf]
  %v1031 = vsel %vm869, %v876, 0
  %vm1033 = vcmask 1043456
  %v1035 = vsel %vm1033, %v984, 0
  %1037 = vmatpush.msra.mxu0 0.0
  %1038 = vmatpush.msra.mxu0 0.0
  %1039 = vmatpush.msra.mxu0 0.0
  %1040 = vmatpush.msra.mxu0 0.0
  %1041 = vmatpush.msra.mxu0 0.0
  %1042 = vmatpush.msra.mxu0 0.0
  %1043 = vmatpush.msra.mxu0 0.0
  %1044 = vmatpush.msra.mxu0 0.0
  %1045 = vmatpush.msra.mxu0 0.0
  %1046 = vmatpush.msra.mxu0 0.0
  %1047 = vmatpush.msra.mxu0 0.0
  %1048 = vmatpush.msra.mxu0 0.0
  %1049 = vmatpush.msra.mxu0 0.0
  %1050 = vmatpush.msra.mxu0 %v1035
  %1051 = vmatpush.msra.mxu0 %v983
  %1052 = vmatpush.msra.mxu0 %v982
  %1053 = vmatmul.f32.gmra.mxu0 %v1031
  %v1054 = vpop.f32.mrf.mxu0
  %v1055 = vadd.f32 0.0, %v1054
  %1056 = vdwg.mxu0
  %v1058 = vsel %vm869, %v883, 0
  %v1061 = vsel %vm1033, %v987, 0
  %1063 = vmatpush.msra.mxu0 0.0
  %1064 = vmatpush.msra.mxu0 0.0
  %1065 = vmatpush.msra.mxu0 0.0
  %1066 = vmatpush.msra.mxu0 0.0
  %1067 = vmatpush.msra.mxu0 0.0
  %1068 = vmatpush.msra.mxu0 0.0
  %1069 = vmatpush.msra.mxu0 0.0
  %1070 = vmatpush.msra.mxu0 0.0
  %1071 = vmatpush.msra.mxu0 0.0
  %1072 = vmatpush.msra.mxu0 0.0
  %1073 = vmatpush.msra.mxu0 0.0
  %1074 = vmatpush.msra.mxu0 0.0
  %1075 = vmatpush.msra.mxu0 0.0
  %1076 = vmatpush.msra.mxu0 %v1061
  %1077 = vmatpush.msra.mxu0 %v986
  %1078 = vmatpush.msra.mxu0 %v985
  %1079 = vmatmul.f32.gmra.mxu0 %v1058
  %v1080 = vpop.f32.mrf.mxu0
  %v1081 = vadd.f32 0.0, %v1080
  %1082 = vdwg.mxu0
  %v1084 = vsel %vm869, %v890, 0
  %v1087 = vsel %vm1033, %v990, 0
  %1089 = vmatpush.msra.mxu0 0.0
  %1090 = vmatpush.msra.mxu0 0.0
  %1091 = vmatpush.msra.mxu0 0.0
  %1092 = vmatpush.msra.mxu0 0.0
  %1093 = vmatpush.msra.mxu0 0.0
  %1094 = vmatpush.msra.mxu0 0.0
  %1095 = vmatpush.msra.mxu0 0.0
  %1096 = vmatpush.msra.mxu0 0.0
  %1097 = vmatpush.msra.mxu0 0.0
  %1098 = vmatpush.msra.mxu0 0.0
  %1099 = vmatpush.msra.mxu0 0.0
  %1100 = vmatpush.msra.mxu0 0.0
  %1101 = vmatpush.msra.mxu0 0.0
  %1102 = vmatpush.msra.mxu0 %v1087
  %1103 = vmatpush.msra.mxu0 %v989
  %1104 = vmatpush.msra.mxu0 %v988
  %1105 = vmatmul.f32.gmra.mxu0 %v1084
  %v1106 = vpop.f32.mrf.mxu0
  %v1107 = vadd.f32 0.0, %v1106
  %1108 = vdwg.mxu0
  %v1110 = vsel %vm869, %v897, 0
  %v1113 = vsel %vm1033, %v993, 0
  %1115 = vmatpush.msra.mxu0 0.0
  %1116 = vmatpush.msra.mxu0 0.0
  %1117 = vmatpush.msra.mxu0 0.0
  %1118 = vmatpush.msra.mxu0 0.0
  %1119 = vmatpush.msra.mxu0 0.0
  %1120 = vmatpush.msra.mxu0 0.0
  %1121 = vmatpush.msra.mxu0 0.0
  %1122 = vmatpush.msra.mxu0 0.0
  %1123 = vmatpush.msra.mxu0 0.0
  %1124 = vmatpush.msra.mxu0 0.0
  %1125 = vmatpush.msra.mxu0 0.0
  %1126 = vmatpush.msra.mxu0 0.0
  %1127 = vmatpush.msra.mxu0 0.0
  %1128 = vmatpush.msra.mxu0 %v1113
  %1129 = vmatpush.msra.mxu0 %v992
  %1130 = vmatpush.msra.mxu0 %v991
  %1131 = vmatmul.f32.gmra.mxu0 %v1110
  %v1132 = vpop.f32.mrf.mxu0
  %v1133 = vadd.f32 0.0, %v1132
  %1134 = vdwg.mxu0
  %v1136 = vsel %vm869, %v904, 0
  %v1139 = vsel %vm1033, %v996, 0
  %1141 = vmatpush.msra.mxu0 0.0
  %1142 = vmatpush.msra.mxu0 0.0
  %1143 = vmatpush.msra.mxu0 0.0
  %1144 = vmatpush.msra.mxu0 0.0
  %1145 = vmatpush.msra.mxu0 0.0
  %1146 = vmatpush.msra.mxu0 0.0
  %1147 = vmatpush.msra.mxu0 0.0
  %1148 = vmatpush.msra.mxu0 0.0
  %1149 = vmatpush.msra.mxu0 0.0
  %1150 = vmatpush.msra.mxu0 0.0
  %1151 = vmatpush.msra.mxu0 0.0
  %1152 = vmatpush.msra.mxu0 0.0
  %1153 = vmatpush.msra.mxu0 0.0
  %1154 = vmatpush.msra.mxu0 %v1139
  %1155 = vmatpush.msra.mxu0 %v995
  %1156 = vmatpush.msra.mxu0 %v994
  %1157 = vmatmul.f32.gmra.mxu0 %v1136
  %v1158 = vpop.f32.mrf.mxu0
  %v1159 = vadd.f32 0.0, %v1158
  %1160 = vdwg.mxu0
  %v1162 = vsel %vm869, %v911, 0
  %v1165 = vsel %vm1033, %v999, 0
  %1167 = vmatpush.msra.mxu0 0.0
  %1168 = vmatpush.msra.mxu0 0.0
  %1169 = vmatpush.msra.mxu0 0.0
  %1170 = vmatpush.msra.mxu0 0.0
  %1171 = vmatpush.msra.mxu0 0.0
  %1172 = vmatpush.msra.mxu0 0.0
  %1173 = vmatpush.msra.mxu0 0.0
  %1174 = vmatpush.msra.mxu0 0.0
  %1175 = vmatpush.msra.mxu0 0.0
  %1176 = vmatpush.msra.mxu0 0.0
  %1177 = vmatpush.msra.mxu0 0.0
  %1178 = vmatpush.msra.mxu0 0.0
  %1179 = vmatpush.msra.mxu0 0.0
  %1180 = vmatpush.msra.mxu0 %v1165
  %1181 = vmatpush.msra.mxu0 %v998
  %1182 = vmatpush.msra.mxu0 %v997
  %1183 = vmatmul.f32.gmra.mxu0 %v1162
  %v1184 = vpop.f32.mrf.mxu0
  %v1185 = vadd.f32 0.0, %v1184
  %1186 = vdwg.mxu0
  %v1188 = vsel %vm869, %v918, 0
  %v1191 = vsel %vm1033, %v1002, 0
  %1193 = vmatpush.msra.mxu0 0.0
  %1194 = vmatpush.msra.mxu0 0.0
  %1195 = vmatpush.msra.mxu0 0.0
  %1196 = vmatpush.msra.mxu0 0.0
  %1197 = vmatpush.msra.mxu0 0.0
  %1198 = vmatpush.msra.mxu0 0.0
  %1199 = vmatpush.msra.mxu0 0.0
  %1200 = vmatpush.msra.mxu0 0.0
  %1201 = vmatpush.msra.mxu0 0.0
  %1202 = vmatpush.msra.mxu0 0.0
  %1203 = vmatpush.msra.mxu0 0.0
  %1204 = vmatpush.msra.mxu0 0.0
  %1205 = vmatpush.msra.mxu0 0.0
  %1206 = vmatpush.msra.mxu0 %v1191
  %1207 = vmatpush.msra.mxu0 %v1001
  %1208 = vmatpush.msra.mxu0 %v1000
  %1209 = vmatmul.f32.gmra.mxu0 %v1188
  %v1210 = vpop.f32.mrf.mxu0
  %v1211 = vadd.f32 0.0, %v1210
  %1212 = vdwg.mxu0
  %v1214 = vsel %vm869, %v925, 0
  %v1217 = vsel %vm1033, %v1005, 0
  %1219 = vmatpush.msra.mxu0 0.0
  %1220 = vmatpush.msra.mxu0 0.0
  %1221 = vmatpush.msra.mxu0 0.0
  %1222 = vmatpush.msra.mxu0 0.0
  %1223 = vmatpush.msra.mxu0 0.0
  %1224 = vmatpush.msra.mxu0 0.0
  %1225 = vmatpush.msra.mxu0 0.0
  %1226 = vmatpush.msra.mxu0 0.0
  %1227 = vmatpush.msra.mxu0 0.0
  %1228 = vmatpush.msra.mxu0 0.0
  %1229 = vmatpush.msra.mxu0 0.0
  %1230 = vmatpush.msra.mxu0 0.0
  %1231 = vmatpush.msra.mxu0 0.0
  %1232 = vmatpush.msra.mxu0 %v1217
  %1233 = vmatpush.msra.mxu0 %v1004
  %1234 = vmatpush.msra.mxu0 %v1003
  %1235 = vmatmul.f32.gmra.mxu0 %v1214
  %v1236 = vpop.f32.mrf.mxu0
  %v1237 = vadd.f32 0.0, %v1236
  %1238 = vdwg.mxu0
  %v1240 = vsel %vm869, %v932, 0
  %v1243 = vsel %vm1033, %v1008, 0
  %1245 = vmatpush.msra.mxu0 0.0
  %1246 = vmatpush.msra.mxu0 0.0
  %1247 = vmatpush.msra.mxu0 0.0
  %1248 = vmatpush.msra.mxu0 0.0
  %1249 = vmatpush.msra.mxu0 0.0
  %1250 = vmatpush.msra.mxu0 0.0
  %1251 = vmatpush.msra.mxu0 0.0
  %1252 = vmatpush.msra.mxu0 0.0
  %1253 = vmatpush.msra.mxu0 0.0
  %1254 = vmatpush.msra.mxu0 0.0
  %1255 = vmatpush.msra.mxu0 0.0
  %1256 = vmatpush.msra.mxu0 0.0
  %1257 = vmatpush.msra.mxu0 0.0
  %1258 = vmatpush.msra.mxu0 %v1243
  %1259 = vmatpush.msra.mxu0 %v1007
  %1260 = vmatpush.msra.mxu0 %v1006
  %1261 = vmatmul.f32.gmra.mxu0 %v1240
  %v1262 = vpop.f32.mrf.mxu0
  %v1263 = vadd.f32 0.0, %v1262
  %1264 = vdwg.mxu0
  %v1266 = vsel %vm869, %v939, 0
  %v1269 = vsel %vm1033, %v1011, 0
  %1271 = vmatpush.msra.mxu0 0.0
  %1272 = vmatpush.msra.mxu0 0.0
  %1273 = vmatpush.msra.mxu0 0.0
  %1274 = vmatpush.msra.mxu0 0.0
  %1275 = vmatpush.msra.mxu0 0.0
  %1276 = vmatpush.msra.mxu0 0.0
  %1277 = vmatpush.msra.mxu0 0.0
  %1278 = vmatpush.msra.mxu0 0.0
  %1279 = vmatpush.msra.mxu0 0.0
  %1280 = vmatpush.msra.mxu0 0.0
  %1281 = vmatpush.msra.mxu0 0.0
  %1282 = vmatpush.msra.mxu0 0.0
  %1283 = vmatpush.msra.mxu0 0.0
  %1284 = vmatpush.msra.mxu0 %v1269
  %1285 = vmatpush.msra.mxu0 %v1010
  %1286 = vmatpush.msra.mxu0 %v1009
  %1287 = vmatmul.f32.gmra.mxu0 %v1266
  %v1288 = vpop.f32.mrf.mxu0
  %v1289 = vadd.f32 0.0, %v1288
  %1290 = vdwg.mxu0
  %v1292 = vsel %vm869, %v946, 0
  %v1295 = vsel %vm1033, %v1014, 0
  %1297 = vmatpush.msra.mxu0 0.0
  %1298 = vmatpush.msra.mxu0 0.0
  %1299 = vmatpush.msra.mxu0 0.0
  %1300 = vmatpush.msra.mxu0 0.0
  %1301 = vmatpush.msra.mxu0 0.0
  %1302 = vmatpush.msra.mxu0 0.0
  %1303 = vmatpush.msra.mxu0 0.0
  %1304 = vmatpush.msra.mxu0 0.0
  %1305 = vmatpush.msra.mxu0 0.0
  %1306 = vmatpush.msra.mxu0 0.0
  %1307 = vmatpush.msra.mxu0 0.0
  %1308 = vmatpush.msra.mxu0 0.0
  %1309 = vmatpush.msra.mxu0 0.0
  %1310 = vmatpush.msra.mxu0 %v1295
  %1311 = vmatpush.msra.mxu0 %v1013
  %1312 = vmatpush.msra.mxu0 %v1012
  %1313 = vmatmul.f32.gmra.mxu0 %v1292
  %v1314 = vpop.f32.mrf.mxu0
  %v1315 = vadd.f32 0.0, %v1314
  %1316 = vdwg.mxu0
  %v1318 = vsel %vm869, %v953, 0
  %v1321 = vsel %vm1033, %v1017, 0
  %1323 = vmatpush.msra.mxu0 0.0
  %1324 = vmatpush.msra.mxu0 0.0
  %1325 = vmatpush.msra.mxu0 0.0
  %1326 = vmatpush.msra.mxu0 0.0
  %1327 = vmatpush.msra.mxu0 0.0
  %1328 = vmatpush.msra.mxu0 0.0
  %1329 = vmatpush.msra.mxu0 0.0
  %1330 = vmatpush.msra.mxu0 0.0
  %1331 = vmatpush.msra.mxu0 0.0
  %1332 = vmatpush.msra.mxu0 0.0
  %1333 = vmatpush.msra.mxu0 0.0
  %1334 = vmatpush.msra.mxu0 0.0
  %1335 = vmatpush.msra.mxu0 0.0
  %1336 = vmatpush.msra.mxu0 %v1321
  %1337 = vmatpush.msra.mxu0 %v1016
  %1338 = vmatpush.msra.mxu0 %v1015
  %1339 = vmatmul.f32.gmra.mxu0 %v1318
  %v1340 = vpop.f32.mrf.mxu0
  %v1341 = vadd.f32 0.0, %v1340
  %1342 = vdwg.mxu0
  %v1344 = vsel %vm869, %v960, 0
  %v1347 = vsel %vm1033, %v1020, 0
  %1349 = vmatpush.msra.mxu0 0.0
  %1350 = vmatpush.msra.mxu0 0.0
  %1351 = vmatpush.msra.mxu0 0.0
  %1352 = vmatpush.msra.mxu0 0.0
  %1353 = vmatpush.msra.mxu0 0.0
  %1354 = vmatpush.msra.mxu0 0.0
  %1355 = vmatpush.msra.mxu0 0.0
  %1356 = vmatpush.msra.mxu0 0.0
  %1357 = vmatpush.msra.mxu0 0.0
  %1358 = vmatpush.msra.mxu0 0.0
  %1359 = vmatpush.msra.mxu0 0.0
  %1360 = vmatpush.msra.mxu0 0.0
  %1361 = vmatpush.msra.mxu0 0.0
  %1362 = vmatpush.msra.mxu0 %v1347
  %1363 = vmatpush.msra.mxu0 %v1019
  %1364 = vmatpush.msra.mxu0 %v1018
  %1365 = vmatmul.f32.gmra.mxu0 %v1344
  %v1366 = vpop.f32.mrf.mxu0
  %v1367 = vadd.f32 0.0, %v1366
  %1368 = vdwg.mxu0
  %v1370 = vsel %vm869, %v967, 0
  %v1373 = vsel %vm1033, %v1023, 0
  %1375 = vmatpush.msra.mxu0 0.0
  %1376 = vmatpush.msra.mxu0 0.0
  %1377 = vmatpush.msra.mxu0 0.0
  %1378 = vmatpush.msra.mxu0 0.0
  %1379 = vmatpush.msra.mxu0 0.0
  %1380 = vmatpush.msra.mxu0 0.0
  %1381 = vmatpush.msra.mxu0 0.0
  %1382 = vmatpush.msra.mxu0 0.0
  %1383 = vmatpush.msra.mxu0 0.0
  %1384 = vmatpush.msra.mxu0 0.0
  %1385 = vmatpush.msra.mxu0 0.0
  %1386 = vmatpush.msra.mxu0 0.0
  %1387 = vmatpush.msra.mxu0 0.0
  %1388 = vmatpush.msra.mxu0 %v1373
  %1389 = vmatpush.msra.mxu0 %v1022
  %1390 = vmatpush.msra.mxu0 %v1021
  %1391 = vmatmul.f32.gmra.mxu0 %v1370
  %v1392 = vpop.f32.mrf.mxu0
  %v1393 = vadd.f32 0.0, %v1392
  %1394 = vdwg.mxu0
  %v1396 = vsel %vm869, %v974, 0
  %v1399 = vsel %vm1033, %v1026, 0
  %1401 = vmatpush.msra.mxu0 0.0
  %1402 = vmatpush.msra.mxu0 0.0
  %1403 = vmatpush.msra.mxu0 0.0
  %1404 = vmatpush.msra.mxu0 0.0
  %1405 = vmatpush.msra.mxu0 0.0
  %1406 = vmatpush.msra.mxu0 0.0
  %1407 = vmatpush.msra.mxu0 0.0
  %1408 = vmatpush.msra.mxu0 0.0
  %1409 = vmatpush.msra.mxu0 0.0
  %1410 = vmatpush.msra.mxu0 0.0
  %1411 = vmatpush.msra.mxu0 0.0
  %1412 = vmatpush.msra.mxu0 0.0
  %1413 = vmatpush.msra.mxu0 0.0
  %1414 = vmatpush.msra.mxu0 %v1399
  %1415 = vmatpush.msra.mxu0 %v1025
  %1416 = vmatpush.msra.mxu0 %v1024
  %1417 = vmatmul.f32.gmra.mxu0 %v1396
  %v1418 = vpop.f32.mrf.mxu0
  %v1419 = vadd.f32 0.0, %v1418
  %1420 = vdwg.mxu0
  %v1422 = vsel %vm869, %v981, 0
  %v1425 = vsel %vm1033, %v1029, 0
  %1427 = vmatpush.msra.mxu0 0.0
  %1428 = vmatpush.msra.mxu0 0.0
  %1429 = vmatpush.msra.mxu0 0.0
  %1430 = vmatpush.msra.mxu0 0.0
  %1431 = vmatpush.msra.mxu0 0.0
  %1432 = vmatpush.msra.mxu0 0.0
  %1433 = vmatpush.msra.mxu0 0.0
  %1434 = vmatpush.msra.mxu0 0.0
  %1435 = vmatpush.msra.mxu0 0.0
  %1436 = vmatpush.msra.mxu0 0.0
  %1437 = vmatpush.msra.mxu0 0.0
  %1438 = vmatpush.msra.mxu0 0.0
  %1439 = vmatpush.msra.mxu0 0.0
  %1440 = vmatpush.msra.mxu0 %v1425
  %1441 = vmatpush.msra.mxu0 %v1028
  %1442 = vmatpush.msra.mxu0 %v1027
  %1443 = vmatmul.f32.gmra.mxu0 %v1422
  %v1444 = vpop.f32.mrf.mxu0
  %v1445 = vadd.f32 0.0, %v1444
  %1446 = vdwg.mxu0
  %vm1447 = vcmask 408576
  %v1448 = vsel %vm1447, %v1055, 0.0
  %v1449 = vsel %vm1447, %v1081, 0.0
  %v1450 = vadd.f32 %v1448, %v1449
  %v1451 = vsel %vm1447, %v1107, 0.0
  %v1452 = vadd.f32 %v1450, %v1451
  %v1453 = vsel %vm1447, %v1133, 0.0
  %v1454 = vadd.f32 %v1452, %v1453
  %v1455 = vsel %vm1447, %v1159, 0.0
  %v1456 = vadd.f32 %v1454, %v1455
  %v1457 = vsel %vm1447, %v1185, 0.0
  %v1458 = vadd.f32 %v1456, %v1457
  %v1459 = vsel %vm1447, %v1211, 0.0
  %v1460 = vadd.f32 %v1458, %v1459
  %v1461 = vsel %vm1447, %v1237, 0.0
  %v1462 = vadd.f32 %v1460, %v1461
  %v1463 = vsel %vm1447, %v1263, 0.0
  %v1464 = vadd.f32 %v1462, %v1463
  %v1465 = vsel %vm1447, %v1289, 0.0
  %v1466 = vadd.f32 %v1464, %v1465
  %v1467 = vsel %vm1447, %v1315, 0.0
  %v1468 = vadd.f32 %v1466, %v1467
  %v1469 = vsel %vm1447, %v1341, 0.0
  %v1470 = vadd.f32 %v1468, %v1469
  %v1471 = vsel %vm1447, %v1367, 0.0
  %v1472 = vadd.f32 %v1470, %v1471
  %v1473 = vsel %vm1447, %v1393, 0.0
  %v1474 = vadd.f32 %v1472, %v1473
  %v1475 = vsel %vm1447, %v1419, 0.0
  %v1476 = vadd.f32 %v1474, %v1475
  %v1477 = vsel %vm1447, %v1445, 0.0
  %v1478 = vadd.f32 %v1476, %v1477
  %v1479 = vld [vmem:[%s4] sm:$0x1]
  %v1481 = vperm.slane %v1479, 0
  %v1483 = vadd.f32 %v1478, %v1481
  %v1484 = vmax.f32 %v1483, 0.0
  %v1485 = vld [vmem:[%s5] sm:$0xff]
  %v1486 = vld [vmem:[%s5 + $0x8] sm:$0xff]
  %v1487 = vld [vmem:[%s5 + $0x10] sm:$0xff]
  %v1488 = vld [vmem:[%s5 + $0x18] sm:$0xff]
  %v1489 = vld [vmem:[%s5 + $0x20] sm:$0xff]
  %v1490 = vld [vmem:[%s5 + $0x28] sm:$0xff]
  %v1491 = vld [vmem:[%s5 + $0x30] sm:$0x3]
  %v1492 = vld [vmem:[%s6] sm:$0x1]
  %v1494 = vperm.slane %v1492, 0
  %v1497 = vsel %vm1447, %v1484, 0
  %v1500 = vsel %vm383, %v1491, 0
  %1502 = vmatpush.msra.mxu0 0.0
  %1503 = vmatpush.msra.mxu0 0.0
  %1504 = vmatpush.msra.mxu0 0.0
  %1505 = vmatpush.msra.mxu0 0.0
  %1506 = vmatpush.msra.mxu0 0.0
  %1507 = vmatpush.msra.mxu0 0.0
  %1508 = vmatpush.msra.mxu0 0.0
  %1509 = vmatpush.msra.mxu0 0.0
  %1510 = vmatpush.msra.mxu0 0.0
  %1511 = vmatpush.msra.mxu0 %v1500
  %1512 = vmatpush.msra.mxu0 %v1490
  %1513 = vmatpush.msra.mxu0 %v1489
  %1514 = vmatpush.msra.mxu0 %v1488
  %1515 = vmatpush.msra.mxu0 %v1487
  %1516 = vmatpush.msra.mxu0 %v1486
  %1517 = vmatpush.msra.mxu0 %v1485
  %1518 = vmatmul.f32.gmra.mxu0 %v1497
  %v1519 = vpop.f32.mrf.mxu0
  %v1520 = vadd.f32 %v1494, %v1519
  %1521 = vdwg.mxu0
  %vm1522 = vcmask 80896
  %v1523 = vsel %vm1522, %v1520, -inf
  %1524 = vmax.xlane.f32.xlu0 %v1523
  %v1525 = vpop.xlane.xlu0 %1524
  %v1526 = vsub.f32 %v1520, %v1525
  %v1527 = vmul.f32 %v1526, 1.442695
  %v1528 = vpow.pop %v1527
  %v1529 = vsel %vm1522, %v1528, 0.0
  %1530 = vadd.xlane.f32.xlu0 %v1529
  %v1531 = vpop.xlane.xlu0 %1530
  %v1532 = vlog2.pop %v1531
  %v1533 = vmul.f32 %v1532, 0.6931472
  %v1534 = vsub.f32 %v1526, %v1533
  %1535 = vst.msk [vmem:[%s7] sm:$0xff] %vm1522, %v1534
  // Predicated region
  $region30: #{net_forward.3} parent=0 // pred_check
    _
  $region31: #{net_forward.3} parent=0 // pred_check_branch
    %1537 = sbr.rel (0) target = $region33
  $region32: #{net_forward.3} parent=0 // pred_region
    _
  $region33: #{net_forward.3} parent=0 // pred_fallthru
    _
  // Predicated region
  $region34: #{net_forward.3} parent=0 // pred_check
    _
  $region35: #{net_forward.3} parent=0 // pred_check_branch
    %1539 = sbr.rel (0) target = $region37
  $region36: #{net_forward.3} parent=0 // pred_region
    _
  $region37: #{net_forward.3} parent=0 // pred_fallthru
    _

</llo_original>
